<compile_context>
chip_gen: v7x
topology: tpu7x:2x2x1
jax: 0.10.0
libtpu: 0.0.40
codegen_flags: <defaults>
</compile_context>

<pallas_src>
import jax
import jax.numpy as jnp
from jax.experimental import pallas as pl
from jax.experimental.pallas import tpu as pltpu

EPS = 1e-5


# --------------------------------------------------------------------------- #
# in-kernel helpers
# --------------------------------------------------------------------------- #
def _conv3x3_from_padded(pad_ref, w_ref, th, w, c):
    """3x3 'same' conv on one spatial tile as a single MXU matmul.

    pad_ref : VMEM ref, (th+2, w+2, c)  zero/halo-padded NHWC input tile.
    w_ref   : VMEM ref, (9*c, c_out)    weights, row index = kx*3*c + ky*c + ci.
    returns : (th*w, c_out) f32 raw conv output for the tile.
    """
    r0 = pad_ref[0:th, :, :]
    r1 = pad_ref[1:th + 1, :, :]
    r2 = pad_ref[2:th + 2, :, :]
    rows = jnp.concatenate([r0, r1, r2], axis=-1)                 # (th, w+2, 3c)
    cols = jnp.concatenate(
        [rows[:, 0:w, :], rows[:, 1:w + 1, :], rows[:, 2:w + 2, :]],
        axis=-1)                                                  # (th, w, 9c)
    patches = cols.reshape(th * w, 9 * c)                         # im2col, built once
    return jnp.dot(patches, w_ref[...], preferred_element_type=jnp.float32)


def _partial_bn_stats(y, st_ref):
    """One-pass per-tile BN partials: st_ref[0, 0] = [sum, sum_of_squares]."""
    s = jnp.sum(y, axis=0, keepdims=True)
    ss = jnp.sum(y * y, axis=0, keepdims=True)
    st_ref[0, 0, :, :] = jnp.concatenate([s, ss], axis=0)


# --------------------------------------------------------------------------- #
# kernels
# --------------------------------------------------------------------------- #
def _make_conv1_kernel(TH, W, Cin, Cmid):
    def kernel(xm_ref, xh0_ref, xh1_ref, w_ref, y_ref, st_ref, scr):
        # Assemble the (TH+2, W+2, Cin) haloed tile from the pre-padded input:
        # main rows [i*TH, i*TH+TH) plus the two rows that follow.
        scr[0:TH, :, :] = xm_ref[0, :, :, :]
        scr[TH:TH + 1, :, :] = xh0_ref[0, :, :, :]
        scr[TH + 1:TH + 2, :, :] = xh1_ref[0, :, :, :]
        y = _conv3x3_from_padded(scr, w_ref, TH, W, Cin)          # (TH*W, Cmid)
        _partial_bn_stats(y, st_ref)
        y_ref[0, :, :, :] = y.reshape(TH, W, Cmid)

    return kernel


def _make_conv2_kernel(TH, W, Cmid, Cout):
    Wp = W + 2

    def kernel(top_ref, bot_ref,                  # scalar prefetch (used by index maps)
               y1m_ref, y1t_ref, y1b_ref,         # conv1 raw output: tile + row halos
               sc_ref, sh_ref, ht_ref, w_ref,     # BN1 affine, time embed, weights
               y2_ref, st_ref, scr):
        del top_ref, bot_ref
        n = pl.program_id(0)
        i = pl.program_id(1)
        n_h = pl.num_programs(1)

        scale = sc_ref[...]                       # (1, Cmid)
        shift = sh_ref[...]                       # (1, Cmid)
        ht = ht_ref[pl.ds(n, 1), :]               # (1, Cmid) time embedding of batch n

        def act(v):                               # BN1 affine -> ReLU -> + time embed
            return jnp.maximum(v * scale + shift, 0.0) + ht

        h_mid = act(y1m_ref[0, :, :, :])                                      # (TH, W, Cmid)
        h_top = act(y1t_ref[0, :, :, :]) * jnp.where(i == 0, 0.0, 1.0)        # (1, W, Cmid)
        h_bot = act(y1b_ref[0, :, :, :]) * jnp.where(i == n_h - 1, 0.0, 1.0)  # (1, W, Cmid)

        # zero-padded (TH+2, W+2, Cmid) tile of h, built in VMEM (no HBM pad pass)
        zcol = jnp.zeros((TH + 2, 1, Cmid), jnp.float32)
        scr[:, 0:1, :] = zcol
        scr[:, W + 1:Wp, :] = zcol
        scr[0:1, 1:W + 1, :] = h_top
        scr[1:TH + 1, 1:W + 1, :] = h_mid
        scr[TH + 1:TH + 2, 1:W + 1, :] = h_bot

        y = _conv3x3_from_padded(scr, w_ref, TH, W, Cmid)         # (TH*W, Cout)
        _partial_bn_stats(y, st_ref)
        y2_ref[0, :, :, :] = y.reshape(TH, W, Cout)

    return kernel


def _bn_relu_kernel(y_ref, sc_ref, sh_ref, o_ref):
    # lane-dense elementwise finalize: y * (gamma/std) + shift, then ReLU
    o_ref[0, :, :] = jnp.maximum(y_ref[0, :, :] * sc_ref[...] + sh_ref[...], 0.0)


# --------------------------------------------------------------------------- #
# wrapper-side helpers
# --------------------------------------------------------------------------- #
def _pick_tile_h(H, W, c_in, c_mid, c_out, budget_bytes=10 * 1024 * 1024):
    """Largest H-tile (multiple of 8 dividing H, else H) fitting the VMEM budget."""
    def est(th):
        conv1 = th * (W + 2) * c_in * 3 + th * W * 9 * c_in + th * W * c_mid * 3
        conv2 = th * W * c_mid * 5 + th * W * 9 * c_mid + th * W * c_out * 3
        return 4 * max(conv1, conv2)

    cands = sorted((th for th in range(8, H + 1, 8) if H % th == 0), reverse=True)
    for th in cands:
        if est(th) <= budget_bytes:
            return th
    return cands[-1] if cands else H


def _bn_affine(stats, count, gamma, beta):
    """Reduce per-tile (sum, sum_sq) partials to the BN affine (scale, shift)."""
    s = jnp.sum(stats[:, :, 0, :], axis=(0, 1))
    ss = jnp.sum(stats[:, :, 1, :], axis=(0, 1))
    mean = s / count
    var = jnp.maximum(ss / count - mean * mean, 0.0)   # biased var (PyTorch training BN)
    scale = gamma * jax.lax.rsqrt(var + EPS)
    shift = beta - mean * scale
    return scale, shift


def double_conv_pallas(x, ht, params, *, vmem_limit_bytes=48 * 1024 * 1024):
    """DoubleConv forward on NHWC input x (N,H,W,Cin) with time embedding ht (N,Cmid)."""
    N, H, W, Cin = x.shape
    w1, w2 = params["w1"], params["w2"]
    Cmid, Cout = w1.shape[0], w2.shape[0]
    assert w1.shape[1] == Cin and w2.shape[1] == Cmid

    # im2col weight layout: row index = kx*3*C + ky*C + ci (matches patch build order)
    w1m = jnp.transpose(w1, (3, 2, 1, 0)).reshape(9 * Cin, Cmid).astype(jnp.float32)
    w2m = jnp.transpose(w2, (3, 2, 1, 0)).reshape(9 * Cmid, Cout).astype(jnp.float32)

    TH = _pick_tile_h(H, W, Cin, Cmid, Cout)
    nH = H // TH
    assert H % TH == 0
    Wp = W + 2
    grid = (N, nH)
    count = N * H * W
    cparams = pltpu.CompilerParams(
        dimension_semantics=("parallel", "parallel"),
        vmem_limit_bytes=vmem_limit_bytes,
    )

    # ---- phase 1: conv1 (raw) + per-tile BN1 partial sums --------------------
    xpad = jnp.pad(x.astype(jnp.float32), ((0, 0), (1, 1), (1, 1), (0, 0)))
    y1, st1 = pl.pallas_call(
        _make_conv1_kernel(TH, W, Cin, Cmid),
        grid=grid,
        in_specs=[
            pl.BlockSpec((1, TH, Wp, Cin), lambda n, i: (n, i, 0, 0)),
            pl.BlockSpec((1, 1, Wp, Cin), lambda n, i: (n, (i + 1) * TH, 0, 0)),
            pl.BlockSpec((1, 1, Wp, Cin), lambda n, i: (n, (i + 1) * TH + 1, 0, 0)),
            pl.BlockSpec((9 * Cin, Cmid), lambda n, i: (0, 0)),
        ],
        out_specs=(
            pl.BlockSpec((1, TH, W, Cmid), lambda n, i: (n, i, 0, 0)),
            pl.BlockSpec((1, 1, 2, Cmid), lambda n, i: (n, i, 0, 0)),
        ),
        out_shape=(
            jax.ShapeDtypeStruct((N, H, W, Cmid), jnp.float32),
            jax.ShapeDtypeStruct((N, nH, 2, Cmid), jnp.float32),
        ),
        scratch_shapes=[pltpu.VMEM((TH + 2, Wp, Cin), jnp.float32)],
        compiler_params=cparams,
    )(xpad, xpad, xpad, w1m)

    scale1, shift1 = _bn_affine(st1, count, params["gamma1"], params["beta1"])

    # ---- phase 2: BN1+ReLU+time-add, conv2, per-tile BN2 partials (fused) -----
    # conv2's 1-row halos are re-read from y1 (clamped row indices via scalar
    # prefetch) and re-normalized in VMEM; image-boundary halos are zeroed.
    idx = jnp.arange(nH, dtype=jnp.int32)
    top_rows = jnp.maximum(idx * TH - 1, 0)
    bot_rows = jnp.minimum((idx + 1) * TH, H - 1)
    grid_spec = pltpu.PrefetchScalarGridSpec(
        num_scalar_prefetch=2,
        grid=grid,
        in_specs=[
            pl.BlockSpec((1, TH, W, Cmid), lambda n, i, tr, br: (n, i, 0, 0)),
            pl.BlockSpec((1, 1, W, Cmid), lambda n, i, tr, br: (n, tr[i], 0, 0)),
            pl.BlockSpec((1, 1, W, Cmid), lambda n, i, tr, br: (n, br[i], 0, 0)),
            pl.BlockSpec((1, Cmid), lambda n, i, tr, br: (0, 0)),
            pl.BlockSpec((1, Cmid), lambda n, i, tr, br: (0, 0)),
            pl.BlockSpec((N, Cmid), lambda n, i, tr, br: (0, 0)),
            pl.BlockSpec((9 * Cmid, Cout), lambda n, i, tr, br: (0, 0)),
        ],
        out_specs=(
            pl.BlockSpec((1, TH, W, Cout), lambda n, i, tr, br: (n, i, 0, 0)),
            pl.BlockSpec((1, 1, 2, Cout), lambda n, i, tr, br: (n, i, 0, 0)),
        ),
        scratch_shapes=[pltpu.VMEM((TH + 2, Wp, Cmid), jnp.float32)],
    )
    y2, st2 = pl.pallas_call(
        _make_conv2_kernel(TH, W, Cmid, Cout),
        grid_spec=grid_spec,
        out_shape=(
            jax.ShapeDtypeStruct((N, H, W, Cout), jnp.float32),
            jax.ShapeDtypeStruct((N, nH, 2, Cout), jnp.float32),
        ),
        compiler_params=cparams,
    )(top_rows, bot_rows, y1, y1, y1,
      scale1.reshape(1, Cmid), shift1.reshape(1, Cmid),
      ht.astype(jnp.float32), w2m)

    scale2, shift2 = _bn_affine(st2, count, params["gamma2"], params["beta2"])

    # ---- phase 3: BN2 + ReLU on a lane-dense (N, H, W*Cout) view --------------
    sc2 = jnp.tile(scale2, W).reshape(1, W * Cout)
    sh2 = jnp.tile(shift2, W).reshape(1, W * Cout)
    y2_flat = y2.reshape(N, H, W * Cout)               # contiguous merge: free in XLA
    out_flat = pl.pallas_call(
        _bn_relu_kernel,
        grid=grid,
        in_specs=[
            pl.BlockSpec((1, TH, W * Cout), lambda n, i: (n, i, 0)),
            pl.BlockSpec((1, W * Cout), lambda n, i: (0, 0)),
            pl.BlockSpec((1, W * Cout), lambda n, i: (0, 0)),
        ],
        out_specs=pl.BlockSpec((1, TH, W * Cout), lambda n, i: (n, i, 0)),
        out_shape=jax.ShapeDtypeStruct((N, H, W * Cout), jnp.float32),
        compiler_params=cparams,
    )(y2_flat, sc2, sh2)
    return out_flat.reshape(N, H, W, Cout)


# --------------------------------------------------------------------------- #
# Up-level forward (bilinear branch) and parameter init
# --------------------------------------------------------------------------- #
def _interp_matrix(out_size, in_size):
    """(out, in) 1-D bilinear interpolation matrix, align_corners=True."""
    if in_size == 1:
        return jnp.ones((out_size, 1), jnp.float32)
    pos = jnp.arange(out_size, dtype=jnp.float32) * ((in_size - 1) / (out_size - 1))
    lo = jnp.clip(jnp.floor(pos), 0, in_size - 1).astype(jnp.int32)
    hi = jnp.minimum(lo + 1, in_size - 1)
    frac = pos - lo.astype(jnp.float32)
    rows = jnp.arange(out_size)
    m = jnp.zeros((out_size, in_size), jnp.float32)
    m = m.at[rows, lo].add(1.0 - frac)
    m = m.at[rows, hi].add(frac)
    return m


def _bilinear_upsample_2x(x_nhwc):
    """nn.Upsample(scale_factor=2, mode='bilinear', align_corners=True), NHWC."""
    _, h, w, _ = x_nhwc.shape
    mh = _interp_matrix(2 * h, h)
    mw = _interp_matrix(2 * w, w)
    return jnp.einsum("ip,jq,npqc->nijc", mh, mw, x_nhwc)


def up_forward(x1_nchw, x2_nchw, t, params):
    """Forward of `Up(bilinear=True)`: upsample x1, pad to x2, concat, DoubleConv."""
    x1 = jnp.transpose(x1_nchw, (0, 2, 3, 1)).astype(jnp.float32)   # NCHW -> NHWC
    x2 = jnp.transpose(x2_nchw, (0, 2, 3, 1)).astype(jnp.float32)
    # TODO(synk): the bilinear upsample / pad / concat and the boundary
    # NCHW<->NHWC transposes are pure data movement done with XLA ops; only the
    # bilinear=True branch of Up is implemented (ConvTranspose2d branch is not).
    x1u = _bilinear_upsample_2x(x1)
    dy = x2.shape[1] - x1u.shape[1]
    dx = x2.shape[2] - x1u.shape[2]
    x1u = jnp.pad(x1u, ((0, 0), (dy // 2, dy - dy // 2),
                        (dx // 2, dx - dx // 2), (0, 0)))
    x = jnp.concatenate([x2, x1u], axis=-1)

    # time MLP (SiLU -> Linear), hoisted out of the kernels (computed once):
    ts = jax.nn.silu(t.astype(jnp.float32))
    ht = ts @ jnp.transpose(params["w_lin"]) + params["b_lin"]      # (N, Cmid)

    out_nhwc = double_conv_pallas(x, ht, params)
    return jnp.transpose(out_nhwc, (0, 3, 1, 2))                    # NHWC -> NCHW


def init_params(key, in_channels, out_channels, mid_channels, time_channels):
    ks = jax.random.split(key, 4)

    def uniform(k, shape, fan_in):
        bound = 1.0 / jnp.sqrt(fan_in)
        return jax.random.uniform(k, shape, jnp.float32, -bound, bound)

    return {
        "w1": uniform(ks[0], (mid_channels, in_channels, 3, 3), in_channels * 9),
        "w2": uniform(ks[1], (out_channels, mid_channels, 3, 3), mid_channels * 9),
        "w_lin": uniform(ks[2], (mid_channels, time_channels), time_channels),
        "b_lin": uniform(ks[3], (mid_channels,), time_channels),
        "gamma1": jnp.ones((mid_channels,), jnp.float32),
        "beta1": jnp.zeros((mid_channels,), jnp.float32),
        "gamma2": jnp.ones((out_channels,), jnp.float32),
        "beta2": jnp.zeros((out_channels,), jnp.float32),
    }


if __name__ == "__main__":
    # Up(in_channels=16, out_channels=16, bilinear=True, time_channels=32):
    #   x1: decoder feature (N, 8, 8, 8)  -> upsampled to 16x16
    #   x2: skip feature    (N, 8, 16, 16)
    #   concat -> 16 channels; DoubleConv mid_channels = in_channels // 2 = 8
    N = 2
    c_x1, c_x2 = 8, 8
    in_channels = c_x1 + c_x2
    out_channels = 16
    mid_channels = in_channels // 2
    time_channels = 32
    h_x1 = w_x1 = 8
    h_x2 = w_x2 = 16

    key = jax.random.PRNGKey(0)
    k1, k2, k3, kp = jax.random.split(key, 4)
    x1 = jax.random.normal(k1, (N, c_x1, h_x1, w_x1), jnp.float32)
    x2 = jax.random.normal(k2, (N, c_x2, h_x2, w_x2), jnp.float32)
    t = jax.random.normal(k3, (N, time_channels), jnp.float32)
    params = init_params(kp, in_channels, out_channels, mid_channels, time_channels)

    out = jax.jit(up_forward)(x1, x2, t, params)
    jax.block_until_ready(out)
    assert out.shape == (N, out_channels, h_x2, w_x2), out.shape
    assert bool(jnp.all(jnp.isfinite(out)))
    print("KERNEL_OK")
</pallas_src>

<mosaic_0001>
module attributes {stable_mosaic.version = 11 : i64} {
  func.func private @main(%arg0: i32) attributes {dimension_semantics = [#tpu.dimension_semantics<core_parallel>], iteration_bounds = array<i64: 2>, tpu.core_type = #tpu.core_type<sc_scalar_subcore>, window_params = []} {
    return
  }
}

module attributes {stable_mosaic.version = 11 : i64} {
  func.func private @main(%arg0: i32) attributes {dimension_semantics = [#tpu.dimension_semantics<core_parallel>], iteration_bounds = array<i64: 2>, tpu.core_type = #tpu.core_type<sc_scalar_subcore>, window_params = []} {
    return
  }
}

module attributes {stable_mosaic.version = 11 : i64} {
  func.func @kernel(%arg0: i32, %arg1: i32, %arg2: memref<1x16x18x16xf32, #tpu.memory_space<vmem>>, %arg3: memref<1x1x18x16xf32, #tpu.memory_space<vmem>>, %arg4: memref<1x1x18x16xf32, #tpu.memory_space<vmem>>, %arg5: memref<144x8xf32, #tpu.memory_space<vmem>>, %arg6: memref<1x16x16x8xf32, #tpu.memory_space<vmem>>, %arg7: memref<1x1x2x8xf32, #tpu.memory_space<vmem>>, %arg8: memref<18x18x16xf32, #tpu.memory_space<vmem>>) attributes {dimension_semantics = [#tpu.dimension_semantics<parallel>, #tpu.dimension_semantics<parallel>], iteration_bounds = array<i64: 2, 1>, scalar_prefetch = 0 : i64, scratch_operands = 1 : i64, tpu.core_type = #tpu.core_type<tc>, window_params = [{transform_indices = @transform_0, window_bounds = array<i64: 1, 16, 18, 16>}, {transform_indices = @transform_1, window_bounds = array<i64: 1, 1, 18, 16>}, {transform_indices = @transform_2, window_bounds = array<i64: 1, 1, 18, 16>}, {pipeline_mode = #tpu.pipeline_mode<synchronous>, transform_indices = @transform_3, window_bounds = array<i64: 144, 8>}, {transform_indices = @transform_4, window_bounds = array<i64: 1, 16, 16, 8>}, {transform_indices = @transform_5, window_bounds = array<i64: 1, 1, 2, 8>}]} {
    %c0 = arith.constant 0 : index
    %c0_0 = arith.constant 0 : index
    %c0_1 = arith.constant 0 : index
    %c0_2 = arith.constant 0 : index
    %0 = vector.load %arg2[%c0, %c0_0, %c0_1, %c0_2] : memref<1x16x18x16xf32, #tpu.memory_space<vmem>>, vector<1x16x18x16xf32>
    %1 = vector.shape_cast %0 : vector<1x16x18x16xf32> to vector<16x18x16xf32>
    %c0_3 = arith.constant 0 : index
    %c0_4 = arith.constant 0 : index
    %c0_5 = arith.constant 0 : index
    %2 = vector.load %arg8[%c0_3, %c0_4, %c0_5] : memref<18x18x16xf32, #tpu.memory_space<vmem>>, vector<16x18x16xf32>
    tpu.vector_store %arg8[%c0_3, %c0_4, %c0_5], %1 {strides = array<i32>} : memref<18x18x16xf32, #tpu.memory_space<vmem>>, vector<16x18x16xf32>,
    %c0_6 = arith.constant 0 : index
    %c0_7 = arith.constant 0 : index
    %c0_8 = arith.constant 0 : index
    %c0_9 = arith.constant 0 : index
    %3 = vector.load %arg3[%c0_6, %c0_7, %c0_8, %c0_9] : memref<1x1x18x16xf32, #tpu.memory_space<vmem>>, vector<1x1x18x16xf32>
    %4 = vector.shape_cast %3 : vector<1x1x18x16xf32> to vector<1x18x16xf32>
    %c16 = arith.constant 16 : index
    %c0_10 = arith.constant 0 : index
    %c0_11 = arith.constant 0 : index
    %5 = vector.load %arg8[%c16, %c0_10, %c0_11] : memref<18x18x16xf32, #tpu.memory_space<vmem>>, vector<1x18x16xf32>
    tpu.vector_store %arg8[%c16, %c0_10, %c0_11], %4 {strides = array<i32>} : memref<18x18x16xf32, #tpu.memory_space<vmem>>, vector<1x18x16xf32>,
    %c0_12 = arith.constant 0 : index
    %c0_13 = arith.constant 0 : index
    %c0_14 = arith.constant 0 : index
    %c0_15 = arith.constant 0 : index
    %6 = vector.load %arg4[%c0_12, %c0_13, %c0_14, %c0_15] : memref<1x1x18x16xf32, #tpu.memory_space<vmem>>, vector<1x1x18x16xf32>
    %7 = vector.shape_cast %6 : vector<1x1x18x16xf32> to vector<1x18x16xf32>
    %c17 = arith.constant 17 : index
    %c0_16 = arith.constant 0 : index
    %c0_17 = arith.constant 0 : index
    %8 = vector.load %arg8[%c17, %c0_16, %c0_17] : memref<18x18x16xf32, #tpu.memory_space<vmem>>, vector<1x18x16xf32>
    tpu.vector_store %arg8[%c17, %c0_16, %c0_17], %7 {strides = array<i32>} : memref<18x18x16xf32, #tpu.memory_space<vmem>>, vector<1x18x16xf32>,
    %c0_18 = arith.constant 0 : index
    %c0_19 = arith.constant 0 : index
    %c0_20 = arith.constant 0 : index
    %9 = vector.load %arg8[%c0_18, %c0_19, %c0_20] : memref<18x18x16xf32, #tpu.memory_space<vmem>>, vector<16x18x16xf32>
    %c1 = arith.constant 1 : index
    %c0_21 = arith.constant 0 : index
    %c0_22 = arith.constant 0 : index
    %10 = vector.load %arg8[%c1, %c0_21, %c0_22] : memref<18x18x16xf32, #tpu.memory_space<vmem>>, vector<16x18x16xf32>
    %c2 = arith.constant 2 : index
    %c0_23 = arith.constant 0 : index
    %c0_24 = arith.constant 0 : index
    %11 = vector.load %arg8[%c2, %c0_23, %c0_24] : memref<18x18x16xf32, #tpu.memory_space<vmem>>, vector<16x18x16xf32>
    %12 = tpu.concatenate %9, %10, %11 in 2 : vector<16x18x16xf32>, vector<16x18x16xf32>, vector<16x18x16xf32> -> vector<16x18x48xf32>
    %13 = vector.extract_strided_slice %12 {offsets = [0, 0, 0], sizes = [16, 16, 48], strides = [1, 1, 1]} : vector<16x18x48xf32> to vector<16x16x48xf32>
    %14 = vector.extract_strided_slice %12 {offsets = [0, 1, 0], sizes = [16, 16, 48], strides = [1, 1, 1]} : vector<16x18x48xf32> to vector<16x16x48xf32>
    %15 = vector.extract_strided_slice %12 {offsets = [0, 2, 0], sizes = [16, 16, 48], strides = [1, 1, 1]} : vector<16x18x48xf32> to vector<16x16x48xf32>
    %16 = tpu.concatenate %13, %14, %15 in 2 : vector<16x16x48xf32>, vector<16x16x48xf32>, vector<16x16x48xf32> -> vector<16x16x144xf32>
    %17 = vector.shape_cast %16 : vector<16x16x144xf32> to vector<256x144xf32>
    %c0_25 = arith.constant 0 : index
    %c0_26 = arith.constant 0 : index
    %18 = vector.load %arg5[%c0_25, %c0_26] : memref<144x8xf32, #tpu.memory_space<vmem>>, vector<144x8xf32>
    %cst = arith.constant dense<0.000000e+00> : vector<256x8xf32>
    %19 = tpu.matmul %17, %18, %cst {dimension_numbers = #tpu.dot_dimension_numbers<[1], [0], [0], [1], [0, 0, 1, 1], [], []>} : vector<256x144xf32>, vector<144x8xf32>, vector<256x8xf32> -> vector<256x8xf32>
    %cst_27 = arith.constant dense<0.000000e+00> : vector<8xf32>
    %20 = vector.multi_reduction <add>, %19, %cst_27 [0] : vector<256x8xf32> to vector<8xf32>
    %21 = vector.shape_cast %20 : vector<8xf32> to vector<1x8xf32>
    %22 = arith.mulf %19, %19 : vector<256x8xf32>
    %cst_28 = arith.constant dense<0.000000e+00> : vector<8xf32>
    %23 = vector.multi_reduction <add>, %22, %cst_28 [0] : vector<256x8xf32> to vector<8xf32>
    %24 = vector.shape_cast %23 : vector<8xf32> to vector<1x8xf32>
    %25 = tpu.concatenate %21, %24 in 0 : vector<1x8xf32>, vector<1x8xf32> -> vector<2x8xf32>
    %c0_29 = arith.constant 0 : index
    %c0_30 = arith.constant 0 : index
    %c0_31 = arith.constant 0 : index
    %c0_32 = arith.constant 0 : index
    %26 = vector.load %arg7[%c0_29, %c0_30, %c0_31, %c0_32] : memref<1x1x2x8xf32, #tpu.memory_space<vmem>>, vector<1x1x2x8xf32>
    %27 = vector.shape_cast %26 : vector<1x1x2x8xf32> to vector<2x8xf32>
    %28 = vector.shape_cast %25 : vector<2x8xf32> to vector<1x1x2x8xf32>
    tpu.vector_store %arg7[%c0_29, %c0_30, %c0_31, %c0_32], %28 {strides = array<i32>} : memref<1x1x2x8xf32, #tpu.memory_space<vmem>>, vector<1x1x2x8xf32>,
    %29 = vector.shape_cast %19 : vector<256x8xf32> to vector<16x16x8xf32>
    %c0_33 = arith.constant 0 : index
    %c0_34 = arith.constant 0 : index
    %c0_35 = arith.constant 0 : index
    %c0_36 = arith.constant 0 : index
    %30 = vector.load %arg6[%c0_33, %c0_34, %c0_35, %c0_36] : memref<1x16x16x8xf32, #tpu.memory_space<vmem>>, vector<1x16x16x8xf32>
    %31 = vector.shape_cast %30 : vector<1x16x16x8xf32> to vector<16x16x8xf32>
    %32 = vector.shape_cast %29 : vector<16x16x8xf32> to vector<1x16x16x8xf32>
    tpu.vector_store %arg6[%c0_33, %c0_34, %c0_35, %c0_36], %32 {strides = array<i32>} : memref<1x16x16x8xf32, #tpu.memory_space<vmem>>, vector<1x16x16x8xf32>,
    return
  }
  func.func @transform_0(%arg0: i32, %arg1: i32) -> (i32, i32, i32, i32) {
    %c0_i32 = arith.constant 0 : i32
    %c0_i32_0 = arith.constant 0 : i32
    %c0_i32_1 = arith.constant 0 : i32
    return %arg0, %arg1, %c0_i32, %c0_i32_0 : i32, i32, i32, i32
  }
  func.func @transform_1(%arg0: i32, %arg1: i32) -> (i32, i32, i32, i32) {
    %c1_i32 = arith.constant 1 : i32
    %0 = arith.addi %arg1, %c1_i32 : i32
    %c16_i32 = arith.constant 16 : i32
    %1 = arith.muli %0, %c16_i32 : i32
    %c0_i32 = arith.constant 0 : i32
    %c0_i32_0 = arith.constant 0 : i32
    %c0_i32_1 = arith.constant 0 : i32
    return %arg0, %1, %c0_i32, %c0_i32_0 : i32, i32, i32, i32
  }
  func.func @transform_2(%arg0: i32, %arg1: i32) -> (i32, i32, i32, i32) {
    %c1_i32 = arith.constant 1 : i32
    %0 = arith.addi %arg1, %c1_i32 : i32
    %c16_i32 = arith.constant 16 : i32
    %1 = arith.muli %0, %c16_i32 : i32
    %c1_i32_0 = arith.constant 1 : i32
    %2 = arith.addi %1, %c1_i32_0 : i32
    %c0_i32 = arith.constant 0 : i32
    %c0_i32_1 = arith.constant 0 : i32
    %c0_i32_2 = arith.constant 0 : i32
    return %arg0, %2, %c0_i32, %c0_i32_1 : i32, i32, i32, i32
  }
  func.func @transform_3(%arg0: i32, %arg1: i32) -> (i32, i32) {
    %c0_i32 = arith.constant 0 : i32
    %c0_i32_0 = arith.constant 0 : i32
    %c0_i32_1 = arith.constant 0 : i32
    return %c0_i32, %c0_i32_0 : i32, i32
  }
  func.func @transform_4(%arg0: i32, %arg1: i32) -> (i32, i32, i32, i32) {
    %c0_i32 = arith.constant 0 : i32
    %c0_i32_0 = arith.constant 0 : i32
    %c0_i32_1 = arith.constant 0 : i32
    return %arg0, %arg1, %c0_i32, %c0_i32_0 : i32, i32, i32, i32
  }
  func.func @transform_5(%arg0: i32, %arg1: i32) -> (i32, i32, i32, i32) {
    %c0_i32 = arith.constant 0 : i32
    %c0_i32_0 = arith.constant 0 : i32
    %c0_i32_1 = arith.constant 0 : i32
    return %arg0, %arg1, %c0_i32, %c0_i32_0 : i32, i32, i32, i32
  }
}

module attributes {stable_mosaic.version = 11 : i64} {
  func.func @kernel(%arg0: i32, %arg1: i32, %arg2: memref<1xi32, #tpu.memory_space<smem>>, %arg3: memref<1xi32, #tpu.memory_space<smem>>, %arg4: memref<1x16x16x8xf32, #tpu.memory_space<vmem>>, %arg5: memref<1x1x16x8xf32, #tpu.memory_space<vmem>>, %arg6: memref<1x1x16x8xf32, #tpu.memory_space<vmem>>, %arg7: memref<1x8xf32, #tpu.memory_space<vmem>>, %arg8: memref<1x8xf32, #tpu.memory_space<vmem>>, %arg9: memref<2x8xf32, #tpu.memory_space<vmem>>, %arg10: memref<72x16xf32, #tpu.memory_space<vmem>>, %arg11: memref<1x16x16x16xf32, #tpu.memory_space<vmem>>, %arg12: memref<1x1x2x16xf32, #tpu.memory_space<vmem>>, %arg13: memref<18x18x8xf32, #tpu.memory_space<vmem>>) attributes {dimension_semantics = [#tpu.dimension_semantics<parallel>, #tpu.dimension_semantics<parallel>], iteration_bounds = array<i64: 2, 1>, scalar_prefetch = 2 : i64, scratch_operands = 1 : i64, tpu.core_type = #tpu.core_type<tc>, window_params = [{transform_indices = @transform_0, window_bounds = array<i64: 1, 16, 16, 8>}, {transform_indices = @transform_1, window_bounds = array<i64: 1, 1, 16, 8>}, {transform_indices = @transform_2, window_bounds = array<i64: 1, 1, 16, 8>}, {pipeline_mode = #tpu.pipeline_mode<synchronous>, transform_indices = @transform_3, window_bounds = array<i64: 1, 8>}, {pipeline_mode = #tpu.pipeline_mode<synchronous>, transform_indices = @transform_4, window_bounds = array<i64: 1, 8>}, {pipeline_mode = #tpu.pipeline_mode<synchronous>, transform_indices = @transform_5, window_bounds = array<i64: 2, 8>}, {pipeline_mode = #tpu.pipeline_mode<synchronous>, transform_indices = @transform_6, window_bounds = array<i64: 72, 16>}, {transform_indices = @transform_7, window_bounds = array<i64: 1, 16, 16, 16>}, {transform_indices = @transform_8, window_bounds = array<i64: 1, 1, 2, 16>}]} {
    %c0 = arith.constant 0 : index
    %c0_0 = arith.constant 0 : index
    %0 = vector.load %arg7[%c0, %c0_0] : memref<1x8xf32, #tpu.memory_space<vmem>>, vector<1x8xf32>
    %c0_1 = arith.constant 0 : index
    %c0_2 = arith.constant 0 : index
    %1 = vector.load %arg8[%c0_1, %c0_2] : memref<1x8xf32, #tpu.memory_space<vmem>>, vector<1x8xf32>
    %2 = arith.index_cast %arg0 : i32 to index
    %c0_3 = arith.constant 0 : index
    %3 = vector.load %arg9[%2, %c0_3] : memref<2x8xf32, #tpu.memory_space<vmem>>, vector<1x8xf32>
    %c0_4 = arith.constant 0 : index
    %c0_5 = arith.constant 0 : index
    %c0_6 = arith.constant 0 : index
    %c0_7 = arith.constant 0 : index
    %4 = vector.load %arg4[%c0_4, %c0_5, %c0_6, %c0_7] : memref<1x16x16x8xf32, #tpu.memory_space<vmem>>, vector<1x16x16x8xf32>
    %5 = vector.shape_cast %4 : vector<1x16x16x8xf32> to vector<16x16x8xf32>
    %6 = vector.shape_cast %0 : vector<1x8xf32> to vector<1x1x8xf32>
    %7 = vector.broadcast %6 : vector<1x1x8xf32> to vector<16x16x8xf32>
    %8 = arith.mulf %5, %7 : vector<16x16x8xf32>
    %9 = vector.shape_cast %1 : vector<1x8xf32> to vector<1x1x8xf32>
    %10 = vector.broadcast %9 : vector<1x1x8xf32> to vector<16x16x8xf32>
    %11 = arith.addf %8, %10 : vector<16x16x8xf32>
    %cst = arith.constant 0.000000e+00 : f32
    %12 = vector.broadcast %cst : f32 to vector<16x16x8xf32>
    %13 = arith.maximumf %11, %12 : vector<16x16x8xf32>
    %14 = vector.shape_cast %3 : vector<1x8xf32> to vector<1x1x8xf32>
    %15 = vector.broadcast %14 : vector<1x1x8xf32> to vector<16x16x8xf32>
    %16 = arith.addf %13, %15 : vector<16x16x8xf32>
    %c0_8 = arith.constant 0 : index
    %c0_9 = arith.constant 0 : index
    %c0_10 = arith.constant 0 : index
    %c0_11 = arith.constant 0 : index
    %17 = vector.load %arg5[%c0_8, %c0_9, %c0_10, %c0_11] : memref<1x1x16x8xf32, #tpu.memory_space<vmem>>, vector<1x1x16x8xf32>
    %18 = vector.shape_cast %17 : vector<1x1x16x8xf32> to vector<1x16x8xf32>
    %19 = vector.shape_cast %0 : vector<1x8xf32> to vector<1x1x8xf32>
    %20 = vector.broadcast %19 : vector<1x1x8xf32> to vector<1x16x8xf32>
    %21 = arith.mulf %18, %20 : vector<1x16x8xf32>
    %22 = vector.shape_cast %1 : vector<1x8xf32> to vector<1x1x8xf32>
    %23 = vector.broadcast %22 : vector<1x1x8xf32> to vector<1x16x8xf32>
    %24 = arith.addf %21, %23 : vector<1x16x8xf32>
    %cst_12 = arith.constant 0.000000e+00 : f32
    %25 = vector.broadcast %cst_12 : f32 to vector<1x16x8xf32>
    %26 = arith.maximumf %24, %25 : vector<1x16x8xf32>
    %27 = vector.shape_cast %3 : vector<1x8xf32> to vector<1x1x8xf32>
    %28 = vector.broadcast %27 : vector<1x1x8xf32> to vector<1x16x8xf32>
    %29 = arith.addf %26, %28 : vector<1x16x8xf32>
    %c0_i32 = arith.constant 0 : i32
    %30 = arith.cmpi eq, %arg1, %c0_i32 : i32
    %cst_13 = arith.constant 0.000000e+00 : f32
    %cst_14 = arith.constant 1.000000e+00 : f32
    %31 = arith.select %30, %cst_13, %cst_14 : f32
    %32 = vector.broadcast %31 : f32 to vector<1x16x8xf32>
    %33 = arith.mulf %29, %32 : vector<1x16x8xf32>
    %c0_15 = arith.constant 0 : index
    %c0_16 = arith.constant 0 : index
    %c0_17 = arith.constant 0 : index
    %c0_18 = arith.constant 0 : index
    %34 = vector.load %arg6[%c0_15, %c0_16, %c0_17, %c0_18] : memref<1x1x16x8xf32, #tpu.memory_space<vmem>>, vector<1x1x16x8xf32>
    %35 = vector.shape_cast %34 : vector<1x1x16x8xf32> to vector<1x16x8xf32>
    %36 = vector.shape_cast %0 : vector<1x8xf32> to vector<1x1x8xf32>
    %37 = vector.broadcast %36 : vector<1x1x8xf32> to vector<1x16x8xf32>
    %38 = arith.mulf %35, %37 : vector<1x16x8xf32>
    %39 = vector.shape_cast %1 : vector<1x8xf32> to vector<1x1x8xf32>
    %40 = vector.broadcast %39 : vector<1x1x8xf32> to vector<1x16x8xf32>
    %41 = arith.addf %38, %40 : vector<1x16x8xf32>
    %cst_19 = arith.constant 0.000000e+00 : f32
    %42 = vector.broadcast %cst_19 : f32 to vector<1x16x8xf32>
    %43 = arith.maximumf %41, %42 : vector<1x16x8xf32>
    %44 = vector.shape_cast %3 : vector<1x8xf32> to vector<1x1x8xf32>
    %45 = vector.broadcast %44 : vector<1x1x8xf32> to vector<1x16x8xf32>
    %46 = arith.addf %43, %45 : vector<1x16x8xf32>
    %c0_i32_20 = arith.constant 0 : i32
    %47 = arith.cmpi eq, %arg1, %c0_i32_20 : i32
    %cst_21 = arith.constant 0.000000e+00 : f32
    %cst_22 = arith.constant 1.000000e+00 : f32
    %48 = arith.select %47, %cst_21, %cst_22 : f32
    %49 = vector.broadcast %48 : f32 to vector<1x16x8xf32>
    %50 = arith.mulf %46, %49 : vector<1x16x8xf32>
    %cst_23 = arith.constant 0.000000e+00 : f32
    %51 = vector.broadcast %cst_23 : f32 to vector<18x1x8xf32>
    %c0_24 = arith.constant 0 : index
    %c0_25 = arith.constant 0 : index
    %c0_26 = arith.constant 0 : index
    %52 = vector.load %arg13[%c0_24, %c0_25, %c0_26] : memref<18x18x8xf32, #tpu.memory_space<vmem>>, vector<18x1x8xf32>
    tpu.vector_store %arg13[%c0_24, %c0_25, %c0_26], %51 {strides = array<i32>} : memref<18x18x8xf32, #tpu.memory_space<vmem>>, vector<18x1x8xf32>,
    %c0_27 = arith.constant 0 : index
    %c17 = arith.constant 17 : index
    %c0_28 = arith.constant 0 : index
    %53 = vector.load %arg13[%c0_27, %c17, %c0_28] : memref<18x18x8xf32, #tpu.memory_space<vmem>>, vector<18x1x8xf32>
    tpu.vector_store %arg13[%c0_27, %c17, %c0_28], %51 {strides = array<i32>} : memref<18x18x8xf32, #tpu.memory_space<vmem>>, vector<18x1x8xf32>,
    %c0_29 = arith.constant 0 : index
    %c1 = arith.constant 1 : index
    %c0_30 = arith.constant 0 : index
    %54 = vector.load %arg13[%c0_29, %c1, %c0_30] : memref<18x18x8xf32, #tpu.memory_space<vmem>>, vector<1x16x8xf32>
    tpu.vector_store %arg13[%c0_29, %c1, %c0_30], %33 {strides = array<i32>} : memref<18x18x8xf32, #tpu.memory_space<vmem>>, vector<1x16x8xf32>,
    %c1_31 = arith.constant 1 : index
    %c1_32 = arith.constant 1 : index
    %c0_33 = arith.constant 0 : index
    %55 = vector.load %arg13[%c1_31, %c1_32, %c0_33] : memref<18x18x8xf32, #tpu.memory_space<vmem>>, vector<16x16x8xf32>
    tpu.vector_store %arg13[%c1_31, %c1_32, %c0_33], %16 {strides = array<i32>} : memref<18x18x8xf32, #tpu.memory_space<vmem>>, vector<16x16x8xf32>,
    %c17_34 = arith.constant 17 : index
    %c1_35 = arith.constant 1 : index
    %c0_36 = arith.constant 0 : index
    %56 = vector.load %arg13[%c17_34, %c1_35, %c0_36] : memref<18x18x8xf32, #tpu.memory_space<vmem>>, vector<1x16x8xf32>
    tpu.vector_store %arg13[%c17_34, %c1_35, %c0_36], %50 {strides = array<i32>} : memref<18x18x8xf32, #tpu.memory_space<vmem>>, vector<1x16x8xf32>,
    %c0_37 = arith.constant 0 : index
    %c0_38 = arith.constant 0 : index
    %c0_39 = arith.constant 0 : index
    %57 = vector.load %arg13[%c0_37, %c0_38, %c0_39] : memref<18x18x8xf32, #tpu.memory_space<vmem>>, vector<16x18x8xf32>
    %c1_40 = arith.constant 1 : index
    %c0_41 = arith.constant 0 : index
    %c0_42 = arith.constant 0 : index
    %58 = vector.load %arg13[%c1_40, %c0_41, %c0_42] : memref<18x18x8xf32, #tpu.memory_space<vmem>>, vector<16x18x8xf32>
    %c2 = arith.constant 2 : index
    %c0_43 = arith.constant 0 : index
    %c0_44 = arith.constant 0 : index
    %59 = vector.load %arg13[%c2, %c0_43, %c0_44] : memref<18x18x8xf32, #tpu.memory_space<vmem>>, vector<16x18x8xf32>
    %60 = tpu.concatenate %57, %58, %59 in 2 : vector<16x18x8xf32>, vector<16x18x8xf32>, vector<16x18x8xf32> -> vector<16x18x24xf32>
    %61 = vector.extract_strided_slice %60 {offsets = [0, 0, 0], sizes = [16, 16, 24], strides = [1, 1, 1]} : vector<16x18x24xf32> to vector<16x16x24xf32>
    %62 = vector.extract_strided_slice %60 {offsets = [0, 1, 0], sizes = [16, 16, 24], strides = [1, 1, 1]} : vector<16x18x24xf32> to vector<16x16x24xf32>
    %63 = vector.extract_strided_slice %60 {offsets = [0, 2, 0], sizes = [16, 16, 24], strides = [1, 1, 1]} : vector<16x18x24xf32> to vector<16x16x24xf32>
    %64 = tpu.concatenate %61, %62, %63 in 2 : vector<16x16x24xf32>, vector<16x16x24xf32>, vector<16x16x24xf32> -> vector<16x16x72xf32>
    %65 = vector.shape_cast %64 : vector<16x16x72xf32> to vector<256x72xf32>
    %c0_45 = arith.constant 0 : index
    %c0_46 = arith.constant 0 : index
    %66 = vector.load %arg10[%c0_45, %c0_46] : memref<72x16xf32, #tpu.memory_space<vmem>>, vector<72x16xf32>
    %cst_47 = arith.constant dense<0.000000e+00> : vector<256x16xf32>
    %67 = tpu.matmul %65, %66, %cst_47 {dimension_numbers = #tpu.dot_dimension_numbers<[1], [0], [0], [1], [0, 0, 1, 1], [], []>} : vector<256x72xf32>, vector<72x16xf32>, vector<256x16xf32> -> vector<256x16xf32>
    %cst_48 = arith.constant dense<0.000000e+00> : vector<16xf32>
    %68 = vector.multi_reduction <add>, %67, %cst_48 [0] : vector<256x16xf32> to vector<16xf32>
    %69 = vector.shape_cast %68 : vector<16xf32> to vector<1x16xf32>
    %70 = arith.mulf %67, %67 : vector<256x16xf32>
    %cst_49 = arith.constant dense<0.000000e+00> : vector<16xf32>
    %71 = vector.multi_reduction <add>, %70, %cst_49 [0] : vector<256x16xf32> to vector<16xf32>
    %72 = vector.shape_cast %71 : vector<16xf32> to vector<1x16xf32>
    %73 = tpu.concatenate %69, %72 in 0 : vector<1x16xf32>, vector<1x16xf32> -> vector<2x16xf32>
    %c0_50 = arith.constant 0 : index
    %c0_51 = arith.constant 0 : index
    %c0_52 = arith.constant 0 : index
    %c0_53 = arith.constant 0 : index
    %74 = vector.load %arg12[%c0_50, %c0_51, %c0_52, %c0_53] : memref<1x1x2x16xf32, #tpu.memory_space<vmem>>, vector<1x1x2x16xf32>
    %75 = vector.shape_cast %74 : vector<1x1x2x16xf32> to vector<2x16xf32>
    %76 = vector.shape_cast %73 : vector<2x16xf32> to vector<1x1x2x16xf32>
    tpu.vector_store %arg12[%c0_50, %c0_51, %c0_52, %c0_53], %76 {strides = array<i32>} : memref<1x1x2x16xf32, #tpu.memory_space<vmem>>, vector<1x1x2x16xf32>,
    %77 = vector.shape_cast %67 : vector<256x16xf32> to vector<16x16x16xf32>
    %c0_54 = arith.constant 0 : index
    %c0_55 = arith.constant 0 : index
    %c0_56 = arith.constant 0 : index
    %c0_57 = arith.constant 0 : index
    %78 = vector.load %arg11[%c0_54, %c0_55, %c0_56, %c0_57] : memref<1x16x16x16xf32, #tpu.memory_space<vmem>>, vector<1x16x16x16xf32>
    %79 = vector.shape_cast %78 : vector<1x16x16x16xf32> to vector<16x16x16xf32>
    %80 = vector.shape_cast %77 : vector<16x16x16xf32> to vector<1x16x16x16xf32>
    tpu.vector_store %arg11[%c0_54, %c0_55, %c0_56, %c0_57], %80 {strides = array<i32>} : memref<1x16x16x16xf32, #tpu.memory_space<vmem>>, vector<1x16x16x16xf32>,
    return
  }
  func.func @transform_0(%arg0: i32, %arg1: i32, %arg2: memref<1xi32, #tpu.memory_space<smem>>, %arg3: memref<1xi32, #tpu.memory_space<smem>>) -> (i32, i32, i32, i32) {
    %c0_i32 = arith.constant 0 : i32
    %c0_i32_0 = arith.constant 0 : i32
    %c0_i32_1 = arith.constant 0 : i32
    return %arg0, %arg1, %c0_i32, %c0_i32_0 : i32, i32, i32, i32
  }
  func.func @transform_1(%arg0: i32, %arg1: i32, %arg2: memref<1xi32, #tpu.memory_space<smem>>, %arg3: memref<1xi32, #tpu.memory_space<smem>>) -> (i32, i32, i32, i32) {
    %0 = arith.index_cast %arg1 : i32 to index
    %1 = memref.load %arg2[%0] : memref<1xi32, #tpu.memory_space<smem>>
    %c0_i32 = arith.constant 0 : i32
    %c0_i32_0 = arith.constant 0 : i32
    %c0_i32_1 = arith.constant 0 : i32
    return %arg0, %1, %c0_i32, %c0_i32_0 : i32, i32, i32, i32
  }
  func.func @transform_2(%arg0: i32, %arg1: i32, %arg2: memref<1xi32, #tpu.memory_space<smem>>, %arg3: memref<1xi32, #tpu.memory_space<smem>>) -> (i32, i32, i32, i32) {
    %0 = arith.index_cast %arg1 : i32 to index
    %1 = memref.load %arg3[%0] : memref<1xi32, #tpu.memory_space<smem>>
    %c0_i32 = arith.constant 0 : i32
    %c0_i32_0 = arith.constant 0 : i32
    %c0_i32_1 = arith.constant 0 : i32
    return %arg0, %1, %c0_i32, %c0_i32_0 : i32, i32, i32, i32
  }
  func.func @transform_3(%arg0: i32, %arg1: i32, %arg2: memref<1xi32, #tpu.memory_space<smem>>, %arg3: memref<1xi32, #tpu.memory_space<smem>>) -> (i32, i32) {
    %c0_i32 = arith.constant 0 : i32
    %c0_i32_0 = arith.constant 0 : i32
    %c0_i32_1 = arith.constant 0 : i32
    return %c0_i32, %c0_i32_0 : i32, i32
  }
  func.func @transform_4(%arg0: i32, %arg1: i32, %arg2: memref<1xi32, #tpu.memory_space<smem>>, %arg3: memref<1xi32, #tpu.memory_space<smem>>) -> (i32, i32) {
    %c0_i32 = arith.constant 0 : i32
    %c0_i32_0 = arith.constant 0 : i32
    %c0_i32_1 = arith.constant 0 : i32
    return %c0_i32, %c0_i32_0 : i32, i32
  }
  func.func @transform_5(%arg0: i32, %arg1: i32, %arg2: memref<1xi32, #tpu.memory_space<smem>>, %arg3: memref<1xi32, #tpu.memory_space<smem>>) -> (i32, i32) {
    %c0_i32 = arith.constant 0 : i32
    %c0_i32_0 = arith.constant 0 : i32
    %c0_i32_1 = arith.constant 0 : i32
    return %c0_i32, %c0_i32_0 : i32, i32
  }
  func.func @transform_6(%arg0: i32, %arg1: i32, %arg2: memref<1xi32, #tpu.memory_space<smem>>, %arg3: memref<1xi32, #tpu.memory_space<smem>>) -> (i32, i32) {
    %c0_i32 = arith.constant 0 : i32
    %c0_i32_0 = arith.constant 0 : i32
    %c0_i32_1 = arith.constant 0 : i32
    return %c0_i32, %c0_i32_0 : i32, i32
  }
  func.func @transform_7(%arg0: i32, %arg1: i32, %arg2: memref<1xi32, #tpu.memory_space<smem>>, %arg3: memref<1xi32, #tpu.memory_space<smem>>) -> (i32, i32, i32, i32) {
    %c0_i32 = arith.constant 0 : i32
    %c0_i32_0 = arith.constant 0 : i32
    %c0_i32_1 = arith.constant 0 : i32
    return %arg0, %arg1, %c0_i32, %c0_i32_0 : i32, i32, i32, i32
  }
  func.func @transform_8(%arg0: i32, %arg1: i32, %arg2: memref<1xi32, #tpu.memory_space<smem>>, %arg3: memref<1xi32, #tpu.memory_space<smem>>) -> (i32, i32, i32, i32) {
    %c0_i32 = arith.constant 0 : i32
    %c0_i32_0 = arith.constant 0 : i32
    %c0_i32_1 = arith.constant 0 : i32
    return %arg0, %arg1, %c0_i32, %c0_i32_0 : i32, i32, i32, i32
  }
}

module attributes {stable_mosaic.version = 11 : i64} {
  func.func @_bn_relu_kernel(%arg0: i32, %arg1: i32, %arg2: memref<1x16x256xf32, #tpu.memory_space<vmem>>, %arg3: memref<1x256xf32, #tpu.memory_space<vmem>>, %arg4: memref<1x256xf32, #tpu.memory_space<vmem>>, %arg5: memref<1x16x256xf32, #tpu.memory_space<vmem>>) attributes {dimension_semantics = [#tpu.dimension_semantics<parallel>, #tpu.dimension_semantics<parallel>], iteration_bounds = array<i64: 2, 1>, scalar_prefetch = 0 : i64, scratch_operands = 0 : i64, tpu.core_type = #tpu.core_type<tc>, window_params = [{transform_indices = @transform_0, window_bounds = array<i64: 1, 16, 256>}, {pipeline_mode = #tpu.pipeline_mode<synchronous>, transform_indices = @transform_1, window_bounds = array<i64: 1, 256>}, {pipeline_mode = #tpu.pipeline_mode<synchronous>, transform_indices = @transform_2, window_bounds = array<i64: 1, 256>}, {transform_indices = @transform_3, window_bounds = array<i64: 1, 16, 256>}]} {
    %c0 = arith.constant 0 : index
    %c0_0 = arith.constant 0 : index
    %c0_1 = arith.constant 0 : index
    %0 = vector.load %arg2[%c0, %c0_0, %c0_1] : memref<1x16x256xf32, #tpu.memory_space<vmem>>, vector<1x16x256xf32>
    %1 = vector.shape_cast %0 : vector<1x16x256xf32> to vector<16x256xf32>
    %c0_2 = arith.constant 0 : index
    %c0_3 = arith.constant 0 : index
    %2 = vector.load %arg3[%c0_2, %c0_3] : memref<1x256xf32, #tpu.memory_space<vmem>>, vector<1x256xf32>
    %3 = vector.broadcast %2 : vector<1x256xf32> to vector<16x256xf32>
    %4 = arith.mulf %1, %3 : vector<16x256xf32>
    %c0_4 = arith.constant 0 : index
    %c0_5 = arith.constant 0 : index
    %5 = vector.load %arg4[%c0_4, %c0_5] : memref<1x256xf32, #tpu.memory_space<vmem>>, vector<1x256xf32>
    %6 = vector.broadcast %5 : vector<1x256xf32> to vector<16x256xf32>
    %7 = arith.addf %4, %6 : vector<16x256xf32>
    %cst = arith.constant 0.000000e+00 : f32
    %8 = vector.broadcast %cst : f32 to vector<16x256xf32>
    %9 = arith.maximumf %7, %8 : vector<16x256xf32>
    %c0_6 = arith.constant 0 : index
    %c0_7 = arith.constant 0 : index
    %c0_8 = arith.constant 0 : index
    %10 = vector.load %arg5[%c0_6, %c0_7, %c0_8] : memref<1x16x256xf32, #tpu.memory_space<vmem>>, vector<1x16x256xf32>
    %11 = vector.shape_cast %10 : vector<1x16x256xf32> to vector<16x256xf32>
    %12 = vector.shape_cast %9 : vector<16x256xf32> to vector<1x16x256xf32>
    tpu.vector_store %arg5[%c0_6, %c0_7, %c0_8], %12 {strides = array<i32>} : memref<1x16x256xf32, #tpu.memory_space<vmem>>, vector<1x16x256xf32>,
    return
  }
  func.func @transform_0(%arg0: i32, %arg1: i32) -> (i32, i32, i32) {
    %c0_i32 = arith.constant 0 : i32
    %c0_i32_0 = arith.constant 0 : i32
    return %arg0, %arg1, %c0_i32 : i32, i32, i32
  }
  func.func @transform_1(%arg0: i32, %arg1: i32) -> (i32, i32) {
    %c0_i32 = arith.constant 0 : i32
    %c0_i32_0 = arith.constant 0 : i32
    %c0_i32_1 = arith.constant 0 : i32
    return %c0_i32, %c0_i32_0 : i32, i32
  }
  func.func @transform_2(%arg0: i32, %arg1: i32) -> (i32, i32) {
    %c0_i32 = arith.constant 0 : i32
    %c0_i32_0 = arith.constant 0 : i32
    %c0_i32_1 = arith.constant 0 : i32
    return %c0_i32, %c0_i32_0 : i32, i32
  }
  func.func @transform_3(%arg0: i32, %arg1: i32) -> (i32, i32, i32) {
    %c0_i32 = arith.constant 0 : i32
    %c0_i32_0 = arith.constant 0 : i32
    return %arg0, %arg1, %c0_i32 : i32, i32, i32
  }
}

</mosaic_0001>

<llo_original>
// kernel: tile.13
$region0: #{tile.13}
  #allocation0 [shape = 's32[1]{0}', space=sflag, size = 0x4, scoped, tag = 'scoped memory for tile.13']
  %s0 = inlined_call_operand.vmem [shape: f32[16], index: 0, kind: input, shape index: {}]
  %s1 = inlined_call_operand.vmem [shape: f32[16,16], index: 1, kind: output, shape index: {}]
  // Predicated region
  $region2: #{tile.13} parent=0 // pred_check
    _
  $region3: #{tile.13} parent=0 // pred_check_branch
    %3 = sbr.rel (0) target = $region5
  $region4: #{tile.13} parent=0 // pred_region
    _
  $region5: #{tile.13} parent=0 // pred_fallthru
    _
  %v4 = vld [vmem:[%s0] ss:$0 sm:$0xff]
  %5 = vst [vmem:[%s1] sm:$0xff] %v4
  %s6 = scalar_lea.vmem %s1, 8
  %7 = vst [vmem:[%s6] sm:$0xff] %v4

// kernel: tile.14
$region0: #{tile.14}
  %s0 = inlined_call_operand.vmem [shape: f32[16,16], index: 0, kind: input, shape index: {}]
  %s1 = inlined_call_operand.vmem [shape: f32[1,256], index: 1, kind: output, shape index: {}]
  $region1: #{tile.14} parent=0
    #allocation0 [shape = 'u8[8192]{0}', space=vmem, size = 0x2000, scoped, tag = 'scoped mem for output reshape']
    %s2 = smov 3
    %v3 = vld [vmem:[%s0] ss:$8 sm:%s2]
    %vm4 = vcmask 130048
    %5 = vst.msk [vmem:[#allocation0] ss:$8 sm:$0x3] %vm4, %v3
    %s6 = scalar_lea.vmem %s0, 7
    %s7 = smov 3
    %v8 = vld [vmem:[%s6] ss:$8 sm:%s7]
    %9 = vrot.lane.b32.xlu0 %v8, 112
    %v10 = vpop.permute.xlu0 %9
    %vm11 = vcmask 1048448
    %12 = vst.msk [vmem:[#allocation0] ss:$8 sm:$0x3] %vm11, %v10
    %s13 = scalar_lea.vmem %s0, 6
    %s14 = smov 3
    %v15 = vld [vmem:[%s13] ss:$8 sm:%s14]
    %16 = vrot.lane.b32.xlu0 %v15, 96
    %v17 = vpop.permute.xlu0 %16
    %vm18 = vcmask 917248
    %19 = vst.msk [vmem:[#allocation0] ss:$8 sm:$0x3] %vm18, %v17
    %s20 = scalar_lea.vmem %s0, 5
    %s21 = smov 3
    %v22 = vld [vmem:[%s20] ss:$8 sm:%s21]
    %23 = vrot.lane.b32.xlu0 %v22, 80
    %v24 = vpop.permute.xlu0 %23
    %vm25 = vcmask 786048
    %26 = vst.msk [vmem:[#allocation0] ss:$8 sm:$0x3] %vm25, %v24
    %s27 = scalar_lea.vmem %s0, 4
    %s28 = smov 3
    %v29 = vld [vmem:[%s27] ss:$8 sm:%s28]
    %30 = vrot.lane.b32.xlu0 %v29, 64
    %v31 = vpop.permute.xlu0 %30
    %vm32 = vcmask 654848
    %33 = vst.msk [vmem:[#allocation0] ss:$8 sm:$0x3] %vm32, %v31
    %s34 = scalar_lea.vmem %s0, 3
    %s35 = smov 3
    %v36 = vld [vmem:[%s34] ss:$8 sm:%s35]
    %37 = vrot.lane.b32.xlu0 %v36, 48
    %v38 = vpop.permute.xlu0 %37
    %vm39 = vcmask 523648
    %40 = vst.msk [vmem:[#allocation0] ss:$8 sm:$0x3] %vm39, %v38
    %s41 = scalar_lea.vmem %s0, 2
    %s42 = smov 3
    %v43 = vld [vmem:[%s41] ss:$8 sm:%s42]
    %44 = vrot.lane.b32.xlu0 %v43, 32
    %v45 = vpop.permute.xlu0 %44
    %vm46 = vcmask 392448
    %47 = vst.msk [vmem:[#allocation0] ss:$8 sm:$0x3] %vm46, %v45
    %s48 = scalar_lea.vmem %s0, 1
    %s49 = smov 3
    %v50 = vld [vmem:[%s48] ss:$8 sm:%s49]
    %51 = vrot.lane.b32.xlu0 %v50, 16
    %v52 = vpop.permute.xlu0 %51
    %vm53 = vcmask 261248
    %54 = vst.msk [vmem:[#allocation0] ss:$8 sm:$0x3] %vm53, %v52
    %s56 = sshllo.u32 0, 1
    %v58 = vld [vmem:[#allocation0] sm:%s56]
    %s59 = sshllo.u32 0, 1
    %60 = vst [vmem:[%s1] sm:%s59] %v58
    %s61 = scalar_lea.vmem [#allocation0], 8
    %v62 = vld [vmem:[%s61] sm:%s56]
    %s63 = sshllo.u32 0, 1
    %s64 = scalar_lea.vmem %s1, 1
    %65 = vst [vmem:[%s64] sm:%s63] %v62

// kernel: up_forward.5
$region0: #{up_forward.5}
  #allocation0 [shape = 'u32[]', space=smem, size = 0x4, offset = 0x4, fixed_abs, tag = 'smem constant byte address 0x4 - core index']
  #allocation1 [shape = 'u32[144,128]{1,0:T(1,128)}', space=vmem, size = 0x12000, scoped, tag = 'internal scratch']
  %s0 = inlined_call_operand.vmem [shape: f32[2,16,256], index: 0, kind: input, shape index: {}]
  %s1 = inlined_call_operand.vmem [shape: f32[1,256], index: 1, kind: input, shape index: {}]
  %s2 = inlined_call_operand.vmem [shape: f32[1,256], index: 2, kind: input, shape index: {}]
  %s3 = inlined_call_operand.vmem [shape: f32[2,16,256], index: 3, kind: output, shape index: {}]
  %s4 = sld [smem:[#allocation0]]
  $region45: #{up_forward.5} parent=0
    _
  %s6 = ssub.s32 1, %s4
  %s7 = scalar_select 0, %s6, %s4
  loop: start=0, step=1, limit=4
  $region2: #{up_forward.5} parent=0 // loop_pre_header
    _
  $region3: #{up_forward.5} parent=0 // loop_header
    %s9 = sphi 0, %s13
    %p10 = scmp.ge.s32.totalorder %s9, 4
    %s16 = sphi 0, %s28
    %s17 = sphi 0, %s24
    %s18 = sphi 0, %s16
    %s19 = sphi 0, %s17
    %s20 = sphi 0, %s18
    %s21 = sphi 0, %s19
    %s33 = sphi 0, %s35
    %s36 = sphi 0, %s33
    %s37 = sphi 0, %s36
    %s53 = sphi 0, %s37
    %s57 = sphi 0, %s57
    %s59 = sphi 0, %s57
    %s60 = sphi 0, %s59
    %s74 = sphi 0, %s60
    %s78 = sphi 0, %s78
    %s80 = sphi 0, %s78
    %s81 = sphi 0, %s80
    %s95 = sphi 0, %s81
    %s103 = sphi 0, %s105
    %s106 = sphi 0, %s103
    %s107 = sphi 0, %s106
    %s123 = sphi 0, %s107
  $region4: #{up_forward.5} parent=0 // loop_header_branch
    %12 = sbr.rel (%p10) target = $region8
  $region5: #{up_forward.5} parent=0 // loop_body
    %s14 = ssub.s32 %s9, 1
    %s15 = ssub.s32 %s9, 2
    %s22 = sadd.s32 1, %s17
    %p23 = scmp.ge.s32.totalorder %s22, 1
    %s24 = scalar_select %p23, 0, %s22
    %s25 = sadd.s32 1, %s16
    %s26 = scalar_select %p23, %s25, %s16
    %p27 = scmp.ge.s32.totalorder %s26, 2
    %s28 = scalar_select %p27, 0, %s26
    %s29 = ssub.s32 %s16, %s28
    %s30 = ssub.s32 %s17, %s24
    %s31 = sor.u32 %s29, %s30
    %p32 = scmp.eq.s32.totalorder %s31, 0
    %s34 = sadd.s32 %s33, 1
    %s35 = scalar_select %p32, %s33, %s34
    %p38 = pneg %p32
    %p39 = scmp.eq.s32.totalorder %s9, 1
    %p40 = por %p38, %p39
    %p41 = scmp.ne.s32.totalorder %s33, %s36
    %p42 = scmp.eq.s32.totalorder %s9, 0
    %p43 = por %p41, %p42
    %p44 = scmp.ne.s32.totalorder %s33, %s36
    %p45 = scmp.eq.s32.totalorder %s14, 1
    %p46 = por %p44, %p45
    %p47 = scmp.ne.s32.totalorder %s36, %s37
    %p48 = scmp.eq.s32.totalorder %s14, 0
    %p49 = por %p47, %p48
    %p50 = scmp.ne.s32.totalorder %s36, %s37
    %p51 = scmp.eq.s32.totalorder %s15, 1
    %p52 = por %p50, %p51
    %p54 = scmp.ne.s32.totalorder %s37, %s53
    %p55 = scmp.eq.s32.totalorder %s15, 0
    %p56 = por %p54, %p55
    %s58 = sadd.s32 %s57, 1
    %p61 = scmp.eq.s32.totalorder %s9, 1
    %p62 = scmp.ne.s32.totalorder %s57, %s59
    %p63 = scmp.eq.s32.totalorder %s9, 0
    %p64 = por %p62, %p63
    %p65 = scmp.ne.s32.totalorder %s57, %s59
    %p66 = scmp.eq.s32.totalorder %s14, 1
    %p67 = por %p65, %p66
    %p68 = scmp.ne.s32.totalorder %s59, %s60
    %p69 = scmp.eq.s32.totalorder %s14, 0
    %p70 = por %p68, %p69
    %p71 = scmp.ne.s32.totalorder %s59, %s60
    %p72 = scmp.eq.s32.totalorder %s15, 1
    %p73 = por %p71, %p72
    %p75 = scmp.ne.s32.totalorder %s60, %s74
    %p76 = scmp.eq.s32.totalorder %s15, 0
    %p77 = por %p75, %p76
    %s79 = sadd.s32 %s78, 1
    %p82 = scmp.eq.s32.totalorder %s9, 1
    %p83 = scmp.ne.s32.totalorder %s78, %s80
    %p84 = scmp.eq.s32.totalorder %s9, 0
    %p85 = por %p83, %p84
    %p86 = scmp.ne.s32.totalorder %s78, %s80
    %p87 = scmp.eq.s32.totalorder %s14, 1
    %p88 = por %p86, %p87
    %p89 = scmp.ne.s32.totalorder %s80, %s81
    %p90 = scmp.eq.s32.totalorder %s14, 0
    %p91 = por %p89, %p90
    %p92 = scmp.ne.s32.totalorder %s80, %s81
    %p93 = scmp.eq.s32.totalorder %s15, 1
    %p94 = por %p92, %p93
    %p96 = scmp.ne.s32.totalorder %s81, %s95
    %p97 = scmp.eq.s32.totalorder %s15, 0
    %p98 = por %p96, %p97
    %s99 = ssub.s32 %s16, %s28
    %s100 = ssub.s32 %s17, %s24
    %s101 = sor.u32 %s99, %s100
    %p102 = scmp.eq.s32.totalorder %s101, 0
    %s104 = sadd.s32 %s103, 1
    %s105 = scalar_select %p102, %s103, %s104
    %p108 = pneg %p102
    %p109 = scmp.eq.s32.totalorder %s9, 1
    %p110 = por %p108, %p109
    %p111 = scmp.ne.s32.totalorder %s103, %s106
    %p112 = scmp.eq.s32.totalorder %s9, 0
    %p113 = por %p111, %p112
    %p114 = scmp.ne.s32.totalorder %s103, %s106
    %p115 = scmp.eq.s32.totalorder %s14, 1
    %p116 = por %p114, %p115
    %p117 = scmp.ne.s32.totalorder %s106, %s107
    %p118 = scmp.eq.s32.totalorder %s14, 0
    %p119 = por %p117, %p118
    %p120 = scmp.ne.s32.totalorder %s106, %s107
    %p121 = scmp.eq.s32.totalorder %s15, 1
    %p122 = por %p120, %p121
    %p124 = scmp.ne.s32.totalorder %s107, %s123
    %p125 = scmp.eq.s32.totalorder %s15, 0
    %p126 = por %p124, %p125
    %p127 = scmp.le.s32.totalorder 1, %s9
    %p128 = scmp.lt.s32.totalorder %s9, 3
    %p129 = pnand %p127, %p128
    %p130 = pneg %p129
    // Predicated region
    $region9: #{up_forward.5} parent=5 // pred_check
      _
    $region10: #{up_forward.5} parent=5 // pred_check_branch
      %132 = sbr.rel (%p129) target = $region12
    $region11: #{up_forward.5} parent=5 // pred_region
      %s133 = ssub.s32 %s9, 1
      // Predicated region
      $region13: #{up_forward.5} parent=11 // pred_check
        %p134 = pneg %p70
      $region14: #{up_forward.5} parent=11 // pred_check_branch
        %136 = sbr.rel (%p134) target = $region16
      $region15: #{up_forward.5} parent=11 // pred_region
        _
      $region16: #{up_forward.5} parent=11 // pred_fallthru
        _
      // Predicated region
      $region17: #{up_forward.5} parent=11 // pred_check
        %p137 = pneg %p91
      $region18: #{up_forward.5} parent=11 // pred_check_branch
        %139 = sbr.rel (%p137) target = $region20
      $region19: #{up_forward.5} parent=11 // pred_region
        _
      $region20: #{up_forward.5} parent=11 // pred_fallthru
        _
    $region12: #{up_forward.5} parent=5 // pred_fallthru
      _
    %p140 = scmp.lt.s32.totalorder %s9, 2
    // Predicated region
    $region21: #{up_forward.5} parent=5 // pred_check
      %p141 = pneg %p140
    $region22: #{up_forward.5} parent=5 // pred_check_branch
      %143 = sbr.rel (%p141) target = $region24
    $region23: #{up_forward.5} parent=5 // pred_region
      // Predicated region
      $region25: #{up_forward.5} parent=23 // pred_check
        %p144 = pneg %p43
      $region26: #{up_forward.5} parent=23 // pred_check_branch
        %146 = sbr.rel (%p144) target = $region28
      $region27: #{up_forward.5} parent=23 // pred_region
        %s147 = smul.u32 2, %s17
        %p148 = scmp.lt.s32.totalorder %s16, 1
        %s149 = scalar_select %p148, %s16, 1
        %p150 = scmp.lt.s32.totalorder %s147, 1
        %s151 = scalar_select %p150, %s147, 1
        %s152 = smul.addr %s151, 2
        %s153 = smul.addr %s149, 4
        %s154 = sadd.s32 %s152, %s153
        %s155 = smul.addr %s154, 8
        %s156 = scalar_lea.vmem %s0, %s155
        %s157 = smul.u32 2, %s17
      $region28: #{up_forward.5} parent=23 // pred_fallthru
        _
    $region24: #{up_forward.5} parent=5 // pred_fallthru
      _
    %p158 = scmp.le.s32.totalorder 1, %s9
    %p159 = scmp.lt.s32.totalorder %s9, 3
    %p160 = pnand %p158, %p159
    %p161 = pneg %p160
    // Predicated region
    $region29: #{up_forward.5} parent=5 // pred_check
      _
    $region30: #{up_forward.5} parent=5 // pred_check_branch
      %163 = sbr.rel (%p160) target = $region32
    $region31: #{up_forward.5} parent=5 // pred_region
      %s164 = ssub.s32 %s9, 1
      %s165 = smul.u32 2, %s19
      %p166 = scmp.lt.s32.totalorder %s18, 1
      %s167 = scalar_select %p166, %s18, 1
      %p168 = scmp.lt.s32.totalorder %s165, 1
      %s169 = scalar_select %p168, %s165, 1
      %s170 = smul.addr %s169, 2
      %s171 = smul.addr %s167, 4
      %s172 = sadd.s32 %s170, %s171
      %s173 = smul.addr %s172, 8
      %s174 = scalar_lea.vmem %s0, %s173
      %p175 = pneg %p49
      %p176 = pneg %p46
      %p177 = pneg %p70
      %p178 = pneg %p67
      %p179 = pneg %p91
      %p180 = pneg %p88
      %p181 = pneg %p119
      %p182 = pneg %p116
      %s183 = smul.u32 2, %s19
      %p184 = scmp.lt.s32.totalorder %s18, 1
      %s185 = scalar_select %p184, %s18, 1
      %p186 = scmp.lt.s32.totalorder %s183, 1
      %s187 = scalar_select %p186, %s183, 1
      %s188 = smul.addr %s187, 2
      %s189 = smul.addr %s185, 4
      %s190 = sadd.s32 %s188, %s189
      %s191 = smul.addr %s190, 8
      %s192 = scalar_lea.vmem %s3, %s191
      %s193 = smul.u32 2, %s19
      %p194 = scmp.lt.s32.totalorder %s18, 1
      %s195 = scalar_select %p194, %s18, 1
      %p196 = scmp.lt.s32.totalorder %s193, 1
      %s197 = scalar_select %p196, %s193, 1
      %s198 = smul.addr %s197, 2
      %s199 = smul.addr %s195, 4
      %s200 = sadd.s32 %s198, %s199
      %s201 = smul.addr %s200, 8
      %s202 = scalar_lea.vmem %s0, %s201
      %s203 = smul.u32 2, %s19
      %s204 = smul.u32 2, %s19
      %p205 = scmp.lt.s32.totalorder %s18, 1
      %s206 = scalar_select %p205, %s18, 1
      %p207 = scmp.lt.s32.totalorder %s204, 1
      %s208 = scalar_select %p207, %s204, 1
      %s209 = smul.addr %s208, 2
      %s210 = smul.addr %s206, 4
      %s211 = sadd.s32 %s209, %s210
      %s212 = smul.addr %s211, 8
      %s213 = scalar_lea.vmem %s3, %s212
      %s214 = smul.u32 2, %s19
      %v215 = vld [vmem:[%s202] sm:$0xff]
      %v216 = vld [vmem:[%s202 + $0x8] sm:$0xff]
      %v217 = vld [vmem:[%s202 + $0x10] sm:$0xff]
      %v218 = vld [vmem:[%s202 + $0x18] sm:$0xff]
      %v219 = vld [vmem:[%s1] sm:$0x3]
      %v221 = vlaneseq
      %v222 = vshrl.u32 %v221, 7
      %v223 = vsub.s32 0, %v222
      %v224 = vrot.slane %v219, %v223
      %v225 = vlaneseq
      %v226 = vshrl.u32 %v225, 7
      %v227 = vsub.s32 1, %v226
      %v228 = vrot.slane %v219, %v227
      %v231 = vmul.f32 %v215, %v224
      %v232 = vmul.f32 %v216, %v228
      %v233 = vmul.f32 %v217, %v224
      %v234 = vmul.f32 %v218, %v228
      %v235 = vld [vmem:[%s2] sm:$0x3]
      %v237 = vlaneseq
      %v238 = vshrl.u32 %v237, 7
      %v239 = vsub.s32 0, %v238
      %v240 = vrot.slane %v235, %v239
      %v241 = vlaneseq
      %v242 = vshrl.u32 %v241, 7
      %v243 = vsub.s32 1, %v242
      %v244 = vrot.slane %v235, %v243
      %v247 = vadd.f32 %v231, %v240
      %v248 = vadd.f32 %v232, %v244
      %v249 = vadd.f32 %v233, %v240
      %v250 = vadd.f32 %v234, %v244
      %v251 = vmax.f32 %v247, 0.0
      %v252 = vmax.f32 %v248, 0.0
      %v253 = vmax.f32 %v249, 0.0
      %v254 = vmax.f32 %v250, 0.0
      %255 = vst [vmem:[%s213] sm:$0xff] %v251
      %256 = vst [vmem:[%s213 + $0x8] sm:$0xff] %v252
      %257 = vst [vmem:[%s213 + $0x10] sm:$0xff] %v253
      %258 = vst [vmem:[%s213 + $0x18] sm:$0xff] %v254
      %s259 = smul.u32 2, %s19
      %p260 = scmp.lt.s32.totalorder %s18, 1
      %s261 = scalar_select %p260, %s18, 1
      %p262 = scmp.lt.s32.totalorder %s259, 1
      %s263 = scalar_select %p262, %s259, 1
      %s264 = smul.addr %s263, 2
      %s265 = smul.addr %s261, 4
      %s266 = sadd.s32 %s264, %s265
      %s267 = smul.addr %s266, 8
      %s268 = scalar_lea.vmem %s3, %s267
      // Predicated region
      $region33: #{up_forward.5} parent=31 // pred_check
        %p269 = pneg %p116
      $region34: #{up_forward.5} parent=31 // pred_check_branch
        %271 = sbr.rel (%p269) target = $region36
      $region35: #{up_forward.5} parent=31 // pred_region
        %s272 = smul.u32 2, %s19
      $region36: #{up_forward.5} parent=31 // pred_fallthru
        _
    $region32: #{up_forward.5} parent=5 // pred_fallthru
      _
    %p273 = scmp.le.s32.totalorder 2, %s9
    // Predicated region
    $region37: #{up_forward.5} parent=5 // pred_check
      %p274 = pneg %p273
    $region38: #{up_forward.5} parent=5 // pred_check_branch
      %276 = sbr.rel (%p274) target = $region40
    $region39: #{up_forward.5} parent=5 // pred_region
      %s277 = ssub.s32 %s9, 2
      // Predicated region
      $region41: #{up_forward.5} parent=39 // pred_check
        %p278 = pneg %p122
      $region42: #{up_forward.5} parent=39 // pred_check_branch
        %280 = sbr.rel (%p278) target = $region44
      $region43: #{up_forward.5} parent=39 // pred_region
        %s281 = smul.u32 2, %s21
        %p282 = scmp.lt.s32.totalorder %s20, 1
        %s283 = scalar_select %p282, %s20, 1
        %p284 = scmp.lt.s32.totalorder %s281, 1
        %s285 = scalar_select %p284, %s281, 1
        %s286 = smul.addr %s285, 2
        %s287 = smul.addr %s283, 4
        %s288 = sadd.s32 %s286, %s287
        %s289 = smul.addr %s288, 8
        %s290 = scalar_lea.vmem %s3, %s289
      $region44: #{up_forward.5} parent=39 // pred_fallthru
        _
    $region40: #{up_forward.5} parent=5 // pred_fallthru
      _
  $region6: #{up_forward.5} parent=0 // loop_footer
    %s13 = sadd.s32 1, %s9
  $region7: #{up_forward.5} parent=0 // loop_footer_branch
    %8 = sbr.rel target = $region3
  $region8: #{up_forward.5} parent=0 // loop_exit
    _

// kernel: up_forward.4
$region0: #{up_forward.4}
  #allocation0 [shape = 'u32[]', space=smem, size = 0x4, offset = 0x4, fixed_abs, tag = 'smem constant byte address 0x4 - core index']
  #allocation1 [shape = 'u32[144,128]{1,0:T(1,128)}', space=vmem, size = 0x12000, scoped, tag = 'internal scratch']
  #allocation2 [shape = 'f32[18,18,8]{2,1,0:T(8,128)}', space=vmem, size = 0x36000, scoped, tag = 'scratch operand']
  #allocation3 [shape = 's32[1]{0}', space=sflag, size = 0x4, scoped, tag = 'scoped memory for up_forward.4']
  #allocation4 [shape = 's32[1]{0:T(128)S(6)}', space=smem, size = 0x200, scoped, tag = 'prefetched SMEM operand 0']
  #allocation5 [shape = 's32[1]{0:T(128)S(6)}', space=smem, size = 0x200, scoped, tag = 'prefetched SMEM operand 1']
  %s0 = inlined_call_operand.<no memory space> [shape: s32[1], index: 0, kind: input, shape index: {}]
  %s1 = inlined_call_operand.<no memory space> [shape: s32[1], index: 1, kind: input, shape index: {}]
  %s2 = inlined_call_operand.vmem [shape: f32[2,16,16,8], index: 2, kind: input, shape index: {}, may-alias: {2,3,4}]
  %s3 = inlined_call_operand.vmem [shape: f32[2,16,16,8], index: 3, kind: input, shape index: {}, may-alias: {2,3,4}]
  %s4 = inlined_call_operand.vmem [shape: f32[2,16,16,8], index: 4, kind: input, shape index: {}, may-alias: {2,3,4}]
  %s5 = inlined_call_operand.vmem [shape: f32[1,8], index: 5, kind: input, shape index: {}]
  %s6 = inlined_call_operand.vmem [shape: f32[1,8], index: 6, kind: input, shape index: {}]
  %s7 = inlined_call_operand.vmem [shape: f32[2,8], index: 7, kind: input, shape index: {}]
  %s8 = inlined_call_operand.vmem [shape: f32[72,16], index: 8, kind: input, shape index: {}]
  %s9 = inlined_call_operand.vmem [shape: f32[2,16,16,16], index: 9, kind: output, shape index: {0}]
  %s10 = inlined_call_operand.vmem [shape: f32[2,1,2,16], index: 10, kind: output, shape index: {1}]
  %11 = xla_tuple %s9, %s10
  %s12 = sld [smem:[#allocation0]]
  $region69: #{up_forward.4} parent=0
    _
  %s14 = ssub.s32 1, %s12
  %s15 = scalar_select 0, %s14, %s12
  %16 = sst [smem:[#allocation4]] %s0
  %17 = sst [smem:[#allocation5]] %s1
  loop: start=0, step=1, limit=4
  $region2: #{up_forward.4} parent=0 // loop_pre_header
    _
  $region3: #{up_forward.4} parent=0 // loop_header
    %s19 = sphi 0, %s23
    %p20 = scmp.ge.s32.totalorder %s19, 4
    %s26 = sphi 0, %s38
    %s27 = sphi 0, %s34
    %s28 = sphi 0, %s26
    %s29 = sphi 0, %s27
    %s30 = sphi 0, %s28
    %s31 = sphi 0, %s29
    %s43 = sphi 0, %s45
    %s46 = sphi 0, %s43
    %s47 = sphi 0, %s46
    %s63 = sphi 0, %s47
    %s73 = sphi 0, %s75
    %s76 = sphi 0, %s73
    %s77 = sphi 0, %s76
    %s93 = sphi 0, %s77
    %s103 = sphi 0, %s105
    %s106 = sphi 0, %s103
    %s107 = sphi 0, %s106
    %s123 = sphi 0, %s107
    %s127 = sphi 0, %s127
    %s129 = sphi 0, %s127
    %s130 = sphi 0, %s129
    %s144 = sphi 0, %s130
    %s148 = sphi 0, %s148
    %s150 = sphi 0, %s148
    %s151 = sphi 0, %s150
    %s165 = sphi 0, %s151
    %s169 = sphi 0, %s169
    %s171 = sphi 0, %s169
    %s172 = sphi 0, %s171
    %s186 = sphi 0, %s172
    %s190 = sphi 0, %s190
    %s192 = sphi 0, %s190
    %s193 = sphi 0, %s192
    %s207 = sphi 0, %s193
    %s215 = sphi 0, %s217
    %s218 = sphi 0, %s215
    %s219 = sphi 0, %s218
    %s235 = sphi 0, %s219
    %s243 = sphi 0, %s245
    %s246 = sphi 0, %s243
    %s247 = sphi 0, %s246
    %s263 = sphi 0, %s247
  $region4: #{up_forward.4} parent=0 // loop_header_branch
    %22 = sbr.rel (%p20) target = $region8
  $region5: #{up_forward.4} parent=0 // loop_body
    %s24 = ssub.s32 %s19, 1
    %s25 = ssub.s32 %s19, 2
    %s32 = sadd.s32 1, %s27
    %p33 = scmp.ge.s32.totalorder %s32, 1
    %s34 = scalar_select %p33, 0, %s32
    %s35 = sadd.s32 1, %s26
    %s36 = scalar_select %p33, %s35, %s26
    %p37 = scmp.ge.s32.totalorder %s36, 2
    %s38 = scalar_select %p37, 0, %s36
    %s39 = ssub.s32 %s26, %s38
    %s40 = ssub.s32 %s27, %s34
    %s41 = sor.u32 %s39, %s40
    %p42 = scmp.eq.s32.totalorder %s41, 0
    %s44 = sadd.s32 %s43, 1
    %s45 = scalar_select %p42, %s43, %s44
    %p48 = pneg %p42
    %p49 = scmp.eq.s32.totalorder %s19, 1
    %p50 = por %p48, %p49
    %p51 = scmp.ne.s32.totalorder %s43, %s46
    %p52 = scmp.eq.s32.totalorder %s19, 0
    %p53 = por %p51, %p52
    %p54 = scmp.ne.s32.totalorder %s43, %s46
    %p55 = scmp.eq.s32.totalorder %s24, 1
    %p56 = por %p54, %p55
    %p57 = scmp.ne.s32.totalorder %s46, %s47
    %p58 = scmp.eq.s32.totalorder %s24, 0
    %p59 = por %p57, %p58
    %p60 = scmp.ne.s32.totalorder %s46, %s47
    %p61 = scmp.eq.s32.totalorder %s25, 1
    %p62 = por %p60, %p61
    %p64 = scmp.ne.s32.totalorder %s47, %s63
    %p65 = scmp.eq.s32.totalorder %s25, 0
    %p66 = por %p64, %p65
    %s67 = sld [smem:[#allocation4 + %s27]]
    %s68 = sld [smem:[#allocation4 + %s34]]
    %s69 = ssub.s32 %s26, %s38
    %s70 = ssub.s32 %s67, %s68
    %s71 = sor.u32 %s69, %s70
    %p72 = scmp.eq.s32.totalorder %s71, 0
    %s74 = sadd.s32 %s73, 1
    %s75 = scalar_select %p72, %s73, %s74
    %p78 = pneg %p72
    %p79 = scmp.eq.s32.totalorder %s19, 1
    %p80 = por %p78, %p79
    %p81 = scmp.ne.s32.totalorder %s73, %s76
    %p82 = scmp.eq.s32.totalorder %s19, 0
    %p83 = por %p81, %p82
    %p84 = scmp.ne.s32.totalorder %s73, %s76
    %p85 = scmp.eq.s32.totalorder %s24, 1
    %p86 = por %p84, %p85
    %p87 = scmp.ne.s32.totalorder %s76, %s77
    %p88 = scmp.eq.s32.totalorder %s24, 0
    %p89 = por %p87, %p88
    %p90 = scmp.ne.s32.totalorder %s76, %s77
    %p91 = scmp.eq.s32.totalorder %s25, 1
    %p92 = por %p90, %p91
    %p94 = scmp.ne.s32.totalorder %s77, %s93
    %p95 = scmp.eq.s32.totalorder %s25, 0
    %p96 = por %p94, %p95
    %s97 = sld [smem:[#allocation5 + %s27]]
    %s98 = sld [smem:[#allocation5 + %s34]]
    %s99 = ssub.s32 %s26, %s38
    %s100 = ssub.s32 %s97, %s98
    %s101 = sor.u32 %s99, %s100
    %p102 = scmp.eq.s32.totalorder %s101, 0
    %s104 = sadd.s32 %s103, 1
    %s105 = scalar_select %p102, %s103, %s104
    %p108 = pneg %p102
    %p109 = scmp.eq.s32.totalorder %s19, 1
    %p110 = por %p108, %p109
    %p111 = scmp.ne.s32.totalorder %s103, %s106
    %p112 = scmp.eq.s32.totalorder %s19, 0
    %p113 = por %p111, %p112
    %p114 = scmp.ne.s32.totalorder %s103, %s106
    %p115 = scmp.eq.s32.totalorder %s24, 1
    %p116 = por %p114, %p115
    %p117 = scmp.ne.s32.totalorder %s106, %s107
    %p118 = scmp.eq.s32.totalorder %s24, 0
    %p119 = por %p117, %p118
    %p120 = scmp.ne.s32.totalorder %s106, %s107
    %p121 = scmp.eq.s32.totalorder %s25, 1
    %p122 = por %p120, %p121
    %p124 = scmp.ne.s32.totalorder %s107, %s123
    %p125 = scmp.eq.s32.totalorder %s25, 0
    %p126 = por %p124, %p125
    %s128 = sadd.s32 %s127, 1
    %p131 = scmp.eq.s32.totalorder %s19, 1
    %p132 = scmp.ne.s32.totalorder %s127, %s129
    %p133 = scmp.eq.s32.totalorder %s19, 0
    %p134 = por %p132, %p133
    %p135 = scmp.ne.s32.totalorder %s127, %s129
    %p136 = scmp.eq.s32.totalorder %s24, 1
    %p137 = por %p135, %p136
    %p138 = scmp.ne.s32.totalorder %s129, %s130
    %p139 = scmp.eq.s32.totalorder %s24, 0
    %p140 = por %p138, %p139
    %p141 = scmp.ne.s32.totalorder %s129, %s130
    %p142 = scmp.eq.s32.totalorder %s25, 1
    %p143 = por %p141, %p142
    %p145 = scmp.ne.s32.totalorder %s130, %s144
    %p146 = scmp.eq.s32.totalorder %s25, 0
    %p147 = por %p145, %p146
    %s149 = sadd.s32 %s148, 1
    %p152 = scmp.eq.s32.totalorder %s19, 1
    %p153 = scmp.ne.s32.totalorder %s148, %s150
    %p154 = scmp.eq.s32.totalorder %s19, 0
    %p155 = por %p153, %p154
    %p156 = scmp.ne.s32.totalorder %s148, %s150
    %p157 = scmp.eq.s32.totalorder %s24, 1
    %p158 = por %p156, %p157
    %p159 = scmp.ne.s32.totalorder %s150, %s151
    %p160 = scmp.eq.s32.totalorder %s24, 0
    %p161 = por %p159, %p160
    %p162 = scmp.ne.s32.totalorder %s150, %s151
    %p163 = scmp.eq.s32.totalorder %s25, 1
    %p164 = por %p162, %p163
    %p166 = scmp.ne.s32.totalorder %s151, %s165
    %p167 = scmp.eq.s32.totalorder %s25, 0
    %p168 = por %p166, %p167
    %s170 = sadd.s32 %s169, 1
    %p173 = scmp.eq.s32.totalorder %s19, 1
    %p174 = scmp.ne.s32.totalorder %s169, %s171
    %p175 = scmp.eq.s32.totalorder %s19, 0
    %p176 = por %p174, %p175
    %p177 = scmp.ne.s32.totalorder %s169, %s171
    %p178 = scmp.eq.s32.totalorder %s24, 1
    %p179 = por %p177, %p178
    %p180 = scmp.ne.s32.totalorder %s171, %s172
    %p181 = scmp.eq.s32.totalorder %s24, 0
    %p182 = por %p180, %p181
    %p183 = scmp.ne.s32.totalorder %s171, %s172
    %p184 = scmp.eq.s32.totalorder %s25, 1
    %p185 = por %p183, %p184
    %p187 = scmp.ne.s32.totalorder %s172, %s186
    %p188 = scmp.eq.s32.totalorder %s25, 0
    %p189 = por %p187, %p188
    %s191 = sadd.s32 %s190, 1
    %p194 = scmp.eq.s32.totalorder %s19, 1
    %p195 = scmp.ne.s32.totalorder %s190, %s192
    %p196 = scmp.eq.s32.totalorder %s19, 0
    %p197 = por %p195, %p196
    %p198 = scmp.ne.s32.totalorder %s190, %s192
    %p199 = scmp.eq.s32.totalorder %s24, 1
    %p200 = por %p198, %p199
    %p201 = scmp.ne.s32.totalorder %s192, %s193
    %p202 = scmp.eq.s32.totalorder %s24, 0
    %p203 = por %p201, %p202
    %p204 = scmp.ne.s32.totalorder %s192, %s193
    %p205 = scmp.eq.s32.totalorder %s25, 1
    %p206 = por %p204, %p205
    %p208 = scmp.ne.s32.totalorder %s193, %s207
    %p209 = scmp.eq.s32.totalorder %s25, 0
    %p210 = por %p208, %p209
    %s211 = ssub.s32 %s26, %s38
    %s212 = ssub.s32 %s27, %s34
    %s213 = sor.u32 %s211, %s212
    %p214 = scmp.eq.s32.totalorder %s213, 0
    %s216 = sadd.s32 %s215, 1
    %s217 = scalar_select %p214, %s215, %s216
    %p220 = pneg %p214
    %p221 = scmp.eq.s32.totalorder %s19, 1
    %p222 = por %p220, %p221
    %p223 = scmp.ne.s32.totalorder %s215, %s218
    %p224 = scmp.eq.s32.totalorder %s19, 0
    %p225 = por %p223, %p224
    %p226 = scmp.ne.s32.totalorder %s215, %s218
    %p227 = scmp.eq.s32.totalorder %s24, 1
    %p228 = por %p226, %p227
    %p229 = scmp.ne.s32.totalorder %s218, %s219
    %p230 = scmp.eq.s32.totalorder %s24, 0
    %p231 = por %p229, %p230
    %p232 = scmp.ne.s32.totalorder %s218, %s219
    %p233 = scmp.eq.s32.totalorder %s25, 1
    %p234 = por %p232, %p233
    %p236 = scmp.ne.s32.totalorder %s219, %s235
    %p237 = scmp.eq.s32.totalorder %s25, 0
    %p238 = por %p236, %p237
    %s239 = ssub.s32 %s26, %s38
    %s240 = ssub.s32 %s27, %s34
    %s241 = sor.u32 %s239, %s240
    %p242 = scmp.eq.s32.totalorder %s241, 0
    %s244 = sadd.s32 %s243, 1
    %s245 = scalar_select %p242, %s243, %s244
    %p248 = pneg %p242
    %p249 = scmp.eq.s32.totalorder %s19, 1
    %p250 = por %p248, %p249
    %p251 = scmp.ne.s32.totalorder %s243, %s246
    %p252 = scmp.eq.s32.totalorder %s19, 0
    %p253 = por %p251, %p252
    %p254 = scmp.ne.s32.totalorder %s243, %s246
    %p255 = scmp.eq.s32.totalorder %s24, 1
    %p256 = por %p254, %p255
    %p257 = scmp.ne.s32.totalorder %s246, %s247
    %p258 = scmp.eq.s32.totalorder %s24, 0
    %p259 = por %p257, %p258
    %p260 = scmp.ne.s32.totalorder %s246, %s247
    %p261 = scmp.eq.s32.totalorder %s25, 1
    %p262 = por %p260, %p261
    %p264 = scmp.ne.s32.totalorder %s247, %s263
    %p265 = scmp.eq.s32.totalorder %s25, 0
    %p266 = por %p264, %p265
    %p267 = scmp.le.s32.totalorder 1, %s19
    %p268 = scmp.lt.s32.totalorder %s19, 3
    %p269 = pnand %p267, %p268
    %p270 = pneg %p269
    // Predicated region
    $region9: #{up_forward.4} parent=5 // pred_check
      _
    $region10: #{up_forward.4} parent=5 // pred_check_branch
      %272 = sbr.rel (%p269) target = $region12
    $region11: #{up_forward.4} parent=5 // pred_region
      %s273 = ssub.s32 %s19, 1
      // Predicated region
      $region13: #{up_forward.4} parent=11 // pred_check
        %p274 = pneg %p140
      $region14: #{up_forward.4} parent=11 // pred_check_branch
        %276 = sbr.rel (%p274) target = $region16
      $region15: #{up_forward.4} parent=11 // pred_region
        _
      $region16: #{up_forward.4} parent=11 // pred_fallthru
        _
      // Predicated region
      $region17: #{up_forward.4} parent=11 // pred_check
        %p277 = pneg %p161
      $region18: #{up_forward.4} parent=11 // pred_check_branch
        %279 = sbr.rel (%p277) target = $region20
      $region19: #{up_forward.4} parent=11 // pred_region
        _
      $region20: #{up_forward.4} parent=11 // pred_fallthru
        _
      // Predicated region
      $region21: #{up_forward.4} parent=11 // pred_check
        %p280 = pneg %p182
      $region22: #{up_forward.4} parent=11 // pred_check_branch
        %282 = sbr.rel (%p280) target = $region24
      $region23: #{up_forward.4} parent=11 // pred_region
        _
      $region24: #{up_forward.4} parent=11 // pred_fallthru
        _
      // Predicated region
      $region25: #{up_forward.4} parent=11 // pred_check
        %p283 = pneg %p203
      $region26: #{up_forward.4} parent=11 // pred_check_branch
        %285 = sbr.rel (%p283) target = $region28
      $region27: #{up_forward.4} parent=11 // pred_region
        _
      $region28: #{up_forward.4} parent=11 // pred_fallthru
        _
    $region12: #{up_forward.4} parent=5 // pred_fallthru
      _
    %p286 = scmp.lt.s32.totalorder %s19, 2
    // Predicated region
    $region29: #{up_forward.4} parent=5 // pred_check
      %p287 = pneg %p286
    $region30: #{up_forward.4} parent=5 // pred_check_branch
      %289 = sbr.rel (%p287) target = $region32
    $region31: #{up_forward.4} parent=5 // pred_region
      // Predicated region
      $region33: #{up_forward.4} parent=31 // pred_check
        %p290 = pneg %p53
      $region34: #{up_forward.4} parent=31 // pred_check_branch
        %292 = sbr.rel (%p290) target = $region36
      $region35: #{up_forward.4} parent=31 // pred_region
        %s293 = smul.u32 16, %s27
        %p294 = scmp.lt.s32.totalorder %s26, 1
        %s295 = scalar_select %p294, %s26, 1
        %p296 = scmp.lt.s32.totalorder %s293, 15
        %s297 = scalar_select %p296, %s293, 15
        %s298 = smul.addr %s297, 2
        %s299 = smul.addr %s295, 32
        %s300 = sadd.s32 %s298, %s299
        %s301 = smul.addr %s300, 8
        %s302 = scalar_lea.vmem %s2, %s301
        %s303 = smul.u32 16, %s27
      $region36: #{up_forward.4} parent=31 // pred_fallthru
        _
      // Predicated region
      $region37: #{up_forward.4} parent=31 // pred_check
        %p304 = pneg %p83
      $region38: #{up_forward.4} parent=31 // pred_check_branch
        %306 = sbr.rel (%p304) target = $region40
      $region39: #{up_forward.4} parent=31 // pred_region
        %s307 = sld [smem:[#allocation4 + %s27]]
        %p308 = scmp.lt.s32.totalorder %s26, 1
        %s309 = scalar_select %p308, %s26, 1
        %p310 = scmp.lt.s32.totalorder %s307, 15
        %s311 = scalar_select %p310, %s307, 15
        %s312 = smul.addr %s311, 2
        %s313 = smul.addr %s309, 32
        %s314 = sadd.s32 %s312, %s313
        %s315 = smul.addr %s314, 8
        %s316 = scalar_lea.vmem %s3, %s315
        %s317 = sld [smem:[#allocation4 + %s27]]
      $region40: #{up_forward.4} parent=31 // pred_fallthru
        _
      // Predicated region
      $region41: #{up_forward.4} parent=31 // pred_check
        %p318 = pneg %p113
      $region42: #{up_forward.4} parent=31 // pred_check_branch
        %320 = sbr.rel (%p318) target = $region44
      $region43: #{up_forward.4} parent=31 // pred_region
        %s321 = sld [smem:[#allocation5 + %s27]]
        %p322 = scmp.lt.s32.totalorder %s26, 1
        %s323 = scalar_select %p322, %s26, 1
        %p324 = scmp.lt.s32.totalorder %s321, 15
        %s325 = scalar_select %p324, %s321, 15
        %s326 = smul.addr %s325, 2
        %s327 = smul.addr %s323, 32
        %s328 = sadd.s32 %s326, %s327
        %s329 = smul.addr %s328, 8
        %s330 = scalar_lea.vmem %s4, %s329
        %s331 = sld [smem:[#allocation5 + %s27]]
      $region44: #{up_forward.4} parent=31 // pred_fallthru
        _
    $region32: #{up_forward.4} parent=5 // pred_fallthru
      _
    %p332 = scmp.le.s32.totalorder 1, %s19
    %p333 = scmp.lt.s32.totalorder %s19, 3
    %p334 = pnand %p332, %p333
    %p335 = pneg %p334
    // Predicated region
    $region45: #{up_forward.4} parent=5 // pred_check
      _
    $region46: #{up_forward.4} parent=5 // pred_check_branch
      %337 = sbr.rel (%p334) target = $region48
    $region47: #{up_forward.4} parent=5 // pred_region
      %s338 = ssub.s32 %s19, 1
      %s339 = smul.u32 16, %s29
      %p340 = scmp.lt.s32.totalorder %s28, 1
      %s341 = scalar_select %p340, %s28, 1
      %p342 = scmp.lt.s32.totalorder %s339, 15
      %s343 = scalar_select %p342, %s339, 15
      %s344 = smul.addr %s343, 2
      %s345 = smul.addr %s341, 32
      %s346 = sadd.s32 %s344, %s345
      %s347 = smul.addr %s346, 8
      %s348 = scalar_lea.vmem %s2, %s347
      %p349 = pneg %p59
      %p350 = pneg %p56
      %s351 = sld [smem:[#allocation4 + %s29]]
      %p352 = scmp.lt.s32.totalorder %s28, 1
      %s353 = scalar_select %p352, %s28, 1
      %p354 = scmp.lt.s32.totalorder %s351, 15
      %s355 = scalar_select %p354, %s351, 15
      %s356 = smul.addr %s355, 2
      %s357 = smul.addr %s353, 32
      %s358 = sadd.s32 %s356, %s357
      %s359 = smul.addr %s358, 8
      %s360 = scalar_lea.vmem %s3, %s359
      %p361 = pneg %p89
      %p362 = pneg %p86
      %s363 = sld [smem:[#allocation5 + %s29]]
      %p364 = scmp.lt.s32.totalorder %s28, 1
      %s365 = scalar_select %p364, %s28, 1
      %p366 = scmp.lt.s32.totalorder %s363, 15
      %s367 = scalar_select %p366, %s363, 15
      %s368 = smul.addr %s367, 2
      %s369 = smul.addr %s365, 32
      %s370 = sadd.s32 %s368, %s369
      %s371 = smul.addr %s370, 8
      %s372 = scalar_lea.vmem %s4, %s371
      %p373 = pneg %p119
      %p374 = pneg %p116
      %p375 = pneg %p140
      %p376 = pneg %p137
      %p377 = pneg %p161
      %p378 = pneg %p158
      %p379 = pneg %p182
      %p380 = pneg %p179
      %p381 = pneg %p203
      %p382 = pneg %p200
      %p383 = pneg %p231
      %p384 = pneg %p228
      %s385 = smul.u32 16, %s29
      %p386 = scmp.lt.s32.totalorder %s28, 1
      %s387 = scalar_select %p386, %s28, 1
      %p388 = scmp.lt.s32.totalorder %s385, 15
      %s389 = scalar_select %p388, %s385, 15
      %s390 = smul.addr %s389, 2
      %s391 = smul.addr %s387, 32
      %s392 = sadd.s32 %s390, %s391
      %s393 = smul.addr %s392, 8
      %s394 = scalar_lea.vmem %s9, %s393
      %p395 = pneg %p259
      %p396 = pneg %p256
      %p397 = scmp.lt.s32.totalorder %s28, 1
      %s398 = scalar_select %p397, %s28, 1
      %p399 = scmp.lt.s32.totalorder %s29, 0
      %s400 = scalar_select %p399, %s29, 0
      %s401 = sadd.s32 %s400, %s398
      %s402 = smul.addr %s401, 2
      %s403 = scalar_lea.vmem %s10, %s402
      %s404 = smul.u32 16, %s29
      %p405 = scmp.lt.s32.totalorder %s28, 1
      %s406 = scalar_select %p405, %s28, 1
      %p407 = scmp.lt.s32.totalorder %s404, 15
      %s408 = scalar_select %p407, %s404, 15
      %s409 = smul.addr %s408, 2
      %s410 = smul.addr %s406, 32
      %s411 = sadd.s32 %s409, %s410
      %s412 = smul.addr %s411, 8
      %s413 = scalar_lea.vmem %s2, %s412
      %s414 = smul.u32 16, %s29
      %s415 = sld [smem:[#allocation4 + %s29]]
      %p416 = scmp.lt.s32.totalorder %s28, 1
      %s417 = scalar_select %p416, %s28, 1
      %p418 = scmp.lt.s32.totalorder %s415, 15
      %s419 = scalar_select %p418, %s415, 15
      %s420 = smul.addr %s419, 2
      %s421 = smul.addr %s417, 32
      %s422 = sadd.s32 %s420, %s421
      %s423 = smul.addr %s422, 8
      %s424 = scalar_lea.vmem %s3, %s423
      %s425 = sld [smem:[#allocation4 + %s29]]
      %s426 = sld [smem:[#allocation5 + %s29]]
      %p427 = scmp.lt.s32.totalorder %s28, 1
      %s428 = scalar_select %p427, %s28, 1
      %p429 = scmp.lt.s32.totalorder %s426, 15
      %s430 = scalar_select %p429, %s426, 15
      %s431 = smul.addr %s430, 2
      %s432 = smul.addr %s428, 32
      %s433 = sadd.s32 %s431, %s432
      %s434 = smul.addr %s433, 8
      %s435 = scalar_lea.vmem %s4, %s434
      %s436 = sld [smem:[#allocation5 + %s29]]
      %s437 = smul.u32 16, %s29
      %p438 = scmp.lt.s32.totalorder %s28, 1
      %s439 = scalar_select %p438, %s28, 1
      %p440 = scmp.lt.s32.totalorder %s437, 15
      %s441 = scalar_select %p440, %s437, 15
      %s442 = smul.addr %s441, 2
      %s443 = smul.addr %s439, 32
      %s444 = sadd.s32 %s442, %s443
      %s445 = smul.addr %s444, 8
      %s446 = scalar_lea.vmem %s9, %s445
      %s447 = smul.u32 16, %s29
      %p448 = scmp.lt.s32.totalorder %s28, 1
      %s449 = scalar_select %p448, %s28, 1
      %p450 = scmp.lt.s32.totalorder %s29, 0
      %s451 = scalar_select %p450, %s29, 0
      %s452 = sadd.s32 %s451, %s449
      %s453 = smul.addr %s452, 2
      %s454 = scalar_lea.vmem %s10, %s453
      %v455 = vld [vmem:[%s5] sm:$0x1]
      %v456 = vld [vmem:[%s6] sm:$0x1]
      %s457 = scalar_lea.vmem %s7, %s28
      %v458 = vld [vmem:[%s457] sm:$0x1]
      %v459 = vld [vmem:[%s413] sm:$0xff]
      %v460 = vld [vmem:[%s413 + $0x8] sm:$0xff]
      %v461 = vld [vmem:[%s413 + $0x10] sm:$0xff]
      %v462 = vld [vmem:[%s413 + $0x18] sm:$0xff]
      %v463 = vld [vmem:[%s413 + $0x20] sm:$0xff]
      %v464 = vld [vmem:[%s413 + $0x28] sm:$0xff]
      %v465 = vld [vmem:[%s413 + $0x30] sm:$0xff]
      %v466 = vld [vmem:[%s413 + $0x38] sm:$0xff]
      %v467 = vld [vmem:[%s413 + $0x40] sm:$0xff]
      %v468 = vld [vmem:[%s413 + $0x48] sm:$0xff]
      %v469 = vld [vmem:[%s413 + $0x50] sm:$0xff]
      %v470 = vld [vmem:[%s413 + $0x58] sm:$0xff]
      %v471 = vld [vmem:[%s413 + $0x60] sm:$0xff]
      %v472 = vld [vmem:[%s413 + $0x68] sm:$0xff]
      %v473 = vld [vmem:[%s413 + $0x70] sm:$0xff]
      %v474 = vld [vmem:[%s413 + $0x78] sm:$0xff]
      %v475 = vld [vmem:[%s413 + $0x80] sm:$0xff]
      %v476 = vld [vmem:[%s413 + $0x88] sm:$0xff]
      %v477 = vld [vmem:[%s413 + $0x90] sm:$0xff]
      %v478 = vld [vmem:[%s413 + $0x98] sm:$0xff]
      %v479 = vld [vmem:[%s413 + $0xa0] sm:$0xff]
      %v480 = vld [vmem:[%s413 + $0xa8] sm:$0xff]
      %v481 = vld [vmem:[%s413 + $0xb0] sm:$0xff]
      %v482 = vld [vmem:[%s413 + $0xb8] sm:$0xff]
      %v483 = vld [vmem:[%s413 + $0xc0] sm:$0xff]
      %v484 = vld [vmem:[%s413 + $0xc8] sm:$0xff]
      %v485 = vld [vmem:[%s413 + $0xd0] sm:$0xff]
      %v486 = vld [vmem:[%s413 + $0xd8] sm:$0xff]
      %v487 = vld [vmem:[%s413 + $0xe0] sm:$0xff]
      %v488 = vld [vmem:[%s413 + $0xe8] sm:$0xff]
      %v489 = vld [vmem:[%s413 + $0xf0] sm:$0xff]
      %v490 = vld [vmem:[%s413 + $0xf8] sm:$0xff]
      %v492 = vlaneseq
      %v493 = vshrl.u32 %v492, 7
      %v494 = vsub.s32 0, %v493
      %v495 = vrot.slane %v455, %v494
      %v497 = vmul.f32 %v459, %v495
      %v498 = vmul.f32 %v460, %v495
      %v499 = vmul.f32 %v461, %v495
      %v500 = vmul.f32 %v462, %v495
      %v501 = vmul.f32 %v463, %v495
      %v502 = vmul.f32 %v464, %v495
      %v503 = vmul.f32 %v465, %v495
      %v504 = vmul.f32 %v466, %v495
      %v505 = vmul.f32 %v467, %v495
      %v506 = vmul.f32 %v468, %v495
      %v507 = vmul.f32 %v469, %v495
      %v508 = vmul.f32 %v470, %v495
      %v509 = vmul.f32 %v471, %v495
      %v510 = vmul.f32 %v472, %v495
      %v511 = vmul.f32 %v473, %v495
      %v512 = vmul.f32 %v474, %v495
      %v513 = vmul.f32 %v475, %v495
      %v514 = vmul.f32 %v476, %v495
      %v515 = vmul.f32 %v477, %v495
      %v516 = vmul.f32 %v478, %v495
      %v517 = vmul.f32 %v479, %v495
      %v518 = vmul.f32 %v480, %v495
      %v519 = vmul.f32 %v481, %v495
      %v520 = vmul.f32 %v482, %v495
      %v521 = vmul.f32 %v483, %v495
      %v522 = vmul.f32 %v484, %v495
      %v523 = vmul.f32 %v485, %v495
      %v524 = vmul.f32 %v486, %v495
      %v525 = vmul.f32 %v487, %v495
      %v526 = vmul.f32 %v488, %v495
      %v527 = vmul.f32 %v489, %v495
      %v528 = vmul.f32 %v490, %v495
      %v530 = vlaneseq
      %v531 = vshrl.u32 %v530, 7
      %v532 = vsub.s32 0, %v531
      %v533 = vrot.slane %v456, %v532
      %v535 = vadd.f32 %v497, %v533
      %v536 = vadd.f32 %v498, %v533
      %v537 = vadd.f32 %v499, %v533
      %v538 = vadd.f32 %v500, %v533
      %v539 = vadd.f32 %v501, %v533
      %v540 = vadd.f32 %v502, %v533
      %v541 = vadd.f32 %v503, %v533
      %v542 = vadd.f32 %v504, %v533
      %v543 = vadd.f32 %v505, %v533
      %v544 = vadd.f32 %v506, %v533
      %v545 = vadd.f32 %v507, %v533
      %v546 = vadd.f32 %v508, %v533
      %v547 = vadd.f32 %v509, %v533
      %v548 = vadd.f32 %v510, %v533
      %v549 = vadd.f32 %v511, %v533
      %v550 = vadd.f32 %v512, %v533
      %v551 = vadd.f32 %v513, %v533
      %v552 = vadd.f32 %v514, %v533
      %v553 = vadd.f32 %v515, %v533
      %v554 = vadd.f32 %v516, %v533
      %v555 = vadd.f32 %v517, %v533
      %v556 = vadd.f32 %v518, %v533
      %v557 = vadd.f32 %v519, %v533
      %v558 = vadd.f32 %v520, %v533
      %v559 = vadd.f32 %v521, %v533
      %v560 = vadd.f32 %v522, %v533
      %v561 = vadd.f32 %v523, %v533
      %v562 = vadd.f32 %v524, %v533
      %v563 = vadd.f32 %v525, %v533
      %v564 = vadd.f32 %v526, %v533
      %v565 = vadd.f32 %v527, %v533
      %v566 = vadd.f32 %v528, %v533
      %v567 = vmax.f32 %v535, 0.0
      %v568 = vmax.f32 %v536, 0.0
      %v569 = vmax.f32 %v537, 0.0
      %v570 = vmax.f32 %v538, 0.0
      %v571 = vmax.f32 %v539, 0.0
      %v572 = vmax.f32 %v540, 0.0
      %v573 = vmax.f32 %v541, 0.0
      %v574 = vmax.f32 %v542, 0.0
      %v575 = vmax.f32 %v543, 0.0
      %v576 = vmax.f32 %v544, 0.0
      %v577 = vmax.f32 %v545, 0.0
      %v578 = vmax.f32 %v546, 0.0
      %v579 = vmax.f32 %v547, 0.0
      %v580 = vmax.f32 %v548, 0.0
      %v581 = vmax.f32 %v549, 0.0
      %v582 = vmax.f32 %v550, 0.0
      %v583 = vmax.f32 %v551, 0.0
      %v584 = vmax.f32 %v552, 0.0
      %v585 = vmax.f32 %v553, 0.0
      %v586 = vmax.f32 %v554, 0.0
      %v587 = vmax.f32 %v555, 0.0
      %v588 = vmax.f32 %v556, 0.0
      %v589 = vmax.f32 %v557, 0.0
      %v590 = vmax.f32 %v558, 0.0
      %v591 = vmax.f32 %v559, 0.0
      %v592 = vmax.f32 %v560, 0.0
      %v593 = vmax.f32 %v561, 0.0
      %v594 = vmax.f32 %v562, 0.0
      %v595 = vmax.f32 %v563, 0.0
      %v596 = vmax.f32 %v564, 0.0
      %v597 = vmax.f32 %v565, 0.0
      %v598 = vmax.f32 %v566, 0.0
      %v599 = vlaneseq
      %v600 = vshrl.u32 %v599, 7
      %v601 = vsub.s32 0, %v600
      %v602 = vrot.slane %v458, %v601
      %v603 = vadd.f32 %v567, %v602
      %v604 = vadd.f32 %v568, %v602
      %v605 = vadd.f32 %v569, %v602
      %v606 = vadd.f32 %v570, %v602
      %v607 = vadd.f32 %v571, %v602
      %v608 = vadd.f32 %v572, %v602
      %v609 = vadd.f32 %v573, %v602
      %v610 = vadd.f32 %v574, %v602
      %v611 = vadd.f32 %v575, %v602
      %v612 = vadd.f32 %v576, %v602
      %v613 = vadd.f32 %v577, %v602
      %v614 = vadd.f32 %v578, %v602
      %v615 = vadd.f32 %v579, %v602
      %v616 = vadd.f32 %v580, %v602
      %v617 = vadd.f32 %v581, %v602
      %v618 = vadd.f32 %v582, %v602
      %v619 = vadd.f32 %v583, %v602
      %v620 = vadd.f32 %v584, %v602
      %v621 = vadd.f32 %v585, %v602
      %v622 = vadd.f32 %v586, %v602
      %v623 = vadd.f32 %v587, %v602
      %v624 = vadd.f32 %v588, %v602
      %v625 = vadd.f32 %v589, %v602
      %v626 = vadd.f32 %v590, %v602
      %v627 = vadd.f32 %v591, %v602
      %v628 = vadd.f32 %v592, %v602
      %v629 = vadd.f32 %v593, %v602
      %v630 = vadd.f32 %v594, %v602
      %v631 = vadd.f32 %v595, %v602
      %v632 = vadd.f32 %v596, %v602
      %v633 = vadd.f32 %v597, %v602
      %v634 = vadd.f32 %v598, %v602
      %v635 = vld [vmem:[%s424] sm:$0xff]
      %v636 = vld [vmem:[%s424 + $0x8] sm:$0xff]
      %v637 = vmul.f32 %v635, %v495
      %v638 = vmul.f32 %v636, %v495
      %v639 = vadd.f32 %v637, %v533
      %v640 = vadd.f32 %v638, %v533
      %v641 = vmax.f32 %v639, 0.0
      %v642 = vmax.f32 %v640, 0.0
      %v643 = vadd.f32 %v641, %v602
      %v644 = vadd.f32 %v642, %v602
      %p645 = scmp.eq.s32.totalorder %s29, 0
      %s646 = scalar_select %p645, 0.0, 1.0
      %v647 = vstv %s646
      %v648 = vmul.f32 %v643, %v647
      %v649 = vmul.f32 %v644, %v647
      %v650 = vld [vmem:[%s435] sm:$0xff]
      %v651 = vld [vmem:[%s435 + $0x8] sm:$0xff]
      %v652 = vmul.f32 %v650, %v495
      %v653 = vmul.f32 %v651, %v495
      %v654 = vadd.f32 %v652, %v533
      %v655 = vadd.f32 %v653, %v533
      %v656 = vmax.f32 %v654, 0.0
      %v657 = vmax.f32 %v655, 0.0
      %v658 = vadd.f32 %v656, %v602
      %v659 = vadd.f32 %v657, %v602
      %v660 = vmul.f32 %v658, %v647
      %v661 = vmul.f32 %v659, %v647
      %vm662 = vcmask 57344
      %663 = vst.msk [vmem:[#allocation2] sm:$0x1] %vm662, 0.0
      %664 = vst.msk [vmem:[#allocation2 + $0x18] sm:$0x1] %vm662, 0.0
      %665 = vst.msk [vmem:[#allocation2 + $0x30] sm:$0x1] %vm662, 0.0
      %666 = vst.msk [vmem:[#allocation2 + $0x48] sm:$0x1] %vm662, 0.0
      %667 = vst.msk [vmem:[#allocation2 + $0x60] sm:$0x1] %vm662, 0.0
      %668 = vst.msk [vmem:[#allocation2 + $0x78] sm:$0x1] %vm662, 0.0
      %669 = vst.msk [vmem:[#allocation2 + $0x90] sm:$0x1] %vm662, 0.0
      %670 = vst.msk [vmem:[#allocation2 + $0xa8] sm:$0x1] %vm662, 0.0
      %671 = vst.msk [vmem:[#allocation2 + $0xc0] sm:$0x1] %vm662, 0.0
      %672 = vst.msk [vmem:[#allocation2 + $0xd8] sm:$0x1] %vm662, 0.0
      %673 = vst.msk [vmem:[#allocation2 + $0xf0] sm:$0x1] %vm662, 0.0
      %674 = vst.msk [vmem:[#allocation2 + $0x108] sm:$0x1] %vm662, 0.0
      %675 = vst.msk [vmem:[#allocation2 + $0x120] sm:$0x1] %vm662, 0.0
      %676 = vst.msk [vmem:[#allocation2 + $0x138] sm:$0x1] %vm662, 0.0
      %677 = vst.msk [vmem:[#allocation2 + $0x150] sm:$0x1] %vm662, 0.0
      %678 = vst.msk [vmem:[#allocation2 + $0x168] sm:$0x1] %vm662, 0.0
      %679 = vst.msk [vmem:[#allocation2 + $0x180] sm:$0x1] %vm662, 0.0
      %680 = vst.msk [vmem:[#allocation2 + $0x198] sm:$0x1] %vm662, 0.0
      %681 = vst.msk [vmem:[#allocation2 + $0x11] sm:$0x1] %vm662, 0.0
      %682 = vst.msk [vmem:[#allocation2 + $0x29] sm:$0x1] %vm662, 0.0
      %683 = vst.msk [vmem:[#allocation2 + $0x41] sm:$0x1] %vm662, 0.0
      %684 = vst.msk [vmem:[#allocation2 + $0x59] sm:$0x1] %vm662, 0.0
      %685 = vst.msk [vmem:[#allocation2 + $0x71] sm:$0x1] %vm662, 0.0
      %686 = vst.msk [vmem:[#allocation2 + $0x89] sm:$0x1] %vm662, 0.0
      %687 = vst.msk [vmem:[#allocation2 + $0xa1] sm:$0x1] %vm662, 0.0
      %688 = vst.msk [vmem:[#allocation2 + $0xb9] sm:$0x1] %vm662, 0.0
      %689 = vst.msk [vmem:[#allocation2 + $0xd1] sm:$0x1] %vm662, 0.0
      %690 = vst.msk [vmem:[#allocation2 + $0xe9] sm:$0x1] %vm662, 0.0
      %691 = vst.msk [vmem:[#allocation2 + $0x101] sm:$0x1] %vm662, 0.0
      %692 = vst.msk [vmem:[#allocation2 + $0x119] sm:$0x1] %vm662, 0.0
      %693 = vst.msk [vmem:[#allocation2 + $0x131] sm:$0x1] %vm662, 0.0
      %694 = vst.msk [vmem:[#allocation2 + $0x149] sm:$0x1] %vm662, 0.0
      %695 = vst.msk [vmem:[#allocation2 + $0x161] sm:$0x1] %vm662, 0.0
      %696 = vst.msk [vmem:[#allocation2 + $0x179] sm:$0x1] %vm662, 0.0
      %697 = vst.msk [vmem:[#allocation2 + $0x191] sm:$0x1] %vm662, 0.0
      %698 = vst.msk [vmem:[#allocation2 + $0x1a9] sm:$0x1] %vm662, 0.0
      %vm699 = vcmask 64512
      %700 = vst.msk [vmem:[#allocation2 + $0x1] sm:$0xff] %vm699, %v648
      %701 = vst.msk [vmem:[#allocation2 + $0x9] sm:$0xff] %vm699, %v649
      %s702 = scalar_lea.vmem [#allocation2], 24
      %703 = vst.msk [vmem:[%s702 + $0x1] sm:$0xff] %vm699, %v603
      %704 = vst.msk [vmem:[%s702 + $0x9] sm:$0xff] %vm699, %v604
      %705 = vst.msk [vmem:[%s702 + $0x19] sm:$0xff] %vm699, %v605
      %706 = vst.msk [vmem:[%s702 + $0x21] sm:$0xff] %vm699, %v606
      %707 = vst.msk [vmem:[%s702 + $0x31] sm:$0xff] %vm699, %v607
      %708 = vst.msk [vmem:[%s702 + $0x39] sm:$0xff] %vm699, %v608
      %709 = vst.msk [vmem:[%s702 + $0x49] sm:$0xff] %vm699, %v609
      %710 = vst.msk [vmem:[%s702 + $0x51] sm:$0xff] %vm699, %v610
      %711 = vst.msk [vmem:[%s702 + $0x61] sm:$0xff] %vm699, %v611
      %712 = vst.msk [vmem:[%s702 + $0x69] sm:$0xff] %vm699, %v612
      %713 = vst.msk [vmem:[%s702 + $0x79] sm:$0xff] %vm699, %v613
      %714 = vst.msk [vmem:[%s702 + $0x81] sm:$0xff] %vm699, %v614
      %715 = vst.msk [vmem:[%s702 + $0x91] sm:$0xff] %vm699, %v615
      %716 = vst.msk [vmem:[%s702 + $0x99] sm:$0xff] %vm699, %v616
      %717 = vst.msk [vmem:[%s702 + $0xa9] sm:$0xff] %vm699, %v617
      %718 = vst.msk [vmem:[%s702 + $0xb1] sm:$0xff] %vm699, %v618
      %719 = vst.msk [vmem:[%s702 + $0xc1] sm:$0xff] %vm699, %v619
      %720 = vst.msk [vmem:[%s702 + $0xc9] sm:$0xff] %vm699, %v620
      %721 = vst.msk [vmem:[%s702 + $0xd9] sm:$0xff] %vm699, %v621
      %722 = vst.msk [vmem:[%s702 + $0xe1] sm:$0xff] %vm699, %v622
      %723 = vst.msk [vmem:[%s702 + $0xf1] sm:$0xff] %vm699, %v623
      %724 = vst.msk [vmem:[%s702 + $0xf9] sm:$0xff] %vm699, %v624
      %725 = vst.msk [vmem:[%s702 + $0x109] sm:$0xff] %vm699, %v625
      %726 = vst.msk [vmem:[%s702 + $0x111] sm:$0xff] %vm699, %v626
      %727 = vst.msk [vmem:[%s702 + $0x121] sm:$0xff] %vm699, %v627
      %728 = vst.msk [vmem:[%s702 + $0x129] sm:$0xff] %vm699, %v628
      %729 = vst.msk [vmem:[%s702 + $0x139] sm:$0xff] %vm699, %v629
      %730 = vst.msk [vmem:[%s702 + $0x141] sm:$0xff] %vm699, %v630
      %731 = vst.msk [vmem:[%s702 + $0x151] sm:$0xff] %vm699, %v631
      %732 = vst.msk [vmem:[%s702 + $0x159] sm:$0xff] %vm699, %v632
      %733 = vst.msk [vmem:[%s702 + $0x169] sm:$0xff] %vm699, %v633
      %734 = vst.msk [vmem:[%s702 + $0x171] sm:$0xff] %vm699, %v634
      %s735 = scalar_lea.vmem [#allocation2], 408
      %736 = vst.msk [vmem:[%s735 + $0x1] sm:$0xff] %vm699, %v660
      %737 = vst.msk [vmem:[%s735 + $0x9] sm:$0xff] %vm699, %v661
      %v738 = vld [vmem:[#allocation2] sm:$0xff]
      %v739 = vld [vmem:[#allocation2 + $0x8] sm:$0xff]
      %v740 = vld [vmem:[#allocation2 + $0x10] sm:$0x3]
      %v741 = vld [vmem:[#allocation2 + $0x18] sm:$0xff]
      %v742 = vld [vmem:[#allocation2 + $0x20] sm:$0xff]
      %v743 = vld [vmem:[#allocation2 + $0x28] sm:$0x3]
      %v744 = vld [vmem:[#allocation2 + $0x30] sm:$0xff]
      %v745 = vld [vmem:[#allocation2 + $0x38] sm:$0xff]
      %v746 = vld [vmem:[#allocation2 + $0x40] sm:$0x3]
      %v747 = vld [vmem:[#allocation2 + $0x48] sm:$0xff]
      %v748 = vld [vmem:[#allocation2 + $0x50] sm:$0xff]
      %v749 = vld [vmem:[#allocation2 + $0x58] sm:$0x3]
      %v750 = vld [vmem:[#allocation2 + $0x60] sm:$0xff]
      %v751 = vld [vmem:[#allocation2 + $0x68] sm:$0xff]
      %v752 = vld [vmem:[#allocation2 + $0x70] sm:$0x3]
      %v753 = vld [vmem:[#allocation2 + $0x78] sm:$0xff]
      %v754 = vld [vmem:[#allocation2 + $0x80] sm:$0xff]
      %v755 = vld [vmem:[#allocation2 + $0x88] sm:$0x3]
      %v756 = vld [vmem:[#allocation2 + $0x90] sm:$0xff]
      %v757 = vld [vmem:[#allocation2 + $0x98] sm:$0xff]
      %v758 = vld [vmem:[#allocation2 + $0xa0] sm:$0x3]
      %v759 = vld [vmem:[#allocation2 + $0xa8] sm:$0xff]
      %v760 = vld [vmem:[#allocation2 + $0xb0] sm:$0xff]
      %v761 = vld [vmem:[#allocation2 + $0xb8] sm:$0x3]
      %v762 = vld [vmem:[#allocation2 + $0xc0] sm:$0xff]
      %v763 = vld [vmem:[#allocation2 + $0xc8] sm:$0xff]
      %v764 = vld [vmem:[#allocation2 + $0xd0] sm:$0x3]
      %v765 = vld [vmem:[#allocation2 + $0xd8] sm:$0xff]
      %v766 = vld [vmem:[#allocation2 + $0xe0] sm:$0xff]
      %v767 = vld [vmem:[#allocation2 + $0xe8] sm:$0x3]
      %v768 = vld [vmem:[#allocation2 + $0xf0] sm:$0xff]
      %v769 = vld [vmem:[#allocation2 + $0xf8] sm:$0xff]
      %v770 = vld [vmem:[#allocation2 + $0x100] sm:$0x3]
      %v771 = vld [vmem:[#allocation2 + $0x108] sm:$0xff]
      %v772 = vld [vmem:[#allocation2 + $0x110] sm:$0xff]
      %v773 = vld [vmem:[#allocation2 + $0x118] sm:$0x3]
      %v774 = vld [vmem:[#allocation2 + $0x120] sm:$0xff]
      %v775 = vld [vmem:[#allocation2 + $0x128] sm:$0xff]
      %v776 = vld [vmem:[#allocation2 + $0x130] sm:$0x3]
      %v777 = vld [vmem:[#allocation2 + $0x138] sm:$0xff]
      %v778 = vld [vmem:[#allocation2 + $0x140] sm:$0xff]
      %v779 = vld [vmem:[#allocation2 + $0x148] sm:$0x3]
      %v780 = vld [vmem:[#allocation2 + $0x150] sm:$0xff]
      %v781 = vld [vmem:[#allocation2 + $0x158] sm:$0xff]
      %v782 = vld [vmem:[#allocation2 + $0x160] sm:$0x3]
      %v783 = vld [vmem:[#allocation2 + $0x168] sm:$0xff]
      %v784 = vld [vmem:[#allocation2 + $0x170] sm:$0xff]
      %v785 = vld [vmem:[#allocation2 + $0x178] sm:$0x3]
      %v786 = vld [vmem:[%s702] sm:$0xff]
      %v787 = vld [vmem:[%s702 + $0x8] sm:$0xff]
      %v788 = vld [vmem:[%s702 + $0x10] sm:$0x3]
      %v789 = vld [vmem:[%s702 + $0x18] sm:$0xff]
      %v790 = vld [vmem:[%s702 + $0x20] sm:$0xff]
      %v791 = vld [vmem:[%s702 + $0x28] sm:$0x3]
      %v792 = vld [vmem:[%s702 + $0x30] sm:$0xff]
      %v793 = vld [vmem:[%s702 + $0x38] sm:$0xff]
      %v794 = vld [vmem:[%s702 + $0x40] sm:$0x3]
      %v795 = vld [vmem:[%s702 + $0x48] sm:$0xff]
      %v796 = vld [vmem:[%s702 + $0x50] sm:$0xff]
      %v797 = vld [vmem:[%s702 + $0x58] sm:$0x3]
      %v798 = vld [vmem:[%s702 + $0x60] sm:$0xff]
      %v799 = vld [vmem:[%s702 + $0x68] sm:$0xff]
      %v800 = vld [vmem:[%s702 + $0x70] sm:$0x3]
      %v801 = vld [vmem:[%s702 + $0x78] sm:$0xff]
      %v802 = vld [vmem:[%s702 + $0x80] sm:$0xff]
      %v803 = vld [vmem:[%s702 + $0x88] sm:$0x3]
      %v804 = vld [vmem:[%s702 + $0x90] sm:$0xff]
      %v805 = vld [vmem:[%s702 + $0x98] sm:$0xff]
      %v806 = vld [vmem:[%s702 + $0xa0] sm:$0x3]
      %v807 = vld [vmem:[%s702 + $0xa8] sm:$0xff]
      %v808 = vld [vmem:[%s702 + $0xb0] sm:$0xff]
      %v809 = vld [vmem:[%s702 + $0xb8] sm:$0x3]
      %v810 = vld [vmem:[%s702 + $0xc0] sm:$0xff]
      %v811 = vld [vmem:[%s702 + $0xc8] sm:$0xff]
      %v812 = vld [vmem:[%s702 + $0xd0] sm:$0x3]
      %v813 = vld [vmem:[%s702 + $0xd8] sm:$0xff]
      %v814 = vld [vmem:[%s702 + $0xe0] sm:$0xff]
      %v815 = vld [vmem:[%s702 + $0xe8] sm:$0x3]
      %v816 = vld [vmem:[%s702 + $0xf0] sm:$0xff]
      %v817 = vld [vmem:[%s702 + $0xf8] sm:$0xff]
      %v818 = vld [vmem:[%s702 + $0x100] sm:$0x3]
      %v819 = vld [vmem:[%s702 + $0x108] sm:$0xff]
      %v820 = vld [vmem:[%s702 + $0x110] sm:$0xff]
      %v821 = vld [vmem:[%s702 + $0x118] sm:$0x3]
      %v822 = vld [vmem:[%s702 + $0x120] sm:$0xff]
      %v823 = vld [vmem:[%s702 + $0x128] sm:$0xff]
      %v824 = vld [vmem:[%s702 + $0x130] sm:$0x3]
      %v825 = vld [vmem:[%s702 + $0x138] sm:$0xff]
      %v826 = vld [vmem:[%s702 + $0x140] sm:$0xff]
      %v827 = vld [vmem:[%s702 + $0x148] sm:$0x3]
      %v828 = vld [vmem:[%s702 + $0x150] sm:$0xff]
      %v829 = vld [vmem:[%s702 + $0x158] sm:$0xff]
      %v830 = vld [vmem:[%s702 + $0x160] sm:$0x3]
      %v831 = vld [vmem:[%s702 + $0x168] sm:$0xff]
      %v832 = vld [vmem:[%s702 + $0x170] sm:$0xff]
      %v833 = vld [vmem:[%s702 + $0x178] sm:$0x3]
      %s834 = scalar_lea.vmem [#allocation2], 48
      %v835 = vld [vmem:[%s834] sm:$0xff]
      %v836 = vld [vmem:[%s834 + $0x8] sm:$0xff]
      %v837 = vld [vmem:[%s834 + $0x10] sm:$0x3]
      %v838 = vld [vmem:[%s834 + $0x18] sm:$0xff]
      %v839 = vld [vmem:[%s834 + $0x20] sm:$0xff]
      %v840 = vld [vmem:[%s834 + $0x28] sm:$0x3]
      %v841 = vld [vmem:[%s834 + $0x30] sm:$0xff]
      %v842 = vld [vmem:[%s834 + $0x38] sm:$0xff]
      %v843 = vld [vmem:[%s834 + $0x40] sm:$0x3]
      %v844 = vld [vmem:[%s834 + $0x48] sm:$0xff]
      %v845 = vld [vmem:[%s834 + $0x50] sm:$0xff]
      %v846 = vld [vmem:[%s834 + $0x58] sm:$0x3]
      %v847 = vld [vmem:[%s834 + $0x60] sm:$0xff]
      %v848 = vld [vmem:[%s834 + $0x68] sm:$0xff]
      %v849 = vld [vmem:[%s834 + $0x70] sm:$0x3]
      %v850 = vld [vmem:[%s834 + $0x78] sm:$0xff]
      %v851 = vld [vmem:[%s834 + $0x80] sm:$0xff]
      %v852 = vld [vmem:[%s834 + $0x88] sm:$0x3]
      %v853 = vld [vmem:[%s834 + $0x90] sm:$0xff]
      %v854 = vld [vmem:[%s834 + $0x98] sm:$0xff]
      %v855 = vld [vmem:[%s834 + $0xa0] sm:$0x3]
      %v856 = vld [vmem:[%s834 + $0xa8] sm:$0xff]
      %v857 = vld [vmem:[%s834 + $0xb0] sm:$0xff]
      %v858 = vld [vmem:[%s834 + $0xb8] sm:$0x3]
      %v859 = vld [vmem:[%s834 + $0xc0] sm:$0xff]
      %v860 = vld [vmem:[%s834 + $0xc8] sm:$0xff]
      %v861 = vld [vmem:[%s834 + $0xd0] sm:$0x3]
      %v862 = vld [vmem:[%s834 + $0xd8] sm:$0xff]
      %v863 = vld [vmem:[%s834 + $0xe0] sm:$0xff]
      %v864 = vld [vmem:[%s834 + $0xe8] sm:$0x3]
      %v865 = vld [vmem:[%s834 + $0xf0] sm:$0xff]
      %v866 = vld [vmem:[%s834 + $0xf8] sm:$0xff]
      %v867 = vld [vmem:[%s834 + $0x100] sm:$0x3]
      %v868 = vld [vmem:[%s834 + $0x108] sm:$0xff]
      %v869 = vld [vmem:[%s834 + $0x110] sm:$0xff]
      %v870 = vld [vmem:[%s834 + $0x118] sm:$0x3]
      %v871 = vld [vmem:[%s834 + $0x120] sm:$0xff]
      %v872 = vld [vmem:[%s834 + $0x128] sm:$0xff]
      %v873 = vld [vmem:[%s834 + $0x130] sm:$0x3]
      %v874 = vld [vmem:[%s834 + $0x138] sm:$0xff]
      %v875 = vld [vmem:[%s834 + $0x140] sm:$0xff]
      %v876 = vld [vmem:[%s834 + $0x148] sm:$0x3]
      %v877 = vld [vmem:[%s834 + $0x150] sm:$0xff]
      %v878 = vld [vmem:[%s834 + $0x158] sm:$0xff]
      %v879 = vld [vmem:[%s834 + $0x160] sm:$0x3]
      %v880 = vld [vmem:[%s834 + $0x168] sm:$0xff]
      %v881 = vld [vmem:[%s834 + $0x170] sm:$0xff]
      %v882 = vld [vmem:[%s834 + $0x178] sm:$0x3]
      %931 = vrot.lane.b32.xlu0 %v786, 8
      %v932 = vpop.permute.xlu0 %931
      %933 = vrot.lane.b32.xlu0 %v787, 8
      %v934 = vpop.permute.xlu0 %933
      %935 = vrot.lane.b32.xlu0 %v788, 8
      %v936 = vpop.permute.xlu0 %935
      %937 = vrot.lane.b32.xlu0 %v789, 8
      %v938 = vpop.permute.xlu0 %937
      %939 = vrot.lane.b32.xlu0 %v790, 8
      %v940 = vpop.permute.xlu0 %939
      %941 = vrot.lane.b32.xlu0 %v791, 8
      %v942 = vpop.permute.xlu0 %941
      %943 = vrot.lane.b32.xlu0 %v792, 8
      %v944 = vpop.permute.xlu0 %943
      %945 = vrot.lane.b32.xlu0 %v793, 8
      %v946 = vpop.permute.xlu0 %945
      %947 = vrot.lane.b32.xlu0 %v794, 8
      %v948 = vpop.permute.xlu0 %947
      %949 = vrot.lane.b32.xlu0 %v795, 8
      %v950 = vpop.permute.xlu0 %949
      %951 = vrot.lane.b32.xlu0 %v796, 8
      %v952 = vpop.permute.xlu0 %951
      %953 = vrot.lane.b32.xlu0 %v797, 8
      %v954 = vpop.permute.xlu0 %953
      %955 = vrot.lane.b32.xlu0 %v798, 8
      %v956 = vpop.permute.xlu0 %955
      %957 = vrot.lane.b32.xlu0 %v799, 8
      %v958 = vpop.permute.xlu0 %957
      %959 = vrot.lane.b32.xlu0 %v800, 8
      %v960 = vpop.permute.xlu0 %959
      %961 = vrot.lane.b32.xlu0 %v801, 8
      %v962 = vpop.permute.xlu0 %961
      %963 = vrot.lane.b32.xlu0 %v802, 8
      %v964 = vpop.permute.xlu0 %963
      %965 = vrot.lane.b32.xlu0 %v803, 8
      %v966 = vpop.permute.xlu0 %965
      %967 = vrot.lane.b32.xlu0 %v804, 8
      %v968 = vpop.permute.xlu0 %967
      %969 = vrot.lane.b32.xlu0 %v805, 8
      %v970 = vpop.permute.xlu0 %969
      %971 = vrot.lane.b32.xlu0 %v806, 8
      %v972 = vpop.permute.xlu0 %971
      %973 = vrot.lane.b32.xlu0 %v807, 8
      %v974 = vpop.permute.xlu0 %973
      %975 = vrot.lane.b32.xlu0 %v808, 8
      %v976 = vpop.permute.xlu0 %975
      %977 = vrot.lane.b32.xlu0 %v809, 8
      %v978 = vpop.permute.xlu0 %977
      %979 = vrot.lane.b32.xlu0 %v810, 8
      %v980 = vpop.permute.xlu0 %979
      %981 = vrot.lane.b32.xlu0 %v811, 8
      %v982 = vpop.permute.xlu0 %981
      %983 = vrot.lane.b32.xlu0 %v812, 8
      %v984 = vpop.permute.xlu0 %983
      %985 = vrot.lane.b32.xlu0 %v813, 8
      %v986 = vpop.permute.xlu0 %985
      %987 = vrot.lane.b32.xlu0 %v814, 8
      %v988 = vpop.permute.xlu0 %987
      %989 = vrot.lane.b32.xlu0 %v815, 8
      %v990 = vpop.permute.xlu0 %989
      %991 = vrot.lane.b32.xlu0 %v816, 8
      %v992 = vpop.permute.xlu0 %991
      %993 = vrot.lane.b32.xlu0 %v817, 8
      %v994 = vpop.permute.xlu0 %993
      %995 = vrot.lane.b32.xlu0 %v818, 8
      %v996 = vpop.permute.xlu0 %995
      %997 = vrot.lane.b32.xlu0 %v819, 8
      %v998 = vpop.permute.xlu0 %997
      %999 = vrot.lane.b32.xlu0 %v820, 8
      %v1000 = vpop.permute.xlu0 %999
      %1001 = vrot.lane.b32.xlu0 %v821, 8
      %v1002 = vpop.permute.xlu0 %1001
      %1003 = vrot.lane.b32.xlu0 %v822, 8
      %v1004 = vpop.permute.xlu0 %1003
      %1005 = vrot.lane.b32.xlu0 %v823, 8
      %v1006 = vpop.permute.xlu0 %1005
      %1007 = vrot.lane.b32.xlu0 %v824, 8
      %v1008 = vpop.permute.xlu0 %1007
      %1009 = vrot.lane.b32.xlu0 %v825, 8
      %v1010 = vpop.permute.xlu0 %1009
      %1011 = vrot.lane.b32.xlu0 %v826, 8
      %v1012 = vpop.permute.xlu0 %1011
      %1013 = vrot.lane.b32.xlu0 %v827, 8
      %v1014 = vpop.permute.xlu0 %1013
      %1015 = vrot.lane.b32.xlu0 %v828, 8
      %v1016 = vpop.permute.xlu0 %1015
      %1017 = vrot.lane.b32.xlu0 %v829, 8
      %v1018 = vpop.permute.xlu0 %1017
      %1019 = vrot.lane.b32.xlu0 %v830, 8
      %v1020 = vpop.permute.xlu0 %1019
      %1021 = vrot.lane.b32.xlu0 %v831, 8
      %v1022 = vpop.permute.xlu0 %1021
      %1023 = vrot.lane.b32.xlu0 %v832, 8
      %v1024 = vpop.permute.xlu0 %1023
      %1025 = vrot.lane.b32.xlu0 %v833, 8
      %v1026 = vpop.permute.xlu0 %1025
      %1123 = vrot.lane.b32.xlu0 %v835, 16
      %v1124 = vpop.permute.xlu0 %1123
      %1125 = vrot.lane.b32.xlu0 %v836, 16
      %v1126 = vpop.permute.xlu0 %1125
      %1127 = vrot.lane.b32.xlu0 %v837, 16
      %v1128 = vpop.permute.xlu0 %1127
      %1129 = vrot.lane.b32.xlu0 %v838, 16
      %v1130 = vpop.permute.xlu0 %1129
      %1131 = vrot.lane.b32.xlu0 %v839, 16
      %v1132 = vpop.permute.xlu0 %1131
      %1133 = vrot.lane.b32.xlu0 %v840, 16
      %v1134 = vpop.permute.xlu0 %1133
      %1135 = vrot.lane.b32.xlu0 %v841, 16
      %v1136 = vpop.permute.xlu0 %1135
      %1137 = vrot.lane.b32.xlu0 %v842, 16
      %v1138 = vpop.permute.xlu0 %1137
      %1139 = vrot.lane.b32.xlu0 %v843, 16
      %v1140 = vpop.permute.xlu0 %1139
      %1141 = vrot.lane.b32.xlu0 %v844, 16
      %v1142 = vpop.permute.xlu0 %1141
      %1143 = vrot.lane.b32.xlu0 %v845, 16
      %v1144 = vpop.permute.xlu0 %1143
      %1145 = vrot.lane.b32.xlu0 %v846, 16
      %v1146 = vpop.permute.xlu0 %1145
      %1147 = vrot.lane.b32.xlu0 %v847, 16
      %v1148 = vpop.permute.xlu0 %1147
      %1149 = vrot.lane.b32.xlu0 %v848, 16
      %v1150 = vpop.permute.xlu0 %1149
      %1151 = vrot.lane.b32.xlu0 %v849, 16
      %v1152 = vpop.permute.xlu0 %1151
      %1153 = vrot.lane.b32.xlu0 %v850, 16
      %v1154 = vpop.permute.xlu0 %1153
      %1155 = vrot.lane.b32.xlu0 %v851, 16
      %v1156 = vpop.permute.xlu0 %1155
      %1157 = vrot.lane.b32.xlu0 %v852, 16
      %v1158 = vpop.permute.xlu0 %1157
      %1159 = vrot.lane.b32.xlu0 %v853, 16
      %v1160 = vpop.permute.xlu0 %1159
      %1161 = vrot.lane.b32.xlu0 %v854, 16
      %v1162 = vpop.permute.xlu0 %1161
      %1163 = vrot.lane.b32.xlu0 %v855, 16
      %v1164 = vpop.permute.xlu0 %1163
      %1165 = vrot.lane.b32.xlu0 %v856, 16
      %v1166 = vpop.permute.xlu0 %1165
      %1167 = vrot.lane.b32.xlu0 %v857, 16
      %v1168 = vpop.permute.xlu0 %1167
      %1169 = vrot.lane.b32.xlu0 %v858, 16
      %v1170 = vpop.permute.xlu0 %1169
      %1171 = vrot.lane.b32.xlu0 %v859, 16
      %v1172 = vpop.permute.xlu0 %1171
      %1173 = vrot.lane.b32.xlu0 %v860, 16
      %v1174 = vpop.permute.xlu0 %1173
      %1175 = vrot.lane.b32.xlu0 %v861, 16
      %v1176 = vpop.permute.xlu0 %1175
      %1177 = vrot.lane.b32.xlu0 %v862, 16
      %v1178 = vpop.permute.xlu0 %1177
      %1179 = vrot.lane.b32.xlu0 %v863, 16
      %v1180 = vpop.permute.xlu0 %1179
      %1181 = vrot.lane.b32.xlu0 %v864, 16
      %v1182 = vpop.permute.xlu0 %1181
      %1183 = vrot.lane.b32.xlu0 %v865, 16
      %v1184 = vpop.permute.xlu0 %1183
      %1185 = vrot.lane.b32.xlu0 %v866, 16
      %v1186 = vpop.permute.xlu0 %1185
      %1187 = vrot.lane.b32.xlu0 %v867, 16
      %v1188 = vpop.permute.xlu0 %1187
      %1189 = vrot.lane.b32.xlu0 %v868, 16
      %v1190 = vpop.permute.xlu0 %1189
      %1191 = vrot.lane.b32.xlu0 %v869, 16
      %v1192 = vpop.permute.xlu0 %1191
      %1193 = vrot.lane.b32.xlu0 %v870, 16
      %v1194 = vpop.permute.xlu0 %1193
      %1195 = vrot.lane.b32.xlu0 %v871, 16
      %v1196 = vpop.permute.xlu0 %1195
      %1197 = vrot.lane.b32.xlu0 %v872, 16
      %v1198 = vpop.permute.xlu0 %1197
      %1199 = vrot.lane.b32.xlu0 %v873, 16
      %v1200 = vpop.permute.xlu0 %1199
      %1201 = vrot.lane.b32.xlu0 %v874, 16
      %v1202 = vpop.permute.xlu0 %1201
      %1203 = vrot.lane.b32.xlu0 %v875, 16
      %v1204 = vpop.permute.xlu0 %1203
      %1205 = vrot.lane.b32.xlu0 %v876, 16
      %v1206 = vpop.permute.xlu0 %1205
      %1207 = vrot.lane.b32.xlu0 %v877, 16
      %v1208 = vpop.permute.xlu0 %1207
      %1209 = vrot.lane.b32.xlu0 %v878, 16
      %v1210 = vpop.permute.xlu0 %1209
      %1211 = vrot.lane.b32.xlu0 %v879, 16
      %v1212 = vpop.permute.xlu0 %1211
      %1213 = vrot.lane.b32.xlu0 %v880, 16
      %v1214 = vpop.permute.xlu0 %1213
      %1215 = vrot.lane.b32.xlu0 %v881, 16
      %v1216 = vpop.permute.xlu0 %1215
      %1217 = vrot.lane.b32.xlu0 %v882, 16
      %v1218 = vpop.permute.xlu0 %1217
      %v1267 = vsel %vm699, %v738, %v932
      %v1268 = vsel %vm699, %v739, %v934
      %v1269 = vsel %vm699, %v740, %v936
      %v1270 = vsel %vm699, %v741, %v938
      %v1271 = vsel %vm699, %v742, %v940
      %v1272 = vsel %vm699, %v743, %v942
      %v1273 = vsel %vm699, %v744, %v944
      %v1274 = vsel %vm699, %v745, %v946
      %v1275 = vsel %vm699, %v746, %v948
      %v1276 = vsel %vm699, %v747, %v950
      %v1277 = vsel %vm699, %v748, %v952
      %v1278 = vsel %vm699, %v749, %v954
      %v1279 = vsel %vm699, %v750, %v956
      %v1280 = vsel %vm699, %v751, %v958
      %v1281 = vsel %vm699, %v752, %v960
      %v1282 = vsel %vm699, %v753, %v962
      %v1283 = vsel %vm699, %v754, %v964
      %v1284 = vsel %vm699, %v755, %v966
      %v1285 = vsel %vm699, %v756, %v968
      %v1286 = vsel %vm699, %v757, %v970
      %v1287 = vsel %vm699, %v758, %v972
      %v1288 = vsel %vm699, %v759, %v974
      %v1289 = vsel %vm699, %v760, %v976
      %v1290 = vsel %vm699, %v761, %v978
      %v1291 = vsel %vm699, %v762, %v980
      %v1292 = vsel %vm699, %v763, %v982
      %v1293 = vsel %vm699, %v764, %v984
      %v1294 = vsel %vm699, %v765, %v986
      %v1295 = vsel %vm699, %v766, %v988
      %v1296 = vsel %vm699, %v767, %v990
      %v1297 = vsel %vm699, %v768, %v992
      %v1298 = vsel %vm699, %v769, %v994
      %v1299 = vsel %vm699, %v770, %v996
      %v1300 = vsel %vm699, %v771, %v998
      %v1301 = vsel %vm699, %v772, %v1000
      %v1302 = vsel %vm699, %v773, %v1002
      %v1303 = vsel %vm699, %v774, %v1004
      %v1304 = vsel %vm699, %v775, %v1006
      %v1305 = vsel %vm699, %v776, %v1008
      %v1306 = vsel %vm699, %v777, %v1010
      %v1307 = vsel %vm699, %v778, %v1012
      %v1308 = vsel %vm699, %v779, %v1014
      %v1309 = vsel %vm699, %v780, %v1016
      %v1310 = vsel %vm699, %v781, %v1018
      %v1311 = vsel %vm699, %v782, %v1020
      %v1312 = vsel %vm699, %v783, %v1022
      %v1313 = vsel %vm699, %v784, %v1024
      %v1314 = vsel %vm699, %v785, %v1026
      %vm1315 = vcmask 130048
      %v1316 = vsel %vm1315, %v1267, %v1124
      %v1317 = vsel %vm1315, %v1268, %v1126
      %v1318 = vsel %vm1315, %v1269, %v1128
      %v1319 = vsel %vm1315, %v1270, %v1130
      %v1320 = vsel %vm1315, %v1271, %v1132
      %v1321 = vsel %vm1315, %v1272, %v1134
      %v1322 = vsel %vm1315, %v1273, %v1136
      %v1323 = vsel %vm1315, %v1274, %v1138
      %v1324 = vsel %vm1315, %v1275, %v1140
      %v1325 = vsel %vm1315, %v1276, %v1142
      %v1326 = vsel %vm1315, %v1277, %v1144
      %v1327 = vsel %vm1315, %v1278, %v1146
      %v1328 = vsel %vm1315, %v1279, %v1148
      %v1329 = vsel %vm1315, %v1280, %v1150
      %v1330 = vsel %vm1315, %v1281, %v1152
      %v1331 = vsel %vm1315, %v1282, %v1154
      %v1332 = vsel %vm1315, %v1283, %v1156
      %v1333 = vsel %vm1315, %v1284, %v1158
      %v1334 = vsel %vm1315, %v1285, %v1160
      %v1335 = vsel %vm1315, %v1286, %v1162
      %v1336 = vsel %vm1315, %v1287, %v1164
      %v1337 = vsel %vm1315, %v1288, %v1166
      %v1338 = vsel %vm1315, %v1289, %v1168
      %v1339 = vsel %vm1315, %v1290, %v1170
      %v1340 = vsel %vm1315, %v1291, %v1172
      %v1341 = vsel %vm1315, %v1292, %v1174
      %v1342 = vsel %vm1315, %v1293, %v1176
      %v1343 = vsel %vm1315, %v1294, %v1178
      %v1344 = vsel %vm1315, %v1295, %v1180
      %v1345 = vsel %vm1315, %v1296, %v1182
      %v1346 = vsel %vm1315, %v1297, %v1184
      %v1347 = vsel %vm1315, %v1298, %v1186
      %v1348 = vsel %vm1315, %v1299, %v1188
      %v1349 = vsel %vm1315, %v1300, %v1190
      %v1350 = vsel %vm1315, %v1301, %v1192
      %v1351 = vsel %vm1315, %v1302, %v1194
      %v1352 = vsel %vm1315, %v1303, %v1196
      %v1353 = vsel %vm1315, %v1304, %v1198
      %v1354 = vsel %vm1315, %v1305, %v1200
      %v1355 = vsel %vm1315, %v1306, %v1202
      %v1356 = vsel %vm1315, %v1307, %v1204
      %v1357 = vsel %vm1315, %v1308, %v1206
      %v1358 = vsel %vm1315, %v1309, %v1208
      %v1359 = vsel %vm1315, %v1310, %v1210
      %v1360 = vsel %vm1315, %v1311, %v1212
      %v1361 = vsel %vm1315, %v1312, %v1214
      %v1362 = vsel %vm1315, %v1313, %v1216
      %v1363 = vsel %vm1315, %v1314, %v1218
      %vm1412 = vcmask 1046528
      %v1413 = vrot.slane %v1316, 1
      %v1414 = vrot.slane %v1317, 1
      %v1415 = vsel %vm1412, %v1413, %v1414
      %v1416 = vrot.slane %v1318, 1
      %v1417 = vsel %vm1412, %v1414, %v1416
      %v1418 = vrot.slane %v1319, 1
      %v1419 = vrot.slane %v1320, 1
      %v1420 = vsel %vm1412, %v1418, %v1419
      %v1421 = vrot.slane %v1321, 1
      %v1422 = vsel %vm1412, %v1419, %v1421
      %v1423 = vrot.slane %v1322, 1
      %v1424 = vrot.slane %v1323, 1
      %v1425 = vsel %vm1412, %v1423, %v1424
      %v1426 = vrot.slane %v1324, 1
      %v1427 = vsel %vm1412, %v1424, %v1426
      %v1428 = vrot.slane %v1325, 1
      %v1429 = vrot.slane %v1326, 1
      %v1430 = vsel %vm1412, %v1428, %v1429
      %v1431 = vrot.slane %v1327, 1
      %v1432 = vsel %vm1412, %v1429, %v1431
      %v1433 = vrot.slane %v1328, 1
      %v1434 = vrot.slane %v1329, 1
      %v1435 = vsel %vm1412, %v1433, %v1434
      %v1436 = vrot.slane %v1330, 1
      %v1437 = vsel %vm1412, %v1434, %v1436
      %v1438 = vrot.slane %v1331, 1
      %v1439 = vrot.slane %v1332, 1
      %v1440 = vsel %vm1412, %v1438, %v1439
      %v1441 = vrot.slane %v1333, 1
      %v1442 = vsel %vm1412, %v1439, %v1441
      %v1443 = vrot.slane %v1334, 1
      %v1444 = vrot.slane %v1335, 1
      %v1445 = vsel %vm1412, %v1443, %v1444
      %v1446 = vrot.slane %v1336, 1
      %v1447 = vsel %vm1412, %v1444, %v1446
      %v1448 = vrot.slane %v1337, 1
      %v1449 = vrot.slane %v1338, 1
      %v1450 = vsel %vm1412, %v1448, %v1449
      %v1451 = vrot.slane %v1339, 1
      %v1452 = vsel %vm1412, %v1449, %v1451
      %v1453 = vrot.slane %v1340, 1
      %v1454 = vrot.slane %v1341, 1
      %v1455 = vsel %vm1412, %v1453, %v1454
      %v1456 = vrot.slane %v1342, 1
      %v1457 = vsel %vm1412, %v1454, %v1456
      %v1458 = vrot.slane %v1343, 1
      %v1459 = vrot.slane %v1344, 1
      %v1460 = vsel %vm1412, %v1458, %v1459
      %v1461 = vrot.slane %v1345, 1
      %v1462 = vsel %vm1412, %v1459, %v1461
      %v1463 = vrot.slane %v1346, 1
      %v1464 = vrot.slane %v1347, 1
      %v1465 = vsel %vm1412, %v1463, %v1464
      %v1466 = vrot.slane %v1348, 1
      %v1467 = vsel %vm1412, %v1464, %v1466
      %v1468 = vrot.slane %v1349, 1
      %v1469 = vrot.slane %v1350, 1
      %v1470 = vsel %vm1412, %v1468, %v1469
      %v1471 = vrot.slane %v1351, 1
      %v1472 = vsel %vm1412, %v1469, %v1471
      %v1473 = vrot.slane %v1352, 1
      %v1474 = vrot.slane %v1353, 1
      %v1475 = vsel %vm1412, %v1473, %v1474
      %v1476 = vrot.slane %v1354, 1
      %v1477 = vsel %vm1412, %v1474, %v1476
      %v1478 = vrot.slane %v1355, 1
      %v1479 = vrot.slane %v1356, 1
      %v1480 = vsel %vm1412, %v1478, %v1479
      %v1481 = vrot.slane %v1357, 1
      %v1482 = vsel %vm1412, %v1479, %v1481
      %v1483 = vrot.slane %v1358, 1
      %v1484 = vrot.slane %v1359, 1
      %v1485 = vsel %vm1412, %v1483, %v1484
      %v1486 = vrot.slane %v1360, 1
      %v1487 = vsel %vm1412, %v1484, %v1486
      %v1488 = vrot.slane %v1361, 1
      %v1489 = vrot.slane %v1362, 1
      %v1490 = vsel %vm1412, %v1488, %v1489
      %v1491 = vrot.slane %v1363, 1
      %v1492 = vsel %vm1412, %v1489, %v1491
      %1493 = vrot.lane.b32.xlu0 %v1415, 24
      %v1494 = vpop.permute.xlu0 %1493
      %1495 = vrot.lane.b32.xlu0 %v1417, 24
      %v1496 = vpop.permute.xlu0 %1495
      %1497 = vrot.lane.b32.xlu0 %v1420, 24
      %v1498 = vpop.permute.xlu0 %1497
      %1499 = vrot.lane.b32.xlu0 %v1422, 24
      %v1500 = vpop.permute.xlu0 %1499
      %1501 = vrot.lane.b32.xlu0 %v1425, 24
      %v1502 = vpop.permute.xlu0 %1501
      %1503 = vrot.lane.b32.xlu0 %v1427, 24
      %v1504 = vpop.permute.xlu0 %1503
      %1505 = vrot.lane.b32.xlu0 %v1430, 24
      %v1506 = vpop.permute.xlu0 %1505
      %1507 = vrot.lane.b32.xlu0 %v1432, 24
      %v1508 = vpop.permute.xlu0 %1507
      %1509 = vrot.lane.b32.xlu0 %v1435, 24
      %v1510 = vpop.permute.xlu0 %1509
      %1511 = vrot.lane.b32.xlu0 %v1437, 24
      %v1512 = vpop.permute.xlu0 %1511
      %1513 = vrot.lane.b32.xlu0 %v1440, 24
      %v1514 = vpop.permute.xlu0 %1513
      %1515 = vrot.lane.b32.xlu0 %v1442, 24
      %v1516 = vpop.permute.xlu0 %1515
      %1517 = vrot.lane.b32.xlu0 %v1445, 24
      %v1518 = vpop.permute.xlu0 %1517
      %1519 = vrot.lane.b32.xlu0 %v1447, 24
      %v1520 = vpop.permute.xlu0 %1519
      %1521 = vrot.lane.b32.xlu0 %v1450, 24
      %v1522 = vpop.permute.xlu0 %1521
      %1523 = vrot.lane.b32.xlu0 %v1452, 24
      %v1524 = vpop.permute.xlu0 %1523
      %1525 = vrot.lane.b32.xlu0 %v1455, 24
      %v1526 = vpop.permute.xlu0 %1525
      %1527 = vrot.lane.b32.xlu0 %v1457, 24
      %v1528 = vpop.permute.xlu0 %1527
      %1529 = vrot.lane.b32.xlu0 %v1460, 24
      %v1530 = vpop.permute.xlu0 %1529
      %1531 = vrot.lane.b32.xlu0 %v1462, 24
      %v1532 = vpop.permute.xlu0 %1531
      %1533 = vrot.lane.b32.xlu0 %v1465, 24
      %v1534 = vpop.permute.xlu0 %1533
      %1535 = vrot.lane.b32.xlu0 %v1467, 24
      %v1536 = vpop.permute.xlu0 %1535
      %1537 = vrot.lane.b32.xlu0 %v1470, 24
      %v1538 = vpop.permute.xlu0 %1537
      %1539 = vrot.lane.b32.xlu0 %v1472, 24
      %v1540 = vpop.permute.xlu0 %1539
      %1541 = vrot.lane.b32.xlu0 %v1475, 24
      %v1542 = vpop.permute.xlu0 %1541
      %1543 = vrot.lane.b32.xlu0 %v1477, 24
      %v1544 = vpop.permute.xlu0 %1543
      %1545 = vrot.lane.b32.xlu0 %v1480, 24
      %v1546 = vpop.permute.xlu0 %1545
      %1547 = vrot.lane.b32.xlu0 %v1482, 24
      %v1548 = vpop.permute.xlu0 %1547
      %1549 = vrot.lane.b32.xlu0 %v1485, 24
      %v1550 = vpop.permute.xlu0 %1549
      %1551 = vrot.lane.b32.xlu0 %v1487, 24
      %v1552 = vpop.permute.xlu0 %1551
      %1553 = vrot.lane.b32.xlu0 %v1490, 24
      %v1554 = vpop.permute.xlu0 %1553
      %1555 = vrot.lane.b32.xlu0 %v1492, 24
      %v1556 = vpop.permute.xlu0 %1555
      %vm1589 = vcmask 1045504
      %v1590 = vrot.slane %v1316, 2
      %v1591 = vrot.slane %v1317, 2
      %v1592 = vsel %vm1589, %v1590, %v1591
      %v1593 = vrot.slane %v1318, 2
      %v1594 = vsel %vm1589, %v1591, %v1593
      %v1595 = vrot.slane %v1319, 2
      %v1596 = vrot.slane %v1320, 2
      %v1597 = vsel %vm1589, %v1595, %v1596
      %v1598 = vrot.slane %v1321, 2
      %v1599 = vsel %vm1589, %v1596, %v1598
      %v1600 = vrot.slane %v1322, 2
      %v1601 = vrot.slane %v1323, 2
      %v1602 = vsel %vm1589, %v1600, %v1601
      %v1603 = vrot.slane %v1324, 2
      %v1604 = vsel %vm1589, %v1601, %v1603
      %v1605 = vrot.slane %v1325, 2
      %v1606 = vrot.slane %v1326, 2
      %v1607 = vsel %vm1589, %v1605, %v1606
      %v1608 = vrot.slane %v1327, 2
      %v1609 = vsel %vm1589, %v1606, %v1608
      %v1610 = vrot.slane %v1328, 2
      %v1611 = vrot.slane %v1329, 2
      %v1612 = vsel %vm1589, %v1610, %v1611
      %v1613 = vrot.slane %v1330, 2
      %v1614 = vsel %vm1589, %v1611, %v1613
      %v1615 = vrot.slane %v1331, 2
      %v1616 = vrot.slane %v1332, 2
      %v1617 = vsel %vm1589, %v1615, %v1616
      %v1618 = vrot.slane %v1333, 2
      %v1619 = vsel %vm1589, %v1616, %v1618
      %v1620 = vrot.slane %v1334, 2
      %v1621 = vrot.slane %v1335, 2
      %v1622 = vsel %vm1589, %v1620, %v1621
      %v1623 = vrot.slane %v1336, 2
      %v1624 = vsel %vm1589, %v1621, %v1623
      %v1625 = vrot.slane %v1337, 2
      %v1626 = vrot.slane %v1338, 2
      %v1627 = vsel %vm1589, %v1625, %v1626
      %v1628 = vrot.slane %v1339, 2
      %v1629 = vsel %vm1589, %v1626, %v1628
      %v1630 = vrot.slane %v1340, 2
      %v1631 = vrot.slane %v1341, 2
      %v1632 = vsel %vm1589, %v1630, %v1631
      %v1633 = vrot.slane %v1342, 2
      %v1634 = vsel %vm1589, %v1631, %v1633
      %v1635 = vrot.slane %v1343, 2
      %v1636 = vrot.slane %v1344, 2
      %v1637 = vsel %vm1589, %v1635, %v1636
      %v1638 = vrot.slane %v1345, 2
      %v1639 = vsel %vm1589, %v1636, %v1638
      %v1640 = vrot.slane %v1346, 2
      %v1641 = vrot.slane %v1347, 2
      %v1642 = vsel %vm1589, %v1640, %v1641
      %v1643 = vrot.slane %v1348, 2
      %v1644 = vsel %vm1589, %v1641, %v1643
      %v1645 = vrot.slane %v1349, 2
      %v1646 = vrot.slane %v1350, 2
      %v1647 = vsel %vm1589, %v1645, %v1646
      %v1648 = vrot.slane %v1351, 2
      %v1649 = vsel %vm1589, %v1646, %v1648
      %v1650 = vrot.slane %v1352, 2
      %v1651 = vrot.slane %v1353, 2
      %v1652 = vsel %vm1589, %v1650, %v1651
      %v1653 = vrot.slane %v1354, 2
      %v1654 = vsel %vm1589, %v1651, %v1653
      %v1655 = vrot.slane %v1355, 2
      %v1656 = vrot.slane %v1356, 2
      %v1657 = vsel %vm1589, %v1655, %v1656
      %v1658 = vrot.slane %v1357, 2
      %v1659 = vsel %vm1589, %v1656, %v1658
      %v1660 = vrot.slane %v1358, 2
      %v1661 = vrot.slane %v1359, 2
      %v1662 = vsel %vm1589, %v1660, %v1661
      %v1663 = vrot.slane %v1360, 2
      %v1664 = vsel %vm1589, %v1661, %v1663
      %v1665 = vrot.slane %v1361, 2
      %v1666 = vrot.slane %v1362, 2
      %v1667 = vsel %vm1589, %v1665, %v1666
      %v1668 = vrot.slane %v1363, 2
      %v1669 = vsel %vm1589, %v1666, %v1668
      %1670 = vrot.lane.b32.xlu0 %v1592, 48
      %v1671 = vpop.permute.xlu0 %1670
      %1672 = vrot.lane.b32.xlu0 %v1594, 48
      %v1673 = vpop.permute.xlu0 %1672
      %1674 = vrot.lane.b32.xlu0 %v1597, 48
      %v1675 = vpop.permute.xlu0 %1674
      %1676 = vrot.lane.b32.xlu0 %v1599, 48
      %v1677 = vpop.permute.xlu0 %1676
      %1678 = vrot.lane.b32.xlu0 %v1602, 48
      %v1679 = vpop.permute.xlu0 %1678
      %1680 = vrot.lane.b32.xlu0 %v1604, 48
      %v1681 = vpop.permute.xlu0 %1680
      %1682 = vrot.lane.b32.xlu0 %v1607, 48
      %v1683 = vpop.permute.xlu0 %1682
      %1684 = vrot.lane.b32.xlu0 %v1609, 48
      %v1685 = vpop.permute.xlu0 %1684
      %1686 = vrot.lane.b32.xlu0 %v1612, 48
      %v1687 = vpop.permute.xlu0 %1686
      %1688 = vrot.lane.b32.xlu0 %v1614, 48
      %v1689 = vpop.permute.xlu0 %1688
      %1690 = vrot.lane.b32.xlu0 %v1617, 48
      %v1691 = vpop.permute.xlu0 %1690
      %1692 = vrot.lane.b32.xlu0 %v1619, 48
      %v1693 = vpop.permute.xlu0 %1692
      %1694 = vrot.lane.b32.xlu0 %v1622, 48
      %v1695 = vpop.permute.xlu0 %1694
      %1696 = vrot.lane.b32.xlu0 %v1624, 48
      %v1697 = vpop.permute.xlu0 %1696
      %1698 = vrot.lane.b32.xlu0 %v1627, 48
      %v1699 = vpop.permute.xlu0 %1698
      %1700 = vrot.lane.b32.xlu0 %v1629, 48
      %v1701 = vpop.permute.xlu0 %1700
      %1702 = vrot.lane.b32.xlu0 %v1632, 48
      %v1703 = vpop.permute.xlu0 %1702
      %1704 = vrot.lane.b32.xlu0 %v1634, 48
      %v1705 = vpop.permute.xlu0 %1704
      %1706 = vrot.lane.b32.xlu0 %v1637, 48
      %v1707 = vpop.permute.xlu0 %1706
      %1708 = vrot.lane.b32.xlu0 %v1639, 48
      %v1709 = vpop.permute.xlu0 %1708
      %1710 = vrot.lane.b32.xlu0 %v1642, 48
      %v1711 = vpop.permute.xlu0 %1710
      %1712 = vrot.lane.b32.xlu0 %v1644, 48
      %v1713 = vpop.permute.xlu0 %1712
      %1714 = vrot.lane.b32.xlu0 %v1647, 48
      %v1715 = vpop.permute.xlu0 %1714
      %1716 = vrot.lane.b32.xlu0 %v1649, 48
      %v1717 = vpop.permute.xlu0 %1716
      %1718 = vrot.lane.b32.xlu0 %v1652, 48
      %v1719 = vpop.permute.xlu0 %1718
      %1720 = vrot.lane.b32.xlu0 %v1654, 48
      %v1721 = vpop.permute.xlu0 %1720
      %1722 = vrot.lane.b32.xlu0 %v1657, 48
      %v1723 = vpop.permute.xlu0 %1722
      %1724 = vrot.lane.b32.xlu0 %v1659, 48
      %v1725 = vpop.permute.xlu0 %1724
      %1726 = vrot.lane.b32.xlu0 %v1662, 48
      %v1727 = vpop.permute.xlu0 %1726
      %1728 = vrot.lane.b32.xlu0 %v1664, 48
      %v1729 = vpop.permute.xlu0 %1728
      %1730 = vrot.lane.b32.xlu0 %v1667, 48
      %v1731 = vpop.permute.xlu0 %1730
      %1732 = vrot.lane.b32.xlu0 %v1669, 48
      %v1733 = vpop.permute.xlu0 %1732
      %vm1766 = vcmask 195584
      %v1767 = vsel %vm1766, %v1316, %v1494
      %v1768 = vsel %vm1766, %v1317, %v1496
      %v1769 = vsel %vm1766, %v1319, %v1498
      %v1770 = vsel %vm1766, %v1320, %v1500
      %v1771 = vsel %vm1766, %v1322, %v1502
      %v1772 = vsel %vm1766, %v1323, %v1504
      %v1773 = vsel %vm1766, %v1325, %v1506
      %v1774 = vsel %vm1766, %v1326, %v1508
      %v1775 = vsel %vm1766, %v1328, %v1510
      %v1776 = vsel %vm1766, %v1329, %v1512
      %v1777 = vsel %vm1766, %v1331, %v1514
      %v1778 = vsel %vm1766, %v1332, %v1516
      %v1779 = vsel %vm1766, %v1334, %v1518
      %v1780 = vsel %vm1766, %v1335, %v1520
      %v1781 = vsel %vm1766, %v1337, %v1522
      %v1782 = vsel %vm1766, %v1338, %v1524
      %v1783 = vsel %vm1766, %v1340, %v1526
      %v1784 = vsel %vm1766, %v1341, %v1528
      %v1785 = vsel %vm1766, %v1343, %v1530
      %v1786 = vsel %vm1766, %v1344, %v1532
      %v1787 = vsel %vm1766, %v1346, %v1534
      %v1788 = vsel %vm1766, %v1347, %v1536
      %v1789 = vsel %vm1766, %v1349, %v1538
      %v1790 = vsel %vm1766, %v1350, %v1540
      %v1791 = vsel %vm1766, %v1352, %v1542
      %v1792 = vsel %vm1766, %v1353, %v1544
      %v1793 = vsel %vm1766, %v1355, %v1546
      %v1794 = vsel %vm1766, %v1356, %v1548
      %v1795 = vsel %vm1766, %v1358, %v1550
      %v1796 = vsel %vm1766, %v1359, %v1552
      %v1797 = vsel %vm1766, %v1361, %v1554
      %v1798 = vsel %vm1766, %v1362, %v1556
      %vm1799 = vcmask 392192
      %v1800 = vsel %vm1799, %v1767, %v1671
      %v1801 = vsel %vm1799, %v1768, %v1673
      %v1802 = vsel %vm1799, %v1769, %v1675
      %v1803 = vsel %vm1799, %v1770, %v1677
      %v1804 = vsel %vm1799, %v1771, %v1679
      %v1805 = vsel %vm1799, %v1772, %v1681
      %v1806 = vsel %vm1799, %v1773, %v1683
      %v1807 = vsel %vm1799, %v1774, %v1685
      %v1808 = vsel %vm1799, %v1775, %v1687
      %v1809 = vsel %vm1799, %v1776, %v1689
      %v1810 = vsel %vm1799, %v1777, %v1691
      %v1811 = vsel %vm1799, %v1778, %v1693
      %v1812 = vsel %vm1799, %v1779, %v1695
      %v1813 = vsel %vm1799, %v1780, %v1697
      %v1814 = vsel %vm1799, %v1781, %v1699
      %v1815 = vsel %vm1799, %v1782, %v1701
      %v1816 = vsel %vm1799, %v1783, %v1703
      %v1817 = vsel %vm1799, %v1784, %v1705
      %v1818 = vsel %vm1799, %v1785, %v1707
      %v1819 = vsel %vm1799, %v1786, %v1709
      %v1820 = vsel %vm1799, %v1787, %v1711
      %v1821 = vsel %vm1799, %v1788, %v1713
      %v1822 = vsel %vm1799, %v1789, %v1715
      %v1823 = vsel %vm1799, %v1790, %v1717
      %v1824 = vsel %vm1799, %v1791, %v1719
      %v1825 = vsel %vm1799, %v1792, %v1721
      %v1826 = vsel %vm1799, %v1793, %v1723
      %v1827 = vsel %vm1799, %v1794, %v1725
      %v1828 = vsel %vm1799, %v1795, %v1727
      %v1829 = vsel %vm1799, %v1796, %v1729
      %v1830 = vsel %vm1799, %v1797, %v1731
      %v1831 = vsel %vm1799, %v1798, %v1733
      %v1832 = vld [vmem:[%s8] sm:$0xff]
      %v1833 = vld [vmem:[%s8 + $0x8] sm:$0xff]
      %v1834 = vld [vmem:[%s8 + $0x10] sm:$0xff]
      %v1835 = vld [vmem:[%s8 + $0x18] sm:$0xff]
      %v1836 = vld [vmem:[%s8 + $0x20] sm:$0xff]
      %v1837 = vld [vmem:[%s8 + $0x28] sm:$0xff]
      %v1838 = vld [vmem:[%s8 + $0x30] sm:$0xff]
      %v1839 = vld [vmem:[%s8 + $0x38] sm:$0xff]
      %v1840 = vld [vmem:[%s8 + $0x40] sm:$0xff]
      %vm1841 = vcmask 588800
      %v1843 = vsel %vm1841, %v1800, 0
      %v1846 = vsel %vm1841, %v1801, 0
      %v1849 = vsel %vm1841, %v1802, 0
      %v1852 = vsel %vm1841, %v1803, 0
      %v1855 = vsel %vm1841, %v1804, 0
      %v1858 = vsel %vm1841, %v1805, 0
      %v1861 = vsel %vm1841, %v1806, 0
      %v1864 = vsel %vm1841, %v1807, 0
      %v1867 = vsel %vm1841, %v1808, 0
      %v1870 = vsel %vm1841, %v1809, 0
      %v1873 = vsel %vm1841, %v1810, 0
      %v1876 = vsel %vm1841, %v1811, 0
      %v1879 = vsel %vm1841, %v1812, 0
      %v1882 = vsel %vm1841, %v1813, 0
      %v1885 = vsel %vm1841, %v1814, 0
      %v1888 = vsel %vm1841, %v1815, 0
      %v1891 = vsel %vm1841, %v1816, 0
      %v1894 = vsel %vm1841, %v1817, 0
      %v1897 = vsel %vm1841, %v1818, 0
      %v1900 = vsel %vm1841, %v1819, 0
      %v1903 = vsel %vm1841, %v1820, 0
      %v1906 = vsel %vm1841, %v1821, 0
      %v1909 = vsel %vm1841, %v1822, 0
      %v1912 = vsel %vm1841, %v1823, 0
      %v1915 = vsel %vm1841, %v1824, 0
      %v1918 = vsel %vm1841, %v1825, 0
      %v1921 = vsel %vm1841, %v1826, 0
      %v1924 = vsel %vm1841, %v1827, 0
      %v1927 = vsel %vm1841, %v1828, 0
      %v1930 = vsel %vm1841, %v1829, 0
      %v1933 = vsel %vm1841, %v1830, 0
      %v1936 = vsel %vm1841, %v1831, 0
      %1938 = vmatprep.subr.mxu0 0.0
      %1939 = vmatpush1.msra.mxu0 %v1832
      %1940 = vmatprep.subr.mxu0 0.0
      %1941 = vmatpush1.msra.mxu0 %v1833
      %1942 = vmatprep.subr.mxu0 0.0
      %1943 = vmatpush1.msra.mxu0 %v1834
      %1944 = vmatprep.subr.mxu0 0.0
      %1945 = vmatpush1.msra.mxu0 %v1835
      %1946 = vmatprep.subr.mxu0 0.0
      %1947 = vmatpush1.msra.mxu0 %v1836
      %1948 = vmatprep.subr.mxu0 0.0
      %1949 = vmatpush1.msra.mxu0 %v1837
      %1950 = vmatprep.subr.mxu0 0.0
      %1951 = vmatpush1.msra.mxu0 %v1838
      %1952 = vmatprep.subr.mxu0 0.0
      %1953 = vmatpush1.msra.mxu0 %v1839
      %1954 = vmatprep.subr.mxu0 0.0
      %1955 = vmatpush1.msra.mxu0 %v1840
      %1956 = vmatprep.subr.mxu0 0.0
      %1957 = vmatpush1.msra.mxu0 0.0
      %1958 = vmatprep.subr.mxu0 0.0
      %1959 = vmatpush1.msra.mxu0 0.0
      %1960 = vmatprep.subr.mxu0 0.0
      %1961 = vmatpush1.msra.mxu0 0.0
      %1962 = vmatprep.subr.mxu0 0.0
      %1963 = vmatpush1.msra.mxu0 0.0
      %1964 = vmatprep.subr.mxu0 0.0
      %1965 = vmatpush1.msra.mxu0 0.0
      %1966 = vmatprep.subr.mxu0 0.0
      %1967 = vmatpush1.msra.mxu0 0.0
      %1968 = vmatprep.subr.mxu0 0.0
      %1969 = vmatpush1.msra.mxu0 0.0
      %1970 = vmatprep.subr.mxu0 0.0
      %1971 = vmatpush1.msra.mxu0 0.0
      %1972 = vmatprep.subr.mxu0 0.0
      %1973 = vmatpush1.msra.mxu0 0.0
      %1974 = vmatprep.subr.mxu0 0.0
      %1975 = vmatpush1.msra.mxu0 0.0
      %1976 = vmatprep.subr.mxu0 0.0
      %1977 = vmatpush1.msra.mxu0 0.0
      %1978 = vmatprep.subr.mxu0 0.0
      %1979 = vmatpush1.msra.mxu0 0.0
      %1980 = vmatprep.subr.mxu0 0.0
      %1981 = vmatpush1.msra.mxu0 0.0
      %1982 = vmatprep.subr.mxu0 0.0
      %1983 = vmatpush1.msra.mxu0 0.0
      %1984 = vmatprep.subr.mxu0 0.0
      %1985 = vmatpush1.msra.mxu0 0.0
      %1986 = vmatprep.subr.mxu0 0.0
      %1987 = vmatpush1.msra.mxu0 0.0
      %1988 = vmatprep.subr.mxu0 0.0
      %1989 = vmatpush1.msra.mxu0 0.0
      %1990 = vmatprep.subr.mxu0 0.0
      %1991 = vmatpush1.msra.mxu0 0.0
      %1992 = vmatprep.subr.mxu0 0.0
      %1993 = vmatpush1.msra.mxu0 0.0
      %1994 = vmatprep.subr.mxu0 0.0
      %1995 = vmatpush1.msra.mxu0 0.0
      %1996 = vmatprep.subr.mxu0 0.0
      %1997 = vmatpush1.msra.mxu0 0.0
      %1998 = vmatprep.subr.mxu0 0.0
      %1999 = vmatpush1.msra.mxu0 0.0
      %2000 = vmatprep.subr.mxu0 0.0
      %2001 = vmatpush1.msra.mxu0 0.0
      %2002 = vmatprep.mubr.f32.mxu0 0.0
      %2003 = vmatmul.mubr.f32.gmra.mrb[0].mxu0 %v1843
      %v2004 = vpop.f32.mrb[0].mxu0
      %v2005 = vadd.f32 0.0, %v2004
      %v2006 = vpop.f32.mrb[0].mxu0
      %2007 = vmatprep.mubr.f32.mxu0 0.0
      %2008 = vmatmul.mubr.f32.gmra.mrb[0].mxu0 %v1846
      %v2009 = vpop.f32.mrb[0].mxu0
      %v2010 = vadd.f32 0.0, %v2009
      %v2011 = vpop.f32.mrb[0].mxu0
      %2012 = vmatprep.mubr.f32.mxu0 0.0
      %2013 = vmatmul.mubr.f32.gmra.mrb[0].mxu0 %v1849
      %v2014 = vpop.f32.mrb[0].mxu0
      %v2015 = vadd.f32 0.0, %v2014
      %v2016 = vpop.f32.mrb[0].mxu0
      %2017 = vmatprep.mubr.f32.mxu0 0.0
      %2018 = vmatmul.mubr.f32.gmra.mrb[0].mxu0 %v1852
      %v2019 = vpop.f32.mrb[0].mxu0
      %v2020 = vadd.f32 0.0, %v2019
      %v2021 = vpop.f32.mrb[0].mxu0
      %2022 = vmatprep.mubr.f32.mxu0 0.0
      %2023 = vmatmul.mubr.f32.gmra.mrb[0].mxu0 %v1855
      %v2024 = vpop.f32.mrb[0].mxu0
      %v2025 = vadd.f32 0.0, %v2024
      %v2026 = vpop.f32.mrb[0].mxu0
      %2027 = vmatprep.mubr.f32.mxu0 0.0
      %2028 = vmatmul.mubr.f32.gmra.mrb[0].mxu0 %v1858
      %v2029 = vpop.f32.mrb[0].mxu0
      %v2030 = vadd.f32 0.0, %v2029
      %v2031 = vpop.f32.mrb[0].mxu0
      %2032 = vmatprep.mubr.f32.mxu0 0.0
      %2033 = vmatmul.mubr.f32.gmra.mrb[0].mxu0 %v1861
      %v2034 = vpop.f32.mrb[0].mxu0
      %v2035 = vadd.f32 0.0, %v2034
      %v2036 = vpop.f32.mrb[0].mxu0
      %2037 = vmatprep.mubr.f32.mxu0 0.0
      %2038 = vmatmul.mubr.f32.gmra.mrb[0].mxu0 %v1864
      %v2039 = vpop.f32.mrb[0].mxu0
      %v2040 = vadd.f32 0.0, %v2039
      %v2041 = vpop.f32.mrb[0].mxu0
      %2042 = vmatprep.mubr.f32.mxu0 0.0
      %2043 = vmatmul.mubr.f32.gmra.mrb[0].mxu0 %v1867
      %v2044 = vpop.f32.mrb[0].mxu0
      %v2045 = vadd.f32 0.0, %v2044
      %v2046 = vpop.f32.mrb[0].mxu0
      %2047 = vmatprep.mubr.f32.mxu0 0.0
      %2048 = vmatmul.mubr.f32.gmra.mrb[0].mxu0 %v1870
      %v2049 = vpop.f32.mrb[0].mxu0
      %v2050 = vadd.f32 0.0, %v2049
      %v2051 = vpop.f32.mrb[0].mxu0
      %2052 = vmatprep.mubr.f32.mxu0 0.0
      %2053 = vmatmul.mubr.f32.gmra.mrb[0].mxu0 %v1873
      %v2054 = vpop.f32.mrb[0].mxu0
      %v2055 = vadd.f32 0.0, %v2054
      %v2056 = vpop.f32.mrb[0].mxu0
      %2057 = vmatprep.mubr.f32.mxu0 0.0
      %2058 = vmatmul.mubr.f32.gmra.mrb[0].mxu0 %v1876
      %v2059 = vpop.f32.mrb[0].mxu0
      %v2060 = vadd.f32 0.0, %v2059
      %v2061 = vpop.f32.mrb[0].mxu0
      %2062 = vmatprep.mubr.f32.mxu0 0.0
      %2063 = vmatmul.mubr.f32.gmra.mrb[0].mxu0 %v1879
      %v2064 = vpop.f32.mrb[0].mxu0
      %v2065 = vadd.f32 0.0, %v2064
      %v2066 = vpop.f32.mrb[0].mxu0
      %2067 = vmatprep.mubr.f32.mxu0 0.0
      %2068 = vmatmul.mubr.f32.gmra.mrb[0].mxu0 %v1882
      %v2069 = vpop.f32.mrb[0].mxu0
      %v2070 = vadd.f32 0.0, %v2069
      %v2071 = vpop.f32.mrb[0].mxu0
      %2072 = vmatprep.mubr.f32.mxu0 0.0
      %2073 = vmatmul.mubr.f32.gmra.mrb[0].mxu0 %v1885
      %v2074 = vpop.f32.mrb[0].mxu0
      %v2075 = vadd.f32 0.0, %v2074
      %v2076 = vpop.f32.mrb[0].mxu0
      %2077 = vmatprep.mubr.f32.mxu0 0.0
      %2078 = vmatmul.mubr.f32.gmra.mrb[0].mxu0 %v1888
      %v2079 = vpop.f32.mrb[0].mxu0
      %v2080 = vadd.f32 0.0, %v2079
      %v2081 = vpop.f32.mrb[0].mxu0
      %2082 = vmatprep.mubr.f32.mxu0 0.0
      %2083 = vmatmul.mubr.f32.gmra.mrb[0].mxu0 %v1891
      %v2084 = vpop.f32.mrb[0].mxu0
      %v2085 = vadd.f32 0.0, %v2084
      %v2086 = vpop.f32.mrb[0].mxu0
      %2087 = vmatprep.mubr.f32.mxu0 0.0
      %2088 = vmatmul.mubr.f32.gmra.mrb[0].mxu0 %v1894
      %v2089 = vpop.f32.mrb[0].mxu0
      %v2090 = vadd.f32 0.0, %v2089
      %v2091 = vpop.f32.mrb[0].mxu0
      %2092 = vmatprep.mubr.f32.mxu0 0.0
      %2093 = vmatmul.mubr.f32.gmra.mrb[0].mxu0 %v1897
      %v2094 = vpop.f32.mrb[0].mxu0
      %v2095 = vadd.f32 0.0, %v2094
      %v2096 = vpop.f32.mrb[0].mxu0
      %2097 = vmatprep.mubr.f32.mxu0 0.0
      %2098 = vmatmul.mubr.f32.gmra.mrb[0].mxu0 %v1900
      %v2099 = vpop.f32.mrb[0].mxu0
      %v2100 = vadd.f32 0.0, %v2099
      %v2101 = vpop.f32.mrb[0].mxu0
      %2102 = vmatprep.mubr.f32.mxu0 0.0
      %2103 = vmatmul.mubr.f32.gmra.mrb[0].mxu0 %v1903
      %v2104 = vpop.f32.mrb[0].mxu0
      %v2105 = vadd.f32 0.0, %v2104
      %v2106 = vpop.f32.mrb[0].mxu0
      %2107 = vmatprep.mubr.f32.mxu0 0.0
      %2108 = vmatmul.mubr.f32.gmra.mrb[0].mxu0 %v1906
      %v2109 = vpop.f32.mrb[0].mxu0
      %v2110 = vadd.f32 0.0, %v2109
      %v2111 = vpop.f32.mrb[0].mxu0
      %2112 = vmatprep.mubr.f32.mxu0 0.0
      %2113 = vmatmul.mubr.f32.gmra.mrb[0].mxu0 %v1909
      %v2114 = vpop.f32.mrb[0].mxu0
      %v2115 = vadd.f32 0.0, %v2114
      %v2116 = vpop.f32.mrb[0].mxu0
      %2117 = vmatprep.mubr.f32.mxu0 0.0
      %2118 = vmatmul.mubr.f32.gmra.mrb[0].mxu0 %v1912
      %v2119 = vpop.f32.mrb[0].mxu0
      %v2120 = vadd.f32 0.0, %v2119
      %v2121 = vpop.f32.mrb[0].mxu0
      %2122 = vmatprep.mubr.f32.mxu0 0.0
      %2123 = vmatmul.mubr.f32.gmra.mrb[0].mxu0 %v1915
      %v2124 = vpop.f32.mrb[0].mxu0
      %v2125 = vadd.f32 0.0, %v2124
      %v2126 = vpop.f32.mrb[0].mxu0
      %2127 = vmatprep.mubr.f32.mxu0 0.0
      %2128 = vmatmul.mubr.f32.gmra.mrb[0].mxu0 %v1918
      %v2129 = vpop.f32.mrb[0].mxu0
      %v2130 = vadd.f32 0.0, %v2129
      %v2131 = vpop.f32.mrb[0].mxu0
      %2132 = vmatprep.mubr.f32.mxu0 0.0
      %2133 = vmatmul.mubr.f32.gmra.mrb[0].mxu0 %v1921
      %v2134 = vpop.f32.mrb[0].mxu0
      %v2135 = vadd.f32 0.0, %v2134
      %v2136 = vpop.f32.mrb[0].mxu0
      %2137 = vmatprep.mubr.f32.mxu0 0.0
      %2138 = vmatmul.mubr.f32.gmra.mrb[0].mxu0 %v1924
      %v2139 = vpop.f32.mrb[0].mxu0
      %v2140 = vadd.f32 0.0, %v2139
      %v2141 = vpop.f32.mrb[0].mxu0
      %2142 = vmatprep.mubr.f32.mxu0 0.0
      %2143 = vmatmul.mubr.f32.gmra.mrb[0].mxu0 %v1927
      %v2144 = vpop.f32.mrb[0].mxu0
      %v2145 = vadd.f32 0.0, %v2144
      %v2146 = vpop.f32.mrb[0].mxu0
      %2147 = vmatprep.mubr.f32.mxu0 0.0
      %2148 = vmatmul.mubr.f32.gmra.mrb[0].mxu0 %v1930
      %v2149 = vpop.f32.mrb[0].mxu0
      %v2150 = vadd.f32 0.0, %v2149
      %v2151 = vpop.f32.mrb[0].mxu0
      %2152 = vmatprep.mubr.f32.mxu0 0.0
      %2153 = vmatmul.mubr.f32.gmra.mrb[0].mxu0 %v1933
      %v2154 = vpop.f32.mrb[0].mxu0
      %v2155 = vadd.f32 0.0, %v2154
      %v2156 = vpop.f32.mrb[0].mxu0
      %2157 = vmatprep.mubr.f32.mxu0 0.0
      %2158 = vmatmul.mubr.f32.gmra.mrb[0].mxu0 %v1936
      %v2159 = vpop.f32.mrb[0].mxu0
      %v2160 = vadd.f32 0.0, %v2159
      %v2161 = vpop.f32.mrb[0].mxu0
      %2162 = vdwg.mxu0
      %v2163 = vsel %vm1315, %v2005, 0.0
      %v2164 = vsel %vm1315, %v2010, 0.0
      %v2165 = vadd.f32 %v2163, %v2164
      %v2166 = vsel %vm1315, %v2015, 0.0
      %v2167 = vadd.f32 %v2165, %v2166
      %v2168 = vsel %vm1315, %v2020, 0.0
      %v2169 = vadd.f32 %v2167, %v2168
      %v2170 = vsel %vm1315, %v2025, 0.0
      %v2171 = vadd.f32 %v2169, %v2170
      %v2172 = vsel %vm1315, %v2030, 0.0
      %v2173 = vadd.f32 %v2171, %v2172
      %v2174 = vsel %vm1315, %v2035, 0.0
      %v2175 = vadd.f32 %v2173, %v2174
      %v2176 = vsel %vm1315, %v2040, 0.0
      %v2177 = vadd.f32 %v2175, %v2176
      %v2178 = vsel %vm1315, %v2045, 0.0
      %v2179 = vadd.f32 %v2177, %v2178
      %v2180 = vsel %vm1315, %v2050, 0.0
      %v2181 = vadd.f32 %v2179, %v2180
      %v2182 = vsel %vm1315, %v2055, 0.0
      %v2183 = vadd.f32 %v2181, %v2182
      %v2184 = vsel %vm1315, %v2060, 0.0
      %v2185 = vadd.f32 %v2183, %v2184
      %v2186 = vsel %vm1315, %v2065, 0.0
      %v2187 = vadd.f32 %v2185, %v2186
      %v2188 = vsel %vm1315, %v2070, 0.0
      %v2189 = vadd.f32 %v2187, %v2188
      %v2190 = vsel %vm1315, %v2075, 0.0
      %v2191 = vadd.f32 %v2189, %v2190
      %v2192 = vsel %vm1315, %v2080, 0.0
      %v2193 = vadd.f32 %v2191, %v2192
      %v2194 = vsel %vm1315, %v2085, 0.0
      %v2195 = vadd.f32 %v2193, %v2194
      %v2196 = vsel %vm1315, %v2090, 0.0
      %v2197 = vadd.f32 %v2195, %v2196
      %v2198 = vsel %vm1315, %v2095, 0.0
      %v2199 = vadd.f32 %v2197, %v2198
      %v2200 = vsel %vm1315, %v2100, 0.0
      %v2201 = vadd.f32 %v2199, %v2200
      %v2202 = vsel %vm1315, %v2105, 0.0
      %v2203 = vadd.f32 %v2201, %v2202
      %v2204 = vsel %vm1315, %v2110, 0.0
      %v2205 = vadd.f32 %v2203, %v2204
      %v2206 = vsel %vm1315, %v2115, 0.0
      %v2207 = vadd.f32 %v2205, %v2206
      %v2208 = vsel %vm1315, %v2120, 0.0
      %v2209 = vadd.f32 %v2207, %v2208
      %v2210 = vsel %vm1315, %v2125, 0.0
      %v2211 = vadd.f32 %v2209, %v2210
      %v2212 = vsel %vm1315, %v2130, 0.0
      %v2213 = vadd.f32 %v2211, %v2212
      %v2214 = vsel %vm1315, %v2135, 0.0
      %v2215 = vadd.f32 %v2213, %v2214
      %v2216 = vsel %vm1315, %v2140, 0.0
      %v2217 = vadd.f32 %v2215, %v2216
      %v2218 = vsel %vm1315, %v2145, 0.0
      %v2219 = vadd.f32 %v2217, %v2218
      %v2220 = vsel %vm1315, %v2150, 0.0
      %v2221 = vadd.f32 %v2219, %v2220
      %v2222 = vsel %vm1315, %v2155, 0.0
      %v2223 = vadd.f32 %v2221, %v2222
      %v2224 = vsel %vm1315, %v2160, 0.0
      %v2225 = vadd.f32 %v2223, %v2224
      %v2226 = vrot.slane %v2225, 4
      %v2227 = vadd.f32 %v2225, %v2226
      %v2228 = vrot.slane %v2227, 2
      %v2229 = vadd.f32 %v2227, %v2228
      %v2230 = vrot.slane %v2229, 1
      %v2231 = vadd.f32 %v2229, %v2230
      %v2232 = vmul.f32 %v2005, %v2005
      %v2233 = vmul.f32 %v2010, %v2010
      %v2234 = vmul.f32 %v2015, %v2015
      %v2235 = vmul.f32 %v2020, %v2020
      %v2236 = vmul.f32 %v2025, %v2025
      %v2237 = vmul.f32 %v2030, %v2030
      %v2238 = vmul.f32 %v2035, %v2035
      %v2239 = vmul.f32 %v2040, %v2040
      %v2240 = vmul.f32 %v2045, %v2045
      %v2241 = vmul.f32 %v2050, %v2050
      %v2242 = vmul.f32 %v2055, %v2055
      %v2243 = vmul.f32 %v2060, %v2060
      %v2244 = vmul.f32 %v2065, %v2065
      %v2245 = vmul.f32 %v2070, %v2070
      %v2246 = vmul.f32 %v2075, %v2075
      %v2247 = vmul.f32 %v2080, %v2080
      %v2248 = vmul.f32 %v2085, %v2085
      %v2249 = vmul.f32 %v2090, %v2090
      %v2250 = vmul.f32 %v2095, %v2095
      %v2251 = vmul.f32 %v2100, %v2100
      %v2252 = vmul.f32 %v2105, %v2105
      %v2253 = vmul.f32 %v2110, %v2110
      %v2254 = vmul.f32 %v2115, %v2115
      %v2255 = vmul.f32 %v2120, %v2120
      %v2256 = vmul.f32 %v2125, %v2125
      %v2257 = vmul.f32 %v2130, %v2130
      %v2258 = vmul.f32 %v2135, %v2135
      %v2259 = vmul.f32 %v2140, %v2140
      %v2260 = vmul.f32 %v2145, %v2145
      %v2261 = vmul.f32 %v2150, %v2150
      %v2262 = vmul.f32 %v2155, %v2155
      %v2263 = vmul.f32 %v2160, %v2160
      %v2264 = vsel %vm1315, %v2232, 0.0
      %v2265 = vsel %vm1315, %v2233, 0.0
      %v2266 = vadd.f32 %v2264, %v2265
      %v2267 = vsel %vm1315, %v2234, 0.0
      %v2268 = vadd.f32 %v2266, %v2267
      %v2269 = vsel %vm1315, %v2235, 0.0
      %v2270 = vadd.f32 %v2268, %v2269
      %v2271 = vsel %vm1315, %v2236, 0.0
      %v2272 = vadd.f32 %v2270, %v2271
      %v2273 = vsel %vm1315, %v2237, 0.0
      %v2274 = vadd.f32 %v2272, %v2273
      %v2275 = vsel %vm1315, %v2238, 0.0
      %v2276 = vadd.f32 %v2274, %v2275
      %v2277 = vsel %vm1315, %v2239, 0.0
      %v2278 = vadd.f32 %v2276, %v2277
      %v2279 = vsel %vm1315, %v2240, 0.0
      %v2280 = vadd.f32 %v2278, %v2279
      %v2281 = vsel %vm1315, %v2241, 0.0
      %v2282 = vadd.f32 %v2280, %v2281
      %v2283 = vsel %vm1315, %v2242, 0.0
      %v2284 = vadd.f32 %v2282, %v2283
      %v2285 = vsel %vm1315, %v2243, 0.0
      %v2286 = vadd.f32 %v2284, %v2285
      %v2287 = vsel %vm1315, %v2244, 0.0
      %v2288 = vadd.f32 %v2286, %v2287
      %v2289 = vsel %vm1315, %v2245, 0.0
      %v2290 = vadd.f32 %v2288, %v2289
      %v2291 = vsel %vm1315, %v2246, 0.0
      %v2292 = vadd.f32 %v2290, %v2291
      %v2293 = vsel %vm1315, %v2247, 0.0
      %v2294 = vadd.f32 %v2292, %v2293
      %v2295 = vsel %vm1315, %v2248, 0.0
      %v2296 = vadd.f32 %v2294, %v2295
      %v2297 = vsel %vm1315, %v2249, 0.0
      %v2298 = vadd.f32 %v2296, %v2297
      %v2299 = vsel %vm1315, %v2250, 0.0
      %v2300 = vadd.f32 %v2298, %v2299
      %v2301 = vsel %vm1315, %v2251, 0.0
      %v2302 = vadd.f32 %v2300, %v2301
      %v2303 = vsel %vm1315, %v2252, 0.0
      %v2304 = vadd.f32 %v2302, %v2303
      %v2305 = vsel %vm1315, %v2253, 0.0
      %v2306 = vadd.f32 %v2304, %v2305
      %v2307 = vsel %vm1315, %v2254, 0.0
      %v2308 = vadd.f32 %v2306, %v2307
      %v2309 = vsel %vm1315, %v2255, 0.0
      %v2310 = vadd.f32 %v2308, %v2309
      %v2311 = vsel %vm1315, %v2256, 0.0
      %v2312 = vadd.f32 %v2310, %v2311
      %v2313 = vsel %vm1315, %v2257, 0.0
      %v2314 = vadd.f32 %v2312, %v2313
      %v2315 = vsel %vm1315, %v2258, 0.0
      %v2316 = vadd.f32 %v2314, %v2315
      %v2317 = vsel %vm1315, %v2259, 0.0
      %v2318 = vadd.f32 %v2316, %v2317
      %v2319 = vsel %vm1315, %v2260, 0.0
      %v2320 = vadd.f32 %v2318, %v2319
      %v2321 = vsel %vm1315, %v2261, 0.0
      %v2322 = vadd.f32 %v2320, %v2321
      %v2323 = vsel %vm1315, %v2262, 0.0
      %v2324 = vadd.f32 %v2322, %v2323
      %v2325 = vsel %vm1315, %v2263, 0.0
      %v2326 = vadd.f32 %v2324, %v2325
      %v2327 = vrot.slane %v2326, 4
      %v2328 = vadd.f32 %v2326, %v2327
      %v2329 = vrot.slane %v2328, 2
      %v2330 = vadd.f32 %v2328, %v2329
      %v2331 = vrot.slane %v2330, 1
      %v2332 = vadd.f32 %v2330, %v2331
      %vm2333 = vcmask 1040384
      %v2334 = vsel %vm2333, %v2231, %v2332
      %vm2335 = vcmask 123904
      %2336 = vst.msk [vmem:[%s454] sm:$0x3] %vm2335, %v2334
      %2337 = vst.msk [vmem:[%s446] sm:$0xff] %vm1315, %v2005
      %2338 = vst.msk [vmem:[%s446 + $0x8] sm:$0xff] %vm1315, %v2010
      %2339 = vst.msk [vmem:[%s446 + $0x10] sm:$0xff] %vm1315, %v2015
      %2340 = vst.msk [vmem:[%s446 + $0x18] sm:$0xff] %vm1315, %v2020
      %2341 = vst.msk [vmem:[%s446 + $0x20] sm:$0xff] %vm1315, %v2025
      %2342 = vst.msk [vmem:[%s446 + $0x28] sm:$0xff] %vm1315, %v2030
      %2343 = vst.msk [vmem:[%s446 + $0x30] sm:$0xff] %vm1315, %v2035
      %2344 = vst.msk [vmem:[%s446 + $0x38] sm:$0xff] %vm1315, %v2040
      %2345 = vst.msk [vmem:[%s446 + $0x40] sm:$0xff] %vm1315, %v2045
      %2346 = vst.msk [vmem:[%s446 + $0x48] sm:$0xff] %vm1315, %v2050
      %2347 = vst.msk [vmem:[%s446 + $0x50] sm:$0xff] %vm1315, %v2055
      %2348 = vst.msk [vmem:[%s446 + $0x58] sm:$0xff] %vm1315, %v2060
      %2349 = vst.msk [vmem:[%s446 + $0x60] sm:$0xff] %vm1315, %v2065
      %2350 = vst.msk [vmem:[%s446 + $0x68] sm:$0xff] %vm1315, %v2070
      %2351 = vst.msk [vmem:[%s446 + $0x70] sm:$0xff] %vm1315, %v2075
      %2352 = vst.msk [vmem:[%s446 + $0x78] sm:$0xff] %vm1315, %v2080
      %2353 = vst.msk [vmem:[%s446 + $0x80] sm:$0xff] %vm1315, %v2085
      %2354 = vst.msk [vmem:[%s446 + $0x88] sm:$0xff] %vm1315, %v2090
      %2355 = vst.msk [vmem:[%s446 + $0x90] sm:$0xff] %vm1315, %v2095
      %2356 = vst.msk [vmem:[%s446 + $0x98] sm:$0xff] %vm1315, %v2100
      %2357 = vst.msk [vmem:[%s446 + $0xa0] sm:$0xff] %vm1315, %v2105
      %2358 = vst.msk [vmem:[%s446 + $0xa8] sm:$0xff] %vm1315, %v2110
      %2359 = vst.msk [vmem:[%s446 + $0xb0] sm:$0xff] %vm1315, %v2115
      %2360 = vst.msk [vmem:[%s446 + $0xb8] sm:$0xff] %vm1315, %v2120
      %2361 = vst.msk [vmem:[%s446 + $0xc0] sm:$0xff] %vm1315, %v2125
      %2362 = vst.msk [vmem:[%s446 + $0xc8] sm:$0xff] %vm1315, %v2130
      %2363 = vst.msk [vmem:[%s446 + $0xd0] sm:$0xff] %vm1315, %v2135
      %2364 = vst.msk [vmem:[%s446 + $0xd8] sm:$0xff] %vm1315, %v2140
      %2365 = vst.msk [vmem:[%s446 + $0xe0] sm:$0xff] %vm1315, %v2145
      %2366 = vst.msk [vmem:[%s446 + $0xe8] sm:$0xff] %vm1315, %v2150
      %2367 = vst.msk [vmem:[%s446 + $0xf0] sm:$0xff] %vm1315, %v2155
      %2368 = vst.msk [vmem:[%s446 + $0xf8] sm:$0xff] %vm1315, %v2160
      %s2369 = smul.u32 16, %s29
      %p2370 = scmp.lt.s32.totalorder %s28, 1
      %s2371 = scalar_select %p2370, %s28, 1
      %p2372 = scmp.lt.s32.totalorder %s2369, 15
      %s2373 = scalar_select %p2372, %s2369, 15
      %s2374 = smul.addr %s2373, 2
      %s2375 = smul.addr %s2371, 32
      %s2376 = sadd.s32 %s2374, %s2375
      %s2377 = smul.addr %s2376, 8
      %s2378 = scalar_lea.vmem %s9, %s2377
      %p2379 = scmp.lt.s32.totalorder %s28, 1
      %s2380 = scalar_select %p2379, %s28, 1
      %p2381 = scmp.lt.s32.totalorder %s29, 0
      %s2382 = scalar_select %p2381, %s29, 0
      %s2383 = sadd.s32 %s2382, %s2380
      %s2384 = smul.addr %s2383, 2
      %s2385 = scalar_lea.vmem %s10, %s2384
      // Predicated region
      $region49: #{up_forward.4} parent=47 // pred_check
        %p2386 = pneg %p228
      $region50: #{up_forward.4} parent=47 // pred_check_branch
        %2388 = sbr.rel (%p2386) target = $region52
      $region51: #{up_forward.4} parent=47 // pred_region
        %s2389 = smul.u32 16, %s29
      $region52: #{up_forward.4} parent=47 // pred_fallthru
        _
      // Predicated region
      $region53: #{up_forward.4} parent=47 // pred_check
        %p2390 = pneg %p256
      $region54: #{up_forward.4} parent=47 // pred_check_branch
        %2392 = sbr.rel (%p2390) target = $region56
      $region55: #{up_forward.4} parent=47 // pred_region
        _
      $region56: #{up_forward.4} parent=47 // pred_fallthru
        _
    $region48: #{up_forward.4} parent=5 // pred_fallthru
      _
    %p2393 = scmp.le.s32.totalorder 2, %s19
    // Predicated region
    $region57: #{up_forward.4} parent=5 // pred_check
      %p2394 = pneg %p2393
    $region58: #{up_forward.4} parent=5 // pred_check_branch
      %2396 = sbr.rel (%p2394) target = $region60
    $region59: #{up_forward.4} parent=5 // pred_region
      %s2397 = ssub.s32 %s19, 2
      // Predicated region
      $region61: #{up_forward.4} parent=59 // pred_check
        %p2398 = pneg %p234
      $region62: #{up_forward.4} parent=59 // pred_check_branch
        %2400 = sbr.rel (%p2398) target = $region64
      $region63: #{up_forward.4} parent=59 // pred_region
        %s2401 = smul.u32 16, %s31
        %p2402 = scmp.lt.s32.totalorder %s30, 1
        %s2403 = scalar_select %p2402, %s30, 1
        %p2404 = scmp.lt.s32.totalorder %s2401, 15
        %s2405 = scalar_select %p2404, %s2401, 15
        %s2406 = smul.addr %s2405, 2
        %s2407 = smul.addr %s2403, 32
        %s2408 = sadd.s32 %s2406, %s2407
        %s2409 = smul.addr %s2408, 8
        %s2410 = scalar_lea.vmem %s9, %s2409
      $region64: #{up_forward.4} parent=59 // pred_fallthru
        _
      // Predicated region
      $region65: #{up_forward.4} parent=59 // pred_check
        %p2411 = pneg %p262
      $region66: #{up_forward.4} parent=59 // pred_check_branch
        %2413 = sbr.rel (%p2411) target = $region68
      $region67: #{up_forward.4} parent=59 // pred_region
        %p2414 = scmp.lt.s32.totalorder %s30, 1
        %s2415 = scalar_select %p2414, %s30, 1
        %p2416 = scmp.lt.s32.totalorder %s31, 0
        %s2417 = scalar_select %p2416, %s31, 0
        %s2418 = sadd.s32 %s2417, %s2415
        %s2419 = smul.addr %s2418, 2
        %s2420 = scalar_lea.vmem %s10, %s2419
      $region68: #{up_forward.4} parent=59 // pred_fallthru
        _
    $region60: #{up_forward.4} parent=5 // pred_fallthru
      _
  $region6: #{up_forward.4} parent=0 // loop_footer
    %s23 = sadd.s32 1, %s19
  $region7: #{up_forward.4} parent=0 // loop_footer_branch
    %18 = sbr.rel target = $region3
  $region8: #{up_forward.4} parent=0 // loop_exit
    _

// kernel: up_forward.3
$region0: #{up_forward.3}
  #allocation0 [shape = 'u32[]', space=smem, size = 0x4, offset = 0x4, fixed_abs, tag = 'smem constant byte address 0x4 - core index']
  #allocation1 [shape = 'u32[144,128]{1,0:T(1,128)}', space=vmem, size = 0x12000, scoped, tag = 'internal scratch']
  #allocation2 [shape = 'f32[18,18,16]{2,1,0:T(8,128)}', space=vmem, size = 0x36000, scoped, tag = 'scratch operand']
  %s0 = inlined_call_operand.vmem [shape: f32[2,18,18,16], index: 0, kind: input, shape index: {}, may-alias: {0,1,2}]
  %s1 = inlined_call_operand.vmem [shape: f32[2,18,18,16], index: 1, kind: input, shape index: {}, may-alias: {0,1,2}]
  %s2 = inlined_call_operand.vmem [shape: f32[2,18,18,16], index: 2, kind: input, shape index: {}, may-alias: {0,1,2}]
  %s3 = inlined_call_operand.vmem [shape: f32[144,8], index: 3, kind: input, shape index: {}]
  %s4 = inlined_call_operand.vmem [shape: f32[2,16,16,8], index: 4, kind: output, shape index: {0}]
  %s5 = inlined_call_operand.vmem [shape: f32[2,1,2,8], index: 5, kind: output, shape index: {1}]
  %6 = xla_tuple %s4, %s5
  %s7 = sld [smem:[#allocation0]]
  $region57: #{up_forward.3} parent=0
    _
  %s9 = ssub.s32 1, %s7
  %s10 = scalar_select 0, %s9, %s7
  loop: start=0, step=1, limit=4
  $region2: #{up_forward.3} parent=0 // loop_pre_header
    _
  $region3: #{up_forward.3} parent=0 // loop_header
    %s12 = sphi 0, %s16
    %p13 = scmp.ge.s32.totalorder %s12, 4
    %s19 = sphi 0, %s31
    %s20 = sphi 0, %s27
    %s21 = sphi 0, %s19
    %s22 = sphi 0, %s20
    %s23 = sphi 0, %s21
    %s24 = sphi 0, %s22
    %s36 = sphi 0, %s38
    %s39 = sphi 0, %s36
    %s40 = sphi 0, %s39
    %s56 = sphi 0, %s40
    %s68 = sphi 0, %s70
    %s71 = sphi 0, %s68
    %s72 = sphi 0, %s71
    %s88 = sphi 0, %s72
    %s102 = sphi 0, %s104
    %s105 = sphi 0, %s102
    %s106 = sphi 0, %s105
    %s122 = sphi 0, %s106
    %s126 = sphi 0, %s126
    %s128 = sphi 0, %s126
    %s129 = sphi 0, %s128
    %s143 = sphi 0, %s129
    %s151 = sphi 0, %s153
    %s154 = sphi 0, %s151
    %s155 = sphi 0, %s154
    %s171 = sphi 0, %s155
    %s179 = sphi 0, %s181
    %s182 = sphi 0, %s179
    %s183 = sphi 0, %s182
    %s199 = sphi 0, %s183
  $region4: #{up_forward.3} parent=0 // loop_header_branch
    %15 = sbr.rel (%p13) target = $region8
  $region5: #{up_forward.3} parent=0 // loop_body
    %s17 = ssub.s32 %s12, 1
    %s18 = ssub.s32 %s12, 2
    %s25 = sadd.s32 1, %s20
    %p26 = scmp.ge.s32.totalorder %s25, 1
    %s27 = scalar_select %p26, 0, %s25
    %s28 = sadd.s32 1, %s19
    %s29 = scalar_select %p26, %s28, %s19
    %p30 = scmp.ge.s32.totalorder %s29, 2
    %s31 = scalar_select %p30, 0, %s29
    %s32 = ssub.s32 %s19, %s31
    %s33 = ssub.s32 %s20, %s27
    %s34 = sor.u32 %s32, %s33
    %p35 = scmp.eq.s32.totalorder %s34, 0
    %s37 = sadd.s32 %s36, 1
    %s38 = scalar_select %p35, %s36, %s37
    %p41 = pneg %p35
    %p42 = scmp.eq.s32.totalorder %s12, 1
    %p43 = por %p41, %p42
    %p44 = scmp.ne.s32.totalorder %s36, %s39
    %p45 = scmp.eq.s32.totalorder %s12, 0
    %p46 = por %p44, %p45
    %p47 = scmp.ne.s32.totalorder %s36, %s39
    %p48 = scmp.eq.s32.totalorder %s17, 1
    %p49 = por %p47, %p48
    %p50 = scmp.ne.s32.totalorder %s39, %s40
    %p51 = scmp.eq.s32.totalorder %s17, 0
    %p52 = por %p50, %p51
    %p53 = scmp.ne.s32.totalorder %s39, %s40
    %p54 = scmp.eq.s32.totalorder %s18, 1
    %p55 = por %p53, %p54
    %p57 = scmp.ne.s32.totalorder %s40, %s56
    %p58 = scmp.eq.s32.totalorder %s18, 0
    %p59 = por %p57, %p58
    %s60 = sadd.s32 %s20, 1
    %s61 = smul.u32 %s60, 16
    %s62 = sadd.s32 %s27, 1
    %s63 = smul.u32 %s62, 16
    %s64 = ssub.s32 %s19, %s31
    %s65 = ssub.s32 %s61, %s63
    %s66 = sor.u32 %s64, %s65
    %p67 = scmp.eq.s32.totalorder %s66, 0
    %s69 = sadd.s32 %s68, 1
    %s70 = scalar_select %p67, %s68, %s69
    %p73 = pneg %p67
    %p74 = scmp.eq.s32.totalorder %s12, 1
    %p75 = por %p73, %p74
    %p76 = scmp.ne.s32.totalorder %s68, %s71
    %p77 = scmp.eq.s32.totalorder %s12, 0
    %p78 = por %p76, %p77
    %p79 = scmp.ne.s32.totalorder %s68, %s71
    %p80 = scmp.eq.s32.totalorder %s17, 1
    %p81 = por %p79, %p80
    %p82 = scmp.ne.s32.totalorder %s71, %s72
    %p83 = scmp.eq.s32.totalorder %s17, 0
    %p84 = por %p82, %p83
    %p85 = scmp.ne.s32.totalorder %s71, %s72
    %p86 = scmp.eq.s32.totalorder %s18, 1
    %p87 = por %p85, %p86
    %p89 = scmp.ne.s32.totalorder %s72, %s88
    %p90 = scmp.eq.s32.totalorder %s18, 0
    %p91 = por %p89, %p90
    %s92 = sadd.s32 %s20, 1
    %s93 = smul.u32 %s92, 16
    %s94 = sadd.s32 %s93, 1
    %s95 = sadd.s32 %s27, 1
    %s96 = smul.u32 %s95, 16
    %s97 = sadd.s32 %s96, 1
    %s98 = ssub.s32 %s19, %s31
    %s99 = ssub.s32 %s94, %s97
    %s100 = sor.u32 %s98, %s99
    %p101 = scmp.eq.s32.totalorder %s100, 0
    %s103 = sadd.s32 %s102, 1
    %s104 = scalar_select %p101, %s102, %s103
    %p107 = pneg %p101
    %p108 = scmp.eq.s32.totalorder %s12, 1
    %p109 = por %p107, %p108
    %p110 = scmp.ne.s32.totalorder %s102, %s105
    %p111 = scmp.eq.s32.totalorder %s12, 0
    %p112 = por %p110, %p111
    %p113 = scmp.ne.s32.totalorder %s102, %s105
    %p114 = scmp.eq.s32.totalorder %s17, 1
    %p115 = por %p113, %p114
    %p116 = scmp.ne.s32.totalorder %s105, %s106
    %p117 = scmp.eq.s32.totalorder %s17, 0
    %p118 = por %p116, %p117
    %p119 = scmp.ne.s32.totalorder %s105, %s106
    %p120 = scmp.eq.s32.totalorder %s18, 1
    %p121 = por %p119, %p120
    %p123 = scmp.ne.s32.totalorder %s106, %s122
    %p124 = scmp.eq.s32.totalorder %s18, 0
    %p125 = por %p123, %p124
    %s127 = sadd.s32 %s126, 1
    %p130 = scmp.eq.s32.totalorder %s12, 1
    %p131 = scmp.ne.s32.totalorder %s126, %s128
    %p132 = scmp.eq.s32.totalorder %s12, 0
    %p133 = por %p131, %p132
    %p134 = scmp.ne.s32.totalorder %s126, %s128
    %p135 = scmp.eq.s32.totalorder %s17, 1
    %p136 = por %p134, %p135
    %p137 = scmp.ne.s32.totalorder %s128, %s129
    %p138 = scmp.eq.s32.totalorder %s17, 0
    %p139 = por %p137, %p138
    %p140 = scmp.ne.s32.totalorder %s128, %s129
    %p141 = scmp.eq.s32.totalorder %s18, 1
    %p142 = por %p140, %p141
    %p144 = scmp.ne.s32.totalorder %s129, %s143
    %p145 = scmp.eq.s32.totalorder %s18, 0
    %p146 = por %p144, %p145
    %s147 = ssub.s32 %s19, %s31
    %s148 = ssub.s32 %s20, %s27
    %s149 = sor.u32 %s147, %s148
    %p150 = scmp.eq.s32.totalorder %s149, 0
    %s152 = sadd.s32 %s151, 1
    %s153 = scalar_select %p150, %s151, %s152
    %p156 = pneg %p150
    %p157 = scmp.eq.s32.totalorder %s12, 1
    %p158 = por %p156, %p157
    %p159 = scmp.ne.s32.totalorder %s151, %s154
    %p160 = scmp.eq.s32.totalorder %s12, 0
    %p161 = por %p159, %p160
    %p162 = scmp.ne.s32.totalorder %s151, %s154
    %p163 = scmp.eq.s32.totalorder %s17, 1
    %p164 = por %p162, %p163
    %p165 = scmp.ne.s32.totalorder %s154, %s155
    %p166 = scmp.eq.s32.totalorder %s17, 0
    %p167 = por %p165, %p166
    %p168 = scmp.ne.s32.totalorder %s154, %s155
    %p169 = scmp.eq.s32.totalorder %s18, 1
    %p170 = por %p168, %p169
    %p172 = scmp.ne.s32.totalorder %s155, %s171
    %p173 = scmp.eq.s32.totalorder %s18, 0
    %p174 = por %p172, %p173
    %s175 = ssub.s32 %s19, %s31
    %s176 = ssub.s32 %s20, %s27
    %s177 = sor.u32 %s175, %s176
    %p178 = scmp.eq.s32.totalorder %s177, 0
    %s180 = sadd.s32 %s179, 1
    %s181 = scalar_select %p178, %s179, %s180
    %p184 = pneg %p178
    %p185 = scmp.eq.s32.totalorder %s12, 1
    %p186 = por %p184, %p185
    %p187 = scmp.ne.s32.totalorder %s179, %s182
    %p188 = scmp.eq.s32.totalorder %s12, 0
    %p189 = por %p187, %p188
    %p190 = scmp.ne.s32.totalorder %s179, %s182
    %p191 = scmp.eq.s32.totalorder %s17, 1
    %p192 = por %p190, %p191
    %p193 = scmp.ne.s32.totalorder %s182, %s183
    %p194 = scmp.eq.s32.totalorder %s17, 0
    %p195 = por %p193, %p194
    %p196 = scmp.ne.s32.totalorder %s182, %s183
    %p197 = scmp.eq.s32.totalorder %s18, 1
    %p198 = por %p196, %p197
    %p200 = scmp.ne.s32.totalorder %s183, %s199
    %p201 = scmp.eq.s32.totalorder %s18, 0
    %p202 = por %p200, %p201
    %p203 = scmp.le.s32.totalorder 1, %s12
    %p204 = scmp.lt.s32.totalorder %s12, 3
    %p205 = pnand %p203, %p204
    %p206 = pneg %p205
    // Predicated region
    $region9: #{up_forward.3} parent=5 // pred_check
      _
    $region10: #{up_forward.3} parent=5 // pred_check_branch
      %208 = sbr.rel (%p205) target = $region12
    $region11: #{up_forward.3} parent=5 // pred_region
      %s209 = ssub.s32 %s12, 1
      // Predicated region
      $region13: #{up_forward.3} parent=11 // pred_check
        %p210 = pneg %p139
      $region14: #{up_forward.3} parent=11 // pred_check_branch
        %212 = sbr.rel (%p210) target = $region16
      $region15: #{up_forward.3} parent=11 // pred_region
        _
      $region16: #{up_forward.3} parent=11 // pred_fallthru
        _
    $region12: #{up_forward.3} parent=5 // pred_fallthru
      _
    %p213 = scmp.lt.s32.totalorder %s12, 2
    // Predicated region
    $region17: #{up_forward.3} parent=5 // pred_check
      %p214 = pneg %p213
    $region18: #{up_forward.3} parent=5 // pred_check_branch
      %216 = sbr.rel (%p214) target = $region20
    $region19: #{up_forward.3} parent=5 // pred_region
      // Predicated region
      $region21: #{up_forward.3} parent=19 // pred_check
        %p217 = pneg %p46
      $region22: #{up_forward.3} parent=19 // pred_check_branch
        %219 = sbr.rel (%p217) target = $region24
      $region23: #{up_forward.3} parent=19 // pred_region
        %s220 = smul.u32 16, %s20
        %s221 = ssub.s32 18, %s220
        %p222 = scmp.lt.s32.totalorder %s221, 16
        %s223 = scalar_select %p222, %s221, 16
        %s224 = smul.u32 128, %s223
        %s225 = smul.u32 %s224, 3
        %p226 = scmp.lt.s32.totalorder %s19, 1
        %s227 = scalar_select %p226, %s19, 1
        %p228 = scmp.lt.s32.totalorder %s220, 17
        %s229 = scalar_select %p228, %s220, 17
        %s230 = smul.addr %s229, 3
        %s231 = smul.addr %s227, 54
        %s232 = sadd.s32 %s230, %s231
        %s233 = smul.addr %s232, 8
        %s234 = scalar_lea.vmem %s0, %s233
        %s235 = smul.u32 16, %s20
        %s236 = ssub.s32 18, %s235
        %p237 = scmp.lt.s32.totalorder %s236, 16
        %s238 = scalar_select %p237, %s236, 16
        %s239 = smul.u32 128, %s238
        %s240 = smul.u32 %s239, 3
      $region24: #{up_forward.3} parent=19 // pred_fallthru
        _
      // Predicated region
      $region25: #{up_forward.3} parent=19 // pred_check
        %p241 = pneg %p78
      $region26: #{up_forward.3} parent=19 // pred_check_branch
        %243 = sbr.rel (%p241) target = $region28
      $region27: #{up_forward.3} parent=19 // pred_region
        %s244 = sadd.s32 %s20, 1
        %s245 = smul.u32 %s244, 16
        %p246 = scmp.lt.s32.totalorder %s19, 1
        %s247 = scalar_select %p246, %s19, 1
        %p248 = scmp.lt.s32.totalorder %s245, 17
        %s249 = scalar_select %p248, %s245, 17
        %s250 = smul.addr %s249, 3
        %s251 = smul.addr %s247, 54
        %s252 = sadd.s32 %s250, %s251
        %s253 = smul.addr %s252, 8
        %s254 = scalar_lea.vmem %s1, %s253
        %s255 = sadd.s32 %s20, 1
        %s256 = smul.u32 %s255, 16
      $region28: #{up_forward.3} parent=19 // pred_fallthru
        _
      // Predicated region
      $region29: #{up_forward.3} parent=19 // pred_check
        %p257 = pneg %p112
      $region30: #{up_forward.3} parent=19 // pred_check_branch
        %259 = sbr.rel (%p257) target = $region32
      $region31: #{up_forward.3} parent=19 // pred_region
        %s260 = sadd.s32 %s20, 1
        %s261 = smul.u32 %s260, 16
        %s262 = sadd.s32 %s261, 1
        %p263 = scmp.lt.s32.totalorder %s19, 1
        %s264 = scalar_select %p263, %s19, 1
        %p265 = scmp.lt.s32.totalorder %s262, 17
        %s266 = scalar_select %p265, %s262, 17
        %s267 = smul.addr %s266, 3
        %s268 = smul.addr %s264, 54
        %s269 = sadd.s32 %s267, %s268
        %s270 = smul.addr %s269, 8
        %s271 = scalar_lea.vmem %s2, %s270
        %s272 = sadd.s32 %s20, 1
        %s273 = smul.u32 %s272, 16
        %s274 = sadd.s32 %s273, 1
      $region32: #{up_forward.3} parent=19 // pred_fallthru
        _
    $region20: #{up_forward.3} parent=5 // pred_fallthru
      _
    %p275 = scmp.le.s32.totalorder 1, %s12
    %p276 = scmp.lt.s32.totalorder %s12, 3
    %p277 = pnand %p275, %p276
    %p278 = pneg %p277
    // Predicated region
    $region33: #{up_forward.3} parent=5 // pred_check
      _
    $region34: #{up_forward.3} parent=5 // pred_check_branch
      %280 = sbr.rel (%p277) target = $region36
    $region35: #{up_forward.3} parent=5 // pred_region
      %s281 = ssub.s32 %s12, 1
      %s282 = smul.u32 16, %s22
      %s283 = ssub.s32 18, %s282
      %p284 = scmp.lt.s32.totalorder %s283, 16
      %s285 = scalar_select %p284, %s283, 16
      %s286 = smul.u32 128, %s285
      %s287 = smul.u32 %s286, 3
      %p288 = scmp.lt.s32.totalorder %s21, 1
      %s289 = scalar_select %p288, %s21, 1
      %p290 = scmp.lt.s32.totalorder %s282, 17
      %s291 = scalar_select %p290, %s282, 17
      %s292 = smul.addr %s291, 3
      %s293 = smul.addr %s289, 54
      %s294 = sadd.s32 %s292, %s293
      %s295 = smul.addr %s294, 8
      %s296 = scalar_lea.vmem %s0, %s295
      %p297 = pneg %p52
      %p298 = pneg %p49
      %s299 = sadd.s32 %s22, 1
      %s300 = smul.u32 %s299, 16
      %p301 = scmp.lt.s32.totalorder %s21, 1
      %s302 = scalar_select %p301, %s21, 1
      %p303 = scmp.lt.s32.totalorder %s300, 17
      %s304 = scalar_select %p303, %s300, 17
      %s305 = smul.addr %s304, 3
      %s306 = smul.addr %s302, 54
      %s307 = sadd.s32 %s305, %s306
      %s308 = smul.addr %s307, 8
      %s309 = scalar_lea.vmem %s1, %s308
      %p310 = pneg %p84
      %p311 = pneg %p81
      %s312 = sadd.s32 %s22, 1
      %s313 = smul.u32 %s312, 16
      %s314 = sadd.s32 %s313, 1
      %p315 = scmp.lt.s32.totalorder %s21, 1
      %s316 = scalar_select %p315, %s21, 1
      %p317 = scmp.lt.s32.totalorder %s314, 17
      %s318 = scalar_select %p317, %s314, 17
      %s319 = smul.addr %s318, 3
      %s320 = smul.addr %s316, 54
      %s321 = sadd.s32 %s319, %s320
      %s322 = smul.addr %s321, 8
      %s323 = scalar_lea.vmem %s2, %s322
      %p324 = pneg %p118
      %p325 = pneg %p115
      %p326 = pneg %p139
      %p327 = pneg %p136
      %p328 = pneg %p167
      %p329 = pneg %p164
      %s330 = smul.u32 16, %s22
      %p331 = scmp.lt.s32.totalorder %s21, 1
      %s332 = scalar_select %p331, %s21, 1
      %p333 = scmp.lt.s32.totalorder %s330, 15
      %s334 = scalar_select %p333, %s330, 15
      %s335 = smul.addr %s334, 2
      %s336 = smul.addr %s332, 32
      %s337 = sadd.s32 %s335, %s336
      %s338 = smul.addr %s337, 8
      %s339 = scalar_lea.vmem %s4, %s338
      %p340 = pneg %p195
      %p341 = pneg %p192
      %p342 = scmp.lt.s32.totalorder %s21, 1
      %s343 = scalar_select %p342, %s21, 1
      %p344 = scmp.lt.s32.totalorder %s22, 0
      %s345 = scalar_select %p344, %s22, 0
      %s346 = sadd.s32 %s345, %s343
      %s347 = smul.addr %s346, 2
      %s348 = scalar_lea.vmem %s5, %s347
      %s349 = smul.u32 16, %s22
      %s350 = ssub.s32 18, %s349
      %p351 = scmp.lt.s32.totalorder %s350, 16
      %s352 = scalar_select %p351, %s350, 16
      %s353 = smul.u32 128, %s352
      %s354 = smul.u32 %s353, 3
      %p355 = scmp.lt.s32.totalorder %s21, 1
      %s356 = scalar_select %p355, %s21, 1
      %p357 = scmp.lt.s32.totalorder %s349, 17
      %s358 = scalar_select %p357, %s349, 17
      %s359 = smul.addr %s358, 3
      %s360 = smul.addr %s356, 54
      %s361 = sadd.s32 %s359, %s360
      %s362 = smul.addr %s361, 8
      %s363 = scalar_lea.vmem %s0, %s362
      %s364 = smul.u32 16, %s22
      %s365 = ssub.s32 18, %s364
      %p366 = scmp.lt.s32.totalorder %s365, 16
      %s367 = scalar_select %p366, %s365, 16
      %s368 = smul.u32 128, %s367
      %s369 = smul.u32 %s368, 3
      %s370 = sadd.s32 %s22, 1
      %s371 = smul.u32 %s370, 16
      %p372 = scmp.lt.s32.totalorder %s21, 1
      %s373 = scalar_select %p372, %s21, 1
      %p374 = scmp.lt.s32.totalorder %s371, 17
      %s375 = scalar_select %p374, %s371, 17
      %s376 = smul.addr %s375, 3
      %s377 = smul.addr %s373, 54
      %s378 = sadd.s32 %s376, %s377
      %s379 = smul.addr %s378, 8
      %s380 = scalar_lea.vmem %s1, %s379
      %s381 = sadd.s32 %s22, 1
      %s382 = smul.u32 %s381, 16
      %s383 = sadd.s32 %s22, 1
      %s384 = smul.u32 %s383, 16
      %s385 = sadd.s32 %s384, 1
      %p386 = scmp.lt.s32.totalorder %s21, 1
      %s387 = scalar_select %p386, %s21, 1
      %p388 = scmp.lt.s32.totalorder %s385, 17
      %s389 = scalar_select %p388, %s385, 17
      %s390 = smul.addr %s389, 3
      %s391 = smul.addr %s387, 54
      %s392 = sadd.s32 %s390, %s391
      %s393 = smul.addr %s392, 8
      %s394 = scalar_lea.vmem %s2, %s393
      %s395 = sadd.s32 %s22, 1
      %s396 = smul.u32 %s395, 16
      %s397 = sadd.s32 %s396, 1
      %s398 = smul.u32 16, %s22
      %p399 = scmp.lt.s32.totalorder %s21, 1
      %s400 = scalar_select %p399, %s21, 1
      %p401 = scmp.lt.s32.totalorder %s398, 15
      %s402 = scalar_select %p401, %s398, 15
      %s403 = smul.addr %s402, 2
      %s404 = smul.addr %s400, 32
      %s405 = sadd.s32 %s403, %s404
      %s406 = smul.addr %s405, 8
      %s407 = scalar_lea.vmem %s4, %s406
      %s408 = smul.u32 16, %s22
      %p409 = scmp.lt.s32.totalorder %s21, 1
      %s410 = scalar_select %p409, %s21, 1
      %p411 = scmp.lt.s32.totalorder %s22, 0
      %s412 = scalar_select %p411, %s22, 0
      %s413 = sadd.s32 %s412, %s410
      %s414 = smul.addr %s413, 2
      %s415 = scalar_lea.vmem %s5, %s414
      %v416 = vld [vmem:[%s363] sm:$0xff]
      %v417 = vld [vmem:[%s363 + $0x8] sm:$0xff]
      %v418 = vld [vmem:[%s363 + $0x10] sm:$0x3]
      %v419 = vld [vmem:[%s363 + $0x18] sm:$0xff]
      %v420 = vld [vmem:[%s363 + $0x20] sm:$0xff]
      %v421 = vld [vmem:[%s363 + $0x28] sm:$0x3]
      %v422 = vld [vmem:[%s363 + $0x30] sm:$0xff]
      %v423 = vld [vmem:[%s363 + $0x38] sm:$0xff]
      %v424 = vld [vmem:[%s363 + $0x40] sm:$0x3]
      %v425 = vld [vmem:[%s363 + $0x48] sm:$0xff]
      %v426 = vld [vmem:[%s363 + $0x50] sm:$0xff]
      %v427 = vld [vmem:[%s363 + $0x58] sm:$0x3]
      %v428 = vld [vmem:[%s363 + $0x60] sm:$0xff]
      %v429 = vld [vmem:[%s363 + $0x68] sm:$0xff]
      %v430 = vld [vmem:[%s363 + $0x70] sm:$0x3]
      %v431 = vld [vmem:[%s363 + $0x78] sm:$0xff]
      %v432 = vld [vmem:[%s363 + $0x80] sm:$0xff]
      %v433 = vld [vmem:[%s363 + $0x88] sm:$0x3]
      %v434 = vld [vmem:[%s363 + $0x90] sm:$0xff]
      %v435 = vld [vmem:[%s363 + $0x98] sm:$0xff]
      %v436 = vld [vmem:[%s363 + $0xa0] sm:$0x3]
      %v437 = vld [vmem:[%s363 + $0xa8] sm:$0xff]
      %v438 = vld [vmem:[%s363 + $0xb0] sm:$0xff]
      %v439 = vld [vmem:[%s363 + $0xb8] sm:$0x3]
      %v440 = vld [vmem:[%s363 + $0xc0] sm:$0xff]
      %v441 = vld [vmem:[%s363 + $0xc8] sm:$0xff]
      %v442 = vld [vmem:[%s363 + $0xd0] sm:$0x3]
      %v443 = vld [vmem:[%s363 + $0xd8] sm:$0xff]
      %v444 = vld [vmem:[%s363 + $0xe0] sm:$0xff]
      %v445 = vld [vmem:[%s363 + $0xe8] sm:$0x3]
      %v446 = vld [vmem:[%s363 + $0xf0] sm:$0xff]
      %v447 = vld [vmem:[%s363 + $0xf8] sm:$0xff]
      %v448 = vld [vmem:[%s363 + $0x100] sm:$0x3]
      %v449 = vld [vmem:[%s363 + $0x108] sm:$0xff]
      %v450 = vld [vmem:[%s363 + $0x110] sm:$0xff]
      %v451 = vld [vmem:[%s363 + $0x118] sm:$0x3]
      %v452 = vld [vmem:[%s363 + $0x120] sm:$0xff]
      %v453 = vld [vmem:[%s363 + $0x128] sm:$0xff]
      %v454 = vld [vmem:[%s363 + $0x130] sm:$0x3]
      %v455 = vld [vmem:[%s363 + $0x138] sm:$0xff]
      %v456 = vld [vmem:[%s363 + $0x140] sm:$0xff]
      %v457 = vld [vmem:[%s363 + $0x148] sm:$0x3]
      %v458 = vld [vmem:[%s363 + $0x150] sm:$0xff]
      %v459 = vld [vmem:[%s363 + $0x158] sm:$0xff]
      %v460 = vld [vmem:[%s363 + $0x160] sm:$0x3]
      %v461 = vld [vmem:[%s363 + $0x168] sm:$0xff]
      %v462 = vld [vmem:[%s363 + $0x170] sm:$0xff]
      %v463 = vld [vmem:[%s363 + $0x178] sm:$0x3]
      %vm464 = vcmask 130048
      %465 = vst.msk [vmem:[#allocation2] sm:$0xff] %vm464, %v416
      %466 = vst.msk [vmem:[#allocation2 + $0x8] sm:$0xff] %vm464, %v417
      %vm467 = vcmask 123904
      %468 = vst.msk [vmem:[#allocation2 + $0x10] sm:$0x3] %vm467, %v418
      %469 = vst.msk [vmem:[#allocation2 + $0x18] sm:$0xff] %vm464, %v419
      %470 = vst.msk [vmem:[#allocation2 + $0x20] sm:$0xff] %vm464, %v420
      %471 = vst.msk [vmem:[#allocation2 + $0x28] sm:$0x3] %vm467, %v421
      %472 = vst.msk [vmem:[#allocation2 + $0x30] sm:$0xff] %vm464, %v422
      %473 = vst.msk [vmem:[#allocation2 + $0x38] sm:$0xff] %vm464, %v423
      %474 = vst.msk [vmem:[#allocation2 + $0x40] sm:$0x3] %vm467, %v424
      %475 = vst.msk [vmem:[#allocation2 + $0x48] sm:$0xff] %vm464, %v425
      %476 = vst.msk [vmem:[#allocation2 + $0x50] sm:$0xff] %vm464, %v426
      %477 = vst.msk [vmem:[#allocation2 + $0x58] sm:$0x3] %vm467, %v427
      %478 = vst.msk [vmem:[#allocation2 + $0x60] sm:$0xff] %vm464, %v428
      %479 = vst.msk [vmem:[#allocation2 + $0x68] sm:$0xff] %vm464, %v429
      %480 = vst.msk [vmem:[#allocation2 + $0x70] sm:$0x3] %vm467, %v430
      %481 = vst.msk [vmem:[#allocation2 + $0x78] sm:$0xff] %vm464, %v431
      %482 = vst.msk [vmem:[#allocation2 + $0x80] sm:$0xff] %vm464, %v432
      %483 = vst.msk [vmem:[#allocation2 + $0x88] sm:$0x3] %vm467, %v433
      %484 = vst.msk [vmem:[#allocation2 + $0x90] sm:$0xff] %vm464, %v434
      %485 = vst.msk [vmem:[#allocation2 + $0x98] sm:$0xff] %vm464, %v435
      %486 = vst.msk [vmem:[#allocation2 + $0xa0] sm:$0x3] %vm467, %v436
      %487 = vst.msk [vmem:[#allocation2 + $0xa8] sm:$0xff] %vm464, %v437
      %488 = vst.msk [vmem:[#allocation2 + $0xb0] sm:$0xff] %vm464, %v438
      %489 = vst.msk [vmem:[#allocation2 + $0xb8] sm:$0x3] %vm467, %v439
      %490 = vst.msk [vmem:[#allocation2 + $0xc0] sm:$0xff] %vm464, %v440
      %491 = vst.msk [vmem:[#allocation2 + $0xc8] sm:$0xff] %vm464, %v441
      %492 = vst.msk [vmem:[#allocation2 + $0xd0] sm:$0x3] %vm467, %v442
      %493 = vst.msk [vmem:[#allocation2 + $0xd8] sm:$0xff] %vm464, %v443
      %494 = vst.msk [vmem:[#allocation2 + $0xe0] sm:$0xff] %vm464, %v444
      %495 = vst.msk [vmem:[#allocation2 + $0xe8] sm:$0x3] %vm467, %v445
      %496 = vst.msk [vmem:[#allocation2 + $0xf0] sm:$0xff] %vm464, %v446
      %497 = vst.msk [vmem:[#allocation2 + $0xf8] sm:$0xff] %vm464, %v447
      %498 = vst.msk [vmem:[#allocation2 + $0x100] sm:$0x3] %vm467, %v448
      %499 = vst.msk [vmem:[#allocation2 + $0x108] sm:$0xff] %vm464, %v449
      %500 = vst.msk [vmem:[#allocation2 + $0x110] sm:$0xff] %vm464, %v450
      %501 = vst.msk [vmem:[#allocation2 + $0x118] sm:$0x3] %vm467, %v451
      %502 = vst.msk [vmem:[#allocation2 + $0x120] sm:$0xff] %vm464, %v452
      %503 = vst.msk [vmem:[#allocation2 + $0x128] sm:$0xff] %vm464, %v453
      %504 = vst.msk [vmem:[#allocation2 + $0x130] sm:$0x3] %vm467, %v454
      %505 = vst.msk [vmem:[#allocation2 + $0x138] sm:$0xff] %vm464, %v455
      %506 = vst.msk [vmem:[#allocation2 + $0x140] sm:$0xff] %vm464, %v456
      %507 = vst.msk [vmem:[#allocation2 + $0x148] sm:$0x3] %vm467, %v457
      %508 = vst.msk [vmem:[#allocation2 + $0x150] sm:$0xff] %vm464, %v458
      %509 = vst.msk [vmem:[#allocation2 + $0x158] sm:$0xff] %vm464, %v459
      %510 = vst.msk [vmem:[#allocation2 + $0x160] sm:$0x3] %vm467, %v460
      %511 = vst.msk [vmem:[#allocation2 + $0x168] sm:$0xff] %vm464, %v461
      %512 = vst.msk [vmem:[#allocation2 + $0x170] sm:$0xff] %vm464, %v462
      %513 = vst.msk [vmem:[#allocation2 + $0x178] sm:$0x3] %vm467, %v463
      %v514 = vld [vmem:[%s380] sm:$0xff]
      %v515 = vld [vmem:[%s380 + $0x8] sm:$0xff]
      %v516 = vld [vmem:[%s380 + $0x10] sm:$0x3]
      %s517 = scalar_lea.vmem [#allocation2], 384
      %518 = vst.msk [vmem:[%s517] sm:$0xff] %vm464, %v514
      %519 = vst.msk [vmem:[%s517 + $0x8] sm:$0xff] %vm464, %v515
      %520 = vst.msk [vmem:[%s517 + $0x10] sm:$0x3] %vm467, %v516
      %v521 = vld [vmem:[%s394] sm:$0xff]
      %v522 = vld [vmem:[%s394 + $0x8] sm:$0xff]
      %v523 = vld [vmem:[%s394 + $0x10] sm:$0x3]
      %s524 = scalar_lea.vmem [#allocation2], 408
      %525 = vst.msk [vmem:[%s524] sm:$0xff] %vm464, %v521
      %526 = vst.msk [vmem:[%s524 + $0x8] sm:$0xff] %vm464, %v522
      %527 = vst.msk [vmem:[%s524 + $0x10] sm:$0x3] %vm467, %v523
      %v528 = vld [vmem:[#allocation2] sm:$0xff]
      %v529 = vld [vmem:[#allocation2 + $0x8] sm:$0xff]
      %v530 = vld [vmem:[#allocation2 + $0x10] sm:$0x3]
      %v531 = vld [vmem:[#allocation2 + $0x18] sm:$0xff]
      %v532 = vld [vmem:[#allocation2 + $0x20] sm:$0xff]
      %v533 = vld [vmem:[#allocation2 + $0x28] sm:$0x3]
      %v534 = vld [vmem:[#allocation2 + $0x30] sm:$0xff]
      %v535 = vld [vmem:[#allocation2 + $0x38] sm:$0xff]
      %v536 = vld [vmem:[#allocation2 + $0x40] sm:$0x3]
      %v537 = vld [vmem:[#allocation2 + $0x48] sm:$0xff]
      %v538 = vld [vmem:[#allocation2 + $0x50] sm:$0xff]
      %v539 = vld [vmem:[#allocation2 + $0x58] sm:$0x3]
      %v540 = vld [vmem:[#allocation2 + $0x60] sm:$0xff]
      %v541 = vld [vmem:[#allocation2 + $0x68] sm:$0xff]
      %v542 = vld [vmem:[#allocation2 + $0x70] sm:$0x3]
      %v543 = vld [vmem:[#allocation2 + $0x78] sm:$0xff]
      %v544 = vld [vmem:[#allocation2 + $0x80] sm:$0xff]
      %v545 = vld [vmem:[#allocation2 + $0x88] sm:$0x3]
      %v546 = vld [vmem:[#allocation2 + $0x90] sm:$0xff]
      %v547 = vld [vmem:[#allocation2 + $0x98] sm:$0xff]
      %v548 = vld [vmem:[#allocation2 + $0xa0] sm:$0x3]
      %v549 = vld [vmem:[#allocation2 + $0xa8] sm:$0xff]
      %v550 = vld [vmem:[#allocation2 + $0xb0] sm:$0xff]
      %v551 = vld [vmem:[#allocation2 + $0xb8] sm:$0x3]
      %v552 = vld [vmem:[#allocation2 + $0xc0] sm:$0xff]
      %v553 = vld [vmem:[#allocation2 + $0xc8] sm:$0xff]
      %v554 = vld [vmem:[#allocation2 + $0xd0] sm:$0x3]
      %v555 = vld [vmem:[#allocation2 + $0xd8] sm:$0xff]
      %v556 = vld [vmem:[#allocation2 + $0xe0] sm:$0xff]
      %v557 = vld [vmem:[#allocation2 + $0xe8] sm:$0x3]
      %v558 = vld [vmem:[#allocation2 + $0xf0] sm:$0xff]
      %v559 = vld [vmem:[#allocation2 + $0xf8] sm:$0xff]
      %v560 = vld [vmem:[#allocation2 + $0x100] sm:$0x3]
      %v561 = vld [vmem:[#allocation2 + $0x108] sm:$0xff]
      %v562 = vld [vmem:[#allocation2 + $0x110] sm:$0xff]
      %v563 = vld [vmem:[#allocation2 + $0x118] sm:$0x3]
      %v564 = vld [vmem:[#allocation2 + $0x120] sm:$0xff]
      %v565 = vld [vmem:[#allocation2 + $0x128] sm:$0xff]
      %v566 = vld [vmem:[#allocation2 + $0x130] sm:$0x3]
      %v567 = vld [vmem:[#allocation2 + $0x138] sm:$0xff]
      %v568 = vld [vmem:[#allocation2 + $0x140] sm:$0xff]
      %v569 = vld [vmem:[#allocation2 + $0x148] sm:$0x3]
      %v570 = vld [vmem:[#allocation2 + $0x150] sm:$0xff]
      %v571 = vld [vmem:[#allocation2 + $0x158] sm:$0xff]
      %v572 = vld [vmem:[#allocation2 + $0x160] sm:$0x3]
      %v573 = vld [vmem:[#allocation2 + $0x168] sm:$0xff]
      %v574 = vld [vmem:[#allocation2 + $0x170] sm:$0xff]
      %v575 = vld [vmem:[#allocation2 + $0x178] sm:$0x3]
      %s576 = scalar_lea.vmem [#allocation2], 24
      %v577 = vld [vmem:[%s576] sm:$0xff]
      %v578 = vld [vmem:[%s576 + $0x8] sm:$0xff]
      %v579 = vld [vmem:[%s576 + $0x10] sm:$0x3]
      %v580 = vld [vmem:[%s576 + $0x18] sm:$0xff]
      %v581 = vld [vmem:[%s576 + $0x20] sm:$0xff]
      %v582 = vld [vmem:[%s576 + $0x28] sm:$0x3]
      %v583 = vld [vmem:[%s576 + $0x30] sm:$0xff]
      %v584 = vld [vmem:[%s576 + $0x38] sm:$0xff]
      %v585 = vld [vmem:[%s576 + $0x40] sm:$0x3]
      %v586 = vld [vmem:[%s576 + $0x48] sm:$0xff]
      %v587 = vld [vmem:[%s576 + $0x50] sm:$0xff]
      %v588 = vld [vmem:[%s576 + $0x58] sm:$0x3]
      %v589 = vld [vmem:[%s576 + $0x60] sm:$0xff]
      %v590 = vld [vmem:[%s576 + $0x68] sm:$0xff]
      %v591 = vld [vmem:[%s576 + $0x70] sm:$0x3]
      %v592 = vld [vmem:[%s576 + $0x78] sm:$0xff]
      %v593 = vld [vmem:[%s576 + $0x80] sm:$0xff]
      %v594 = vld [vmem:[%s576 + $0x88] sm:$0x3]
      %v595 = vld [vmem:[%s576 + $0x90] sm:$0xff]
      %v596 = vld [vmem:[%s576 + $0x98] sm:$0xff]
      %v597 = vld [vmem:[%s576 + $0xa0] sm:$0x3]
      %v598 = vld [vmem:[%s576 + $0xa8] sm:$0xff]
      %v599 = vld [vmem:[%s576 + $0xb0] sm:$0xff]
      %v600 = vld [vmem:[%s576 + $0xb8] sm:$0x3]
      %v601 = vld [vmem:[%s576 + $0xc0] sm:$0xff]
      %v602 = vld [vmem:[%s576 + $0xc8] sm:$0xff]
      %v603 = vld [vmem:[%s576 + $0xd0] sm:$0x3]
      %v604 = vld [vmem:[%s576 + $0xd8] sm:$0xff]
      %v605 = vld [vmem:[%s576 + $0xe0] sm:$0xff]
      %v606 = vld [vmem:[%s576 + $0xe8] sm:$0x3]
      %v607 = vld [vmem:[%s576 + $0xf0] sm:$0xff]
      %v608 = vld [vmem:[%s576 + $0xf8] sm:$0xff]
      %v609 = vld [vmem:[%s576 + $0x100] sm:$0x3]
      %v610 = vld [vmem:[%s576 + $0x108] sm:$0xff]
      %v611 = vld [vmem:[%s576 + $0x110] sm:$0xff]
      %v612 = vld [vmem:[%s576 + $0x118] sm:$0x3]
      %v613 = vld [vmem:[%s576 + $0x120] sm:$0xff]
      %v614 = vld [vmem:[%s576 + $0x128] sm:$0xff]
      %v615 = vld [vmem:[%s576 + $0x130] sm:$0x3]
      %v616 = vld [vmem:[%s576 + $0x138] sm:$0xff]
      %v617 = vld [vmem:[%s576 + $0x140] sm:$0xff]
      %v618 = vld [vmem:[%s576 + $0x148] sm:$0x3]
      %v619 = vld [vmem:[%s576 + $0x150] sm:$0xff]
      %v620 = vld [vmem:[%s576 + $0x158] sm:$0xff]
      %v621 = vld [vmem:[%s576 + $0x160] sm:$0x3]
      %v622 = vld [vmem:[%s576 + $0x168] sm:$0xff]
      %v623 = vld [vmem:[%s576 + $0x170] sm:$0xff]
      %v624 = vld [vmem:[%s576 + $0x178] sm:$0x3]
      %s625 = scalar_lea.vmem [#allocation2], 48
      %v626 = vld [vmem:[%s625] sm:$0xff]
      %v627 = vld [vmem:[%s625 + $0x8] sm:$0xff]
      %v628 = vld [vmem:[%s625 + $0x10] sm:$0x3]
      %v629 = vld [vmem:[%s625 + $0x18] sm:$0xff]
      %v630 = vld [vmem:[%s625 + $0x20] sm:$0xff]
      %v631 = vld [vmem:[%s625 + $0x28] sm:$0x3]
      %v632 = vld [vmem:[%s625 + $0x30] sm:$0xff]
      %v633 = vld [vmem:[%s625 + $0x38] sm:$0xff]
      %v634 = vld [vmem:[%s625 + $0x40] sm:$0x3]
      %v635 = vld [vmem:[%s625 + $0x48] sm:$0xff]
      %v636 = vld [vmem:[%s625 + $0x50] sm:$0xff]
      %v637 = vld [vmem:[%s625 + $0x58] sm:$0x3]
      %v638 = vld [vmem:[%s625 + $0x60] sm:$0xff]
      %v639 = vld [vmem:[%s625 + $0x68] sm:$0xff]
      %v640 = vld [vmem:[%s625 + $0x70] sm:$0x3]
      %v641 = vld [vmem:[%s625 + $0x78] sm:$0xff]
      %v642 = vld [vmem:[%s625 + $0x80] sm:$0xff]
      %v643 = vld [vmem:[%s625 + $0x88] sm:$0x3]
      %v644 = vld [vmem:[%s625 + $0x90] sm:$0xff]
      %v645 = vld [vmem:[%s625 + $0x98] sm:$0xff]
      %v646 = vld [vmem:[%s625 + $0xa0] sm:$0x3]
      %v647 = vld [vmem:[%s625 + $0xa8] sm:$0xff]
      %v648 = vld [vmem:[%s625 + $0xb0] sm:$0xff]
      %v649 = vld [vmem:[%s625 + $0xb8] sm:$0x3]
      %v650 = vld [vmem:[%s625 + $0xc0] sm:$0xff]
      %v651 = vld [vmem:[%s625 + $0xc8] sm:$0xff]
      %v652 = vld [vmem:[%s625 + $0xd0] sm:$0x3]
      %v653 = vld [vmem:[%s625 + $0xd8] sm:$0xff]
      %v654 = vld [vmem:[%s625 + $0xe0] sm:$0xff]
      %v655 = vld [vmem:[%s625 + $0xe8] sm:$0x3]
      %v656 = vld [vmem:[%s625 + $0xf0] sm:$0xff]
      %v657 = vld [vmem:[%s625 + $0xf8] sm:$0xff]
      %v658 = vld [vmem:[%s625 + $0x100] sm:$0x3]
      %v659 = vld [vmem:[%s625 + $0x108] sm:$0xff]
      %v660 = vld [vmem:[%s625 + $0x110] sm:$0xff]
      %v661 = vld [vmem:[%s625 + $0x118] sm:$0x3]
      %v662 = vld [vmem:[%s625 + $0x120] sm:$0xff]
      %v663 = vld [vmem:[%s625 + $0x128] sm:$0xff]
      %v664 = vld [vmem:[%s625 + $0x130] sm:$0x3]
      %v665 = vld [vmem:[%s625 + $0x138] sm:$0xff]
      %v666 = vld [vmem:[%s625 + $0x140] sm:$0xff]
      %v667 = vld [vmem:[%s625 + $0x148] sm:$0x3]
      %v668 = vld [vmem:[%s625 + $0x150] sm:$0xff]
      %v669 = vld [vmem:[%s625 + $0x158] sm:$0xff]
      %v670 = vld [vmem:[%s625 + $0x160] sm:$0x3]
      %v671 = vld [vmem:[%s625 + $0x168] sm:$0xff]
      %v672 = vld [vmem:[%s625 + $0x170] sm:$0xff]
      %v673 = vld [vmem:[%s625 + $0x178] sm:$0x3]
      %722 = vrot.lane.b32.xlu0 %v577, 16
      %v723 = vpop.permute.xlu0 %722
      %724 = vrot.lane.b32.xlu0 %v578, 16
      %v725 = vpop.permute.xlu0 %724
      %726 = vrot.lane.b32.xlu0 %v579, 16
      %v727 = vpop.permute.xlu0 %726
      %728 = vrot.lane.b32.xlu0 %v580, 16
      %v729 = vpop.permute.xlu0 %728
      %730 = vrot.lane.b32.xlu0 %v581, 16
      %v731 = vpop.permute.xlu0 %730
      %732 = vrot.lane.b32.xlu0 %v582, 16
      %v733 = vpop.permute.xlu0 %732
      %734 = vrot.lane.b32.xlu0 %v583, 16
      %v735 = vpop.permute.xlu0 %734
      %736 = vrot.lane.b32.xlu0 %v584, 16
      %v737 = vpop.permute.xlu0 %736
      %738 = vrot.lane.b32.xlu0 %v585, 16
      %v739 = vpop.permute.xlu0 %738
      %740 = vrot.lane.b32.xlu0 %v586, 16
      %v741 = vpop.permute.xlu0 %740
      %742 = vrot.lane.b32.xlu0 %v587, 16
      %v743 = vpop.permute.xlu0 %742
      %744 = vrot.lane.b32.xlu0 %v588, 16
      %v745 = vpop.permute.xlu0 %744
      %746 = vrot.lane.b32.xlu0 %v589, 16
      %v747 = vpop.permute.xlu0 %746
      %748 = vrot.lane.b32.xlu0 %v590, 16
      %v749 = vpop.permute.xlu0 %748
      %750 = vrot.lane.b32.xlu0 %v591, 16
      %v751 = vpop.permute.xlu0 %750
      %752 = vrot.lane.b32.xlu0 %v592, 16
      %v753 = vpop.permute.xlu0 %752
      %754 = vrot.lane.b32.xlu0 %v593, 16
      %v755 = vpop.permute.xlu0 %754
      %756 = vrot.lane.b32.xlu0 %v594, 16
      %v757 = vpop.permute.xlu0 %756
      %758 = vrot.lane.b32.xlu0 %v595, 16
      %v759 = vpop.permute.xlu0 %758
      %760 = vrot.lane.b32.xlu0 %v596, 16
      %v761 = vpop.permute.xlu0 %760
      %762 = vrot.lane.b32.xlu0 %v597, 16
      %v763 = vpop.permute.xlu0 %762
      %764 = vrot.lane.b32.xlu0 %v598, 16
      %v765 = vpop.permute.xlu0 %764
      %766 = vrot.lane.b32.xlu0 %v599, 16
      %v767 = vpop.permute.xlu0 %766
      %768 = vrot.lane.b32.xlu0 %v600, 16
      %v769 = vpop.permute.xlu0 %768
      %770 = vrot.lane.b32.xlu0 %v601, 16
      %v771 = vpop.permute.xlu0 %770
      %772 = vrot.lane.b32.xlu0 %v602, 16
      %v773 = vpop.permute.xlu0 %772
      %774 = vrot.lane.b32.xlu0 %v603, 16
      %v775 = vpop.permute.xlu0 %774
      %776 = vrot.lane.b32.xlu0 %v604, 16
      %v777 = vpop.permute.xlu0 %776
      %778 = vrot.lane.b32.xlu0 %v605, 16
      %v779 = vpop.permute.xlu0 %778
      %780 = vrot.lane.b32.xlu0 %v606, 16
      %v781 = vpop.permute.xlu0 %780
      %782 = vrot.lane.b32.xlu0 %v607, 16
      %v783 = vpop.permute.xlu0 %782
      %784 = vrot.lane.b32.xlu0 %v608, 16
      %v785 = vpop.permute.xlu0 %784
      %786 = vrot.lane.b32.xlu0 %v609, 16
      %v787 = vpop.permute.xlu0 %786
      %788 = vrot.lane.b32.xlu0 %v610, 16
      %v789 = vpop.permute.xlu0 %788
      %790 = vrot.lane.b32.xlu0 %v611, 16
      %v791 = vpop.permute.xlu0 %790
      %792 = vrot.lane.b32.xlu0 %v612, 16
      %v793 = vpop.permute.xlu0 %792
      %794 = vrot.lane.b32.xlu0 %v613, 16
      %v795 = vpop.permute.xlu0 %794
      %796 = vrot.lane.b32.xlu0 %v614, 16
      %v797 = vpop.permute.xlu0 %796
      %798 = vrot.lane.b32.xlu0 %v615, 16
      %v799 = vpop.permute.xlu0 %798
      %800 = vrot.lane.b32.xlu0 %v616, 16
      %v801 = vpop.permute.xlu0 %800
      %802 = vrot.lane.b32.xlu0 %v617, 16
      %v803 = vpop.permute.xlu0 %802
      %804 = vrot.lane.b32.xlu0 %v618, 16
      %v805 = vpop.permute.xlu0 %804
      %806 = vrot.lane.b32.xlu0 %v619, 16
      %v807 = vpop.permute.xlu0 %806
      %808 = vrot.lane.b32.xlu0 %v620, 16
      %v809 = vpop.permute.xlu0 %808
      %810 = vrot.lane.b32.xlu0 %v621, 16
      %v811 = vpop.permute.xlu0 %810
      %812 = vrot.lane.b32.xlu0 %v622, 16
      %v813 = vpop.permute.xlu0 %812
      %814 = vrot.lane.b32.xlu0 %v623, 16
      %v815 = vpop.permute.xlu0 %814
      %816 = vrot.lane.b32.xlu0 %v624, 16
      %v817 = vpop.permute.xlu0 %816
      %914 = vrot.lane.b32.xlu0 %v626, 32
      %v915 = vpop.permute.xlu0 %914
      %916 = vrot.lane.b32.xlu0 %v627, 32
      %v917 = vpop.permute.xlu0 %916
      %918 = vrot.lane.b32.xlu0 %v628, 32
      %v919 = vpop.permute.xlu0 %918
      %920 = vrot.lane.b32.xlu0 %v629, 32
      %v921 = vpop.permute.xlu0 %920
      %922 = vrot.lane.b32.xlu0 %v630, 32
      %v923 = vpop.permute.xlu0 %922
      %924 = vrot.lane.b32.xlu0 %v631, 32
      %v925 = vpop.permute.xlu0 %924
      %926 = vrot.lane.b32.xlu0 %v632, 32
      %v927 = vpop.permute.xlu0 %926
      %928 = vrot.lane.b32.xlu0 %v633, 32
      %v929 = vpop.permute.xlu0 %928
      %930 = vrot.lane.b32.xlu0 %v634, 32
      %v931 = vpop.permute.xlu0 %930
      %932 = vrot.lane.b32.xlu0 %v635, 32
      %v933 = vpop.permute.xlu0 %932
      %934 = vrot.lane.b32.xlu0 %v636, 32
      %v935 = vpop.permute.xlu0 %934
      %936 = vrot.lane.b32.xlu0 %v637, 32
      %v937 = vpop.permute.xlu0 %936
      %938 = vrot.lane.b32.xlu0 %v638, 32
      %v939 = vpop.permute.xlu0 %938
      %940 = vrot.lane.b32.xlu0 %v639, 32
      %v941 = vpop.permute.xlu0 %940
      %942 = vrot.lane.b32.xlu0 %v640, 32
      %v943 = vpop.permute.xlu0 %942
      %944 = vrot.lane.b32.xlu0 %v641, 32
      %v945 = vpop.permute.xlu0 %944
      %946 = vrot.lane.b32.xlu0 %v642, 32
      %v947 = vpop.permute.xlu0 %946
      %948 = vrot.lane.b32.xlu0 %v643, 32
      %v949 = vpop.permute.xlu0 %948
      %950 = vrot.lane.b32.xlu0 %v644, 32
      %v951 = vpop.permute.xlu0 %950
      %952 = vrot.lane.b32.xlu0 %v645, 32
      %v953 = vpop.permute.xlu0 %952
      %954 = vrot.lane.b32.xlu0 %v646, 32
      %v955 = vpop.permute.xlu0 %954
      %956 = vrot.lane.b32.xlu0 %v647, 32
      %v957 = vpop.permute.xlu0 %956
      %958 = vrot.lane.b32.xlu0 %v648, 32
      %v959 = vpop.permute.xlu0 %958
      %960 = vrot.lane.b32.xlu0 %v649, 32
      %v961 = vpop.permute.xlu0 %960
      %962 = vrot.lane.b32.xlu0 %v650, 32
      %v963 = vpop.permute.xlu0 %962
      %964 = vrot.lane.b32.xlu0 %v651, 32
      %v965 = vpop.permute.xlu0 %964
      %966 = vrot.lane.b32.xlu0 %v652, 32
      %v967 = vpop.permute.xlu0 %966
      %968 = vrot.lane.b32.xlu0 %v653, 32
      %v969 = vpop.permute.xlu0 %968
      %970 = vrot.lane.b32.xlu0 %v654, 32
      %v971 = vpop.permute.xlu0 %970
      %972 = vrot.lane.b32.xlu0 %v655, 32
      %v973 = vpop.permute.xlu0 %972
      %974 = vrot.lane.b32.xlu0 %v656, 32
      %v975 = vpop.permute.xlu0 %974
      %976 = vrot.lane.b32.xlu0 %v657, 32
      %v977 = vpop.permute.xlu0 %976
      %978 = vrot.lane.b32.xlu0 %v658, 32
      %v979 = vpop.permute.xlu0 %978
      %980 = vrot.lane.b32.xlu0 %v659, 32
      %v981 = vpop.permute.xlu0 %980
      %982 = vrot.lane.b32.xlu0 %v660, 32
      %v983 = vpop.permute.xlu0 %982
      %984 = vrot.lane.b32.xlu0 %v661, 32
      %v985 = vpop.permute.xlu0 %984
      %986 = vrot.lane.b32.xlu0 %v662, 32
      %v987 = vpop.permute.xlu0 %986
      %988 = vrot.lane.b32.xlu0 %v663, 32
      %v989 = vpop.permute.xlu0 %988
      %990 = vrot.lane.b32.xlu0 %v664, 32
      %v991 = vpop.permute.xlu0 %990
      %992 = vrot.lane.b32.xlu0 %v665, 32
      %v993 = vpop.permute.xlu0 %992
      %994 = vrot.lane.b32.xlu0 %v666, 32
      %v995 = vpop.permute.xlu0 %994
      %996 = vrot.lane.b32.xlu0 %v667, 32
      %v997 = vpop.permute.xlu0 %996
      %998 = vrot.lane.b32.xlu0 %v668, 32
      %v999 = vpop.permute.xlu0 %998
      %1000 = vrot.lane.b32.xlu0 %v669, 32
      %v1001 = vpop.permute.xlu0 %1000
      %1002 = vrot.lane.b32.xlu0 %v670, 32
      %v1003 = vpop.permute.xlu0 %1002
      %1004 = vrot.lane.b32.xlu0 %v671, 32
      %v1005 = vpop.permute.xlu0 %1004
      %1006 = vrot.lane.b32.xlu0 %v672, 32
      %v1007 = vpop.permute.xlu0 %1006
      %1008 = vrot.lane.b32.xlu0 %v673, 32
      %v1009 = vpop.permute.xlu0 %1008
      %v1058 = vsel %vm464, %v528, %v723
      %v1059 = vsel %vm464, %v529, %v725
      %v1060 = vsel %vm464, %v530, %v727
      %v1061 = vsel %vm464, %v531, %v729
      %v1062 = vsel %vm464, %v532, %v731
      %v1063 = vsel %vm464, %v533, %v733
      %v1064 = vsel %vm464, %v534, %v735
      %v1065 = vsel %vm464, %v535, %v737
      %v1066 = vsel %vm464, %v536, %v739
      %v1067 = vsel %vm464, %v537, %v741
      %v1068 = vsel %vm464, %v538, %v743
      %v1069 = vsel %vm464, %v539, %v745
      %v1070 = vsel %vm464, %v540, %v747
      %v1071 = vsel %vm464, %v541, %v749
      %v1072 = vsel %vm464, %v542, %v751
      %v1073 = vsel %vm464, %v543, %v753
      %v1074 = vsel %vm464, %v544, %v755
      %v1075 = vsel %vm464, %v545, %v757
      %v1076 = vsel %vm464, %v546, %v759
      %v1077 = vsel %vm464, %v547, %v761
      %v1078 = vsel %vm464, %v548, %v763
      %v1079 = vsel %vm464, %v549, %v765
      %v1080 = vsel %vm464, %v550, %v767
      %v1081 = vsel %vm464, %v551, %v769
      %v1082 = vsel %vm464, %v552, %v771
      %v1083 = vsel %vm464, %v553, %v773
      %v1084 = vsel %vm464, %v554, %v775
      %v1085 = vsel %vm464, %v555, %v777
      %v1086 = vsel %vm464, %v556, %v779
      %v1087 = vsel %vm464, %v557, %v781
      %v1088 = vsel %vm464, %v558, %v783
      %v1089 = vsel %vm464, %v559, %v785
      %v1090 = vsel %vm464, %v560, %v787
      %v1091 = vsel %vm464, %v561, %v789
      %v1092 = vsel %vm464, %v562, %v791
      %v1093 = vsel %vm464, %v563, %v793
      %v1094 = vsel %vm464, %v564, %v795
      %v1095 = vsel %vm464, %v565, %v797
      %v1096 = vsel %vm464, %v566, %v799
      %v1097 = vsel %vm464, %v567, %v801
      %v1098 = vsel %vm464, %v568, %v803
      %v1099 = vsel %vm464, %v569, %v805
      %v1100 = vsel %vm464, %v570, %v807
      %v1101 = vsel %vm464, %v571, %v809
      %v1102 = vsel %vm464, %v572, %v811
      %v1103 = vsel %vm464, %v573, %v813
      %v1104 = vsel %vm464, %v574, %v815
      %v1105 = vsel %vm464, %v575, %v817
      %vm1106 = vcmask 261120
      %v1107 = vsel %vm1106, %v1058, %v915
      %v1108 = vsel %vm1106, %v1059, %v917
      %v1109 = vsel %vm1106, %v1060, %v919
      %v1110 = vsel %vm1106, %v1061, %v921
      %v1111 = vsel %vm1106, %v1062, %v923
      %v1112 = vsel %vm1106, %v1063, %v925
      %v1113 = vsel %vm1106, %v1064, %v927
      %v1114 = vsel %vm1106, %v1065, %v929
      %v1115 = vsel %vm1106, %v1066, %v931
      %v1116 = vsel %vm1106, %v1067, %v933
      %v1117 = vsel %vm1106, %v1068, %v935
      %v1118 = vsel %vm1106, %v1069, %v937
      %v1119 = vsel %vm1106, %v1070, %v939
      %v1120 = vsel %vm1106, %v1071, %v941
      %v1121 = vsel %vm1106, %v1072, %v943
      %v1122 = vsel %vm1106, %v1073, %v945
      %v1123 = vsel %vm1106, %v1074, %v947
      %v1124 = vsel %vm1106, %v1075, %v949
      %v1125 = vsel %vm1106, %v1076, %v951
      %v1126 = vsel %vm1106, %v1077, %v953
      %v1127 = vsel %vm1106, %v1078, %v955
      %v1128 = vsel %vm1106, %v1079, %v957
      %v1129 = vsel %vm1106, %v1080, %v959
      %v1130 = vsel %vm1106, %v1081, %v961
      %v1131 = vsel %vm1106, %v1082, %v963
      %v1132 = vsel %vm1106, %v1083, %v965
      %v1133 = vsel %vm1106, %v1084, %v967
      %v1134 = vsel %vm1106, %v1085, %v969
      %v1135 = vsel %vm1106, %v1086, %v971
      %v1136 = vsel %vm1106, %v1087, %v973
      %v1137 = vsel %vm1106, %v1088, %v975
      %v1138 = vsel %vm1106, %v1089, %v977
      %v1139 = vsel %vm1106, %v1090, %v979
      %v1140 = vsel %vm1106, %v1091, %v981
      %v1141 = vsel %vm1106, %v1092, %v983
      %v1142 = vsel %vm1106, %v1093, %v985
      %v1143 = vsel %vm1106, %v1094, %v987
      %v1144 = vsel %vm1106, %v1095, %v989
      %v1145 = vsel %vm1106, %v1096, %v991
      %v1146 = vsel %vm1106, %v1097, %v993
      %v1147 = vsel %vm1106, %v1098, %v995
      %v1148 = vsel %vm1106, %v1099, %v997
      %v1149 = vsel %vm1106, %v1100, %v999
      %v1150 = vsel %vm1106, %v1101, %v1001
      %v1151 = vsel %vm1106, %v1102, %v1003
      %v1152 = vsel %vm1106, %v1103, %v1005
      %v1153 = vsel %vm1106, %v1104, %v1007
      %v1154 = vsel %vm1106, %v1105, %v1009
      %vm1203 = vcmask 1046528
      %v1204 = vrot.slane %v1107, 1
      %v1205 = vrot.slane %v1108, 1
      %v1206 = vsel %vm1203, %v1204, %v1205
      %v1207 = vrot.slane %v1109, 1
      %v1208 = vsel %vm1203, %v1205, %v1207
      %v1209 = vrot.slane %v1110, 1
      %v1210 = vrot.slane %v1111, 1
      %v1211 = vsel %vm1203, %v1209, %v1210
      %v1212 = vrot.slane %v1112, 1
      %v1213 = vsel %vm1203, %v1210, %v1212
      %v1214 = vrot.slane %v1113, 1
      %v1215 = vrot.slane %v1114, 1
      %v1216 = vsel %vm1203, %v1214, %v1215
      %v1217 = vrot.slane %v1115, 1
      %v1218 = vsel %vm1203, %v1215, %v1217
      %v1219 = vrot.slane %v1116, 1
      %v1220 = vrot.slane %v1117, 1
      %v1221 = vsel %vm1203, %v1219, %v1220
      %v1222 = vrot.slane %v1118, 1
      %v1223 = vsel %vm1203, %v1220, %v1222
      %v1224 = vrot.slane %v1119, 1
      %v1225 = vrot.slane %v1120, 1
      %v1226 = vsel %vm1203, %v1224, %v1225
      %v1227 = vrot.slane %v1121, 1
      %v1228 = vsel %vm1203, %v1225, %v1227
      %v1229 = vrot.slane %v1122, 1
      %v1230 = vrot.slane %v1123, 1
      %v1231 = vsel %vm1203, %v1229, %v1230
      %v1232 = vrot.slane %v1124, 1
      %v1233 = vsel %vm1203, %v1230, %v1232
      %v1234 = vrot.slane %v1125, 1
      %v1235 = vrot.slane %v1126, 1
      %v1236 = vsel %vm1203, %v1234, %v1235
      %v1237 = vrot.slane %v1127, 1
      %v1238 = vsel %vm1203, %v1235, %v1237
      %v1239 = vrot.slane %v1128, 1
      %v1240 = vrot.slane %v1129, 1
      %v1241 = vsel %vm1203, %v1239, %v1240
      %v1242 = vrot.slane %v1130, 1
      %v1243 = vsel %vm1203, %v1240, %v1242
      %v1244 = vrot.slane %v1131, 1
      %v1245 = vrot.slane %v1132, 1
      %v1246 = vsel %vm1203, %v1244, %v1245
      %v1247 = vrot.slane %v1133, 1
      %v1248 = vsel %vm1203, %v1245, %v1247
      %v1249 = vrot.slane %v1134, 1
      %v1250 = vrot.slane %v1135, 1
      %v1251 = vsel %vm1203, %v1249, %v1250
      %v1252 = vrot.slane %v1136, 1
      %v1253 = vsel %vm1203, %v1250, %v1252
      %v1254 = vrot.slane %v1137, 1
      %v1255 = vrot.slane %v1138, 1
      %v1256 = vsel %vm1203, %v1254, %v1255
      %v1257 = vrot.slane %v1139, 1
      %v1258 = vsel %vm1203, %v1255, %v1257
      %v1259 = vrot.slane %v1140, 1
      %v1260 = vrot.slane %v1141, 1
      %v1261 = vsel %vm1203, %v1259, %v1260
      %v1262 = vrot.slane %v1142, 1
      %v1263 = vsel %vm1203, %v1260, %v1262
      %v1264 = vrot.slane %v1143, 1
      %v1265 = vrot.slane %v1144, 1
      %v1266 = vsel %vm1203, %v1264, %v1265
      %v1267 = vrot.slane %v1145, 1
      %v1268 = vsel %vm1203, %v1265, %v1267
      %v1269 = vrot.slane %v1146, 1
      %v1270 = vrot.slane %v1147, 1
      %v1271 = vsel %vm1203, %v1269, %v1270
      %v1272 = vrot.slane %v1148, 1
      %v1273 = vsel %vm1203, %v1270, %v1272
      %v1274 = vrot.slane %v1149, 1
      %v1275 = vrot.slane %v1150, 1
      %v1276 = vsel %vm1203, %v1274, %v1275
      %v1277 = vrot.slane %v1151, 1
      %v1278 = vsel %vm1203, %v1275, %v1277
      %v1279 = vrot.slane %v1152, 1
      %v1280 = vrot.slane %v1153, 1
      %v1281 = vsel %vm1203, %v1279, %v1280
      %v1282 = vrot.slane %v1154, 1
      %v1283 = vsel %vm1203, %v1280, %v1282
      %1284 = vrot.lane.b32.xlu0 %v1206, 48
      %v1285 = vpop.permute.xlu0 %1284
      %1286 = vrot.lane.b32.xlu0 %v1208, 48
      %v1287 = vpop.permute.xlu0 %1286
      %1288 = vrot.lane.b32.xlu0 %v1211, 48
      %v1289 = vpop.permute.xlu0 %1288
      %1290 = vrot.lane.b32.xlu0 %v1213, 48
      %v1291 = vpop.permute.xlu0 %1290
      %1292 = vrot.lane.b32.xlu0 %v1216, 48
      %v1293 = vpop.permute.xlu0 %1292
      %1294 = vrot.lane.b32.xlu0 %v1218, 48
      %v1295 = vpop.permute.xlu0 %1294
      %1296 = vrot.lane.b32.xlu0 %v1221, 48
      %v1297 = vpop.permute.xlu0 %1296
      %1298 = vrot.lane.b32.xlu0 %v1223, 48
      %v1299 = vpop.permute.xlu0 %1298
      %1300 = vrot.lane.b32.xlu0 %v1226, 48
      %v1301 = vpop.permute.xlu0 %1300
      %1302 = vrot.lane.b32.xlu0 %v1228, 48
      %v1303 = vpop.permute.xlu0 %1302
      %1304 = vrot.lane.b32.xlu0 %v1231, 48
      %v1305 = vpop.permute.xlu0 %1304
      %1306 = vrot.lane.b32.xlu0 %v1233, 48
      %v1307 = vpop.permute.xlu0 %1306
      %1308 = vrot.lane.b32.xlu0 %v1236, 48
      %v1309 = vpop.permute.xlu0 %1308
      %1310 = vrot.lane.b32.xlu0 %v1238, 48
      %v1311 = vpop.permute.xlu0 %1310
      %1312 = vrot.lane.b32.xlu0 %v1241, 48
      %v1313 = vpop.permute.xlu0 %1312
      %1314 = vrot.lane.b32.xlu0 %v1243, 48
      %v1315 = vpop.permute.xlu0 %1314
      %1316 = vrot.lane.b32.xlu0 %v1246, 48
      %v1317 = vpop.permute.xlu0 %1316
      %1318 = vrot.lane.b32.xlu0 %v1248, 48
      %v1319 = vpop.permute.xlu0 %1318
      %1320 = vrot.lane.b32.xlu0 %v1251, 48
      %v1321 = vpop.permute.xlu0 %1320
      %1322 = vrot.lane.b32.xlu0 %v1253, 48
      %v1323 = vpop.permute.xlu0 %1322
      %1324 = vrot.lane.b32.xlu0 %v1256, 48
      %v1325 = vpop.permute.xlu0 %1324
      %1326 = vrot.lane.b32.xlu0 %v1258, 48
      %v1327 = vpop.permute.xlu0 %1326
      %1328 = vrot.lane.b32.xlu0 %v1261, 48
      %v1329 = vpop.permute.xlu0 %1328
      %1330 = vrot.lane.b32.xlu0 %v1263, 48
      %v1331 = vpop.permute.xlu0 %1330
      %1332 = vrot.lane.b32.xlu0 %v1266, 48
      %v1333 = vpop.permute.xlu0 %1332
      %1334 = vrot.lane.b32.xlu0 %v1268, 48
      %v1335 = vpop.permute.xlu0 %1334
      %1336 = vrot.lane.b32.xlu0 %v1271, 48
      %v1337 = vpop.permute.xlu0 %1336
      %1338 = vrot.lane.b32.xlu0 %v1273, 48
      %v1339 = vpop.permute.xlu0 %1338
      %1340 = vrot.lane.b32.xlu0 %v1276, 48
      %v1341 = vpop.permute.xlu0 %1340
      %1342 = vrot.lane.b32.xlu0 %v1278, 48
      %v1343 = vpop.permute.xlu0 %1342
      %1344 = vrot.lane.b32.xlu0 %v1281, 48
      %v1345 = vpop.permute.xlu0 %1344
      %1346 = vrot.lane.b32.xlu0 %v1283, 48
      %v1347 = vpop.permute.xlu0 %1346
      %vm1380 = vcmask 1045504
      %v1381 = vrot.slane %v1107, 2
      %v1382 = vrot.slane %v1108, 2
      %v1383 = vsel %vm1380, %v1381, %v1382
      %v1384 = vrot.slane %v1109, 2
      %v1385 = vsel %vm1380, %v1382, %v1384
      %v1386 = vrot.slane %v1110, 2
      %v1387 = vrot.slane %v1111, 2
      %v1388 = vsel %vm1380, %v1386, %v1387
      %v1389 = vrot.slane %v1112, 2
      %v1390 = vsel %vm1380, %v1387, %v1389
      %v1391 = vrot.slane %v1113, 2
      %v1392 = vrot.slane %v1114, 2
      %v1393 = vsel %vm1380, %v1391, %v1392
      %v1394 = vrot.slane %v1115, 2
      %v1395 = vsel %vm1380, %v1392, %v1394
      %v1396 = vrot.slane %v1116, 2
      %v1397 = vrot.slane %v1117, 2
      %v1398 = vsel %vm1380, %v1396, %v1397
      %v1399 = vrot.slane %v1118, 2
      %v1400 = vsel %vm1380, %v1397, %v1399
      %v1401 = vrot.slane %v1119, 2
      %v1402 = vrot.slane %v1120, 2
      %v1403 = vsel %vm1380, %v1401, %v1402
      %v1404 = vrot.slane %v1121, 2
      %v1405 = vsel %vm1380, %v1402, %v1404
      %v1406 = vrot.slane %v1122, 2
      %v1407 = vrot.slane %v1123, 2
      %v1408 = vsel %vm1380, %v1406, %v1407
      %v1409 = vrot.slane %v1124, 2
      %v1410 = vsel %vm1380, %v1407, %v1409
      %v1411 = vrot.slane %v1125, 2
      %v1412 = vrot.slane %v1126, 2
      %v1413 = vsel %vm1380, %v1411, %v1412
      %v1414 = vrot.slane %v1127, 2
      %v1415 = vsel %vm1380, %v1412, %v1414
      %v1416 = vrot.slane %v1128, 2
      %v1417 = vrot.slane %v1129, 2
      %v1418 = vsel %vm1380, %v1416, %v1417
      %v1419 = vrot.slane %v1130, 2
      %v1420 = vsel %vm1380, %v1417, %v1419
      %v1421 = vrot.slane %v1131, 2
      %v1422 = vrot.slane %v1132, 2
      %v1423 = vsel %vm1380, %v1421, %v1422
      %v1424 = vrot.slane %v1133, 2
      %v1425 = vsel %vm1380, %v1422, %v1424
      %v1426 = vrot.slane %v1134, 2
      %v1427 = vrot.slane %v1135, 2
      %v1428 = vsel %vm1380, %v1426, %v1427
      %v1429 = vrot.slane %v1136, 2
      %v1430 = vsel %vm1380, %v1427, %v1429
      %v1431 = vrot.slane %v1137, 2
      %v1432 = vrot.slane %v1138, 2
      %v1433 = vsel %vm1380, %v1431, %v1432
      %v1434 = vrot.slane %v1139, 2
      %v1435 = vsel %vm1380, %v1432, %v1434
      %v1436 = vrot.slane %v1140, 2
      %v1437 = vrot.slane %v1141, 2
      %v1438 = vsel %vm1380, %v1436, %v1437
      %v1439 = vrot.slane %v1142, 2
      %v1440 = vsel %vm1380, %v1437, %v1439
      %v1441 = vrot.slane %v1143, 2
      %v1442 = vrot.slane %v1144, 2
      %v1443 = vsel %vm1380, %v1441, %v1442
      %v1444 = vrot.slane %v1145, 2
      %v1445 = vsel %vm1380, %v1442, %v1444
      %v1446 = vrot.slane %v1146, 2
      %v1447 = vrot.slane %v1147, 2
      %v1448 = vsel %vm1380, %v1446, %v1447
      %v1449 = vrot.slane %v1148, 2
      %v1450 = vsel %vm1380, %v1447, %v1449
      %v1451 = vrot.slane %v1149, 2
      %v1452 = vrot.slane %v1150, 2
      %v1453 = vsel %vm1380, %v1451, %v1452
      %v1454 = vrot.slane %v1151, 2
      %v1455 = vsel %vm1380, %v1452, %v1454
      %v1456 = vrot.slane %v1152, 2
      %v1457 = vrot.slane %v1153, 2
      %v1458 = vsel %vm1380, %v1456, %v1457
      %v1459 = vrot.slane %v1154, 2
      %v1460 = vsel %vm1380, %v1457, %v1459
      %1461 = vrot.lane.b32.xlu0 %v1383, 96
      %v1462 = vpop.permute.xlu0 %1461
      %1463 = vrot.lane.b32.xlu0 %v1385, 96
      %v1464 = vpop.permute.xlu0 %1463
      %1465 = vrot.lane.b32.xlu0 %v1388, 96
      %v1466 = vpop.permute.xlu0 %1465
      %1467 = vrot.lane.b32.xlu0 %v1390, 96
      %v1468 = vpop.permute.xlu0 %1467
      %1469 = vrot.lane.b32.xlu0 %v1393, 96
      %v1470 = vpop.permute.xlu0 %1469
      %1471 = vrot.lane.b32.xlu0 %v1395, 96
      %v1472 = vpop.permute.xlu0 %1471
      %1473 = vrot.lane.b32.xlu0 %v1398, 96
      %v1474 = vpop.permute.xlu0 %1473
      %1475 = vrot.lane.b32.xlu0 %v1400, 96
      %v1476 = vpop.permute.xlu0 %1475
      %1477 = vrot.lane.b32.xlu0 %v1403, 96
      %v1478 = vpop.permute.xlu0 %1477
      %1479 = vrot.lane.b32.xlu0 %v1405, 96
      %v1480 = vpop.permute.xlu0 %1479
      %1481 = vrot.lane.b32.xlu0 %v1408, 96
      %v1482 = vpop.permute.xlu0 %1481
      %1483 = vrot.lane.b32.xlu0 %v1410, 96
      %v1484 = vpop.permute.xlu0 %1483
      %1485 = vrot.lane.b32.xlu0 %v1413, 96
      %v1486 = vpop.permute.xlu0 %1485
      %1487 = vrot.lane.b32.xlu0 %v1415, 96
      %v1488 = vpop.permute.xlu0 %1487
      %1489 = vrot.lane.b32.xlu0 %v1418, 96
      %v1490 = vpop.permute.xlu0 %1489
      %1491 = vrot.lane.b32.xlu0 %v1420, 96
      %v1492 = vpop.permute.xlu0 %1491
      %1493 = vrot.lane.b32.xlu0 %v1423, 96
      %v1494 = vpop.permute.xlu0 %1493
      %1495 = vrot.lane.b32.xlu0 %v1425, 96
      %v1496 = vpop.permute.xlu0 %1495
      %1497 = vrot.lane.b32.xlu0 %v1428, 96
      %v1498 = vpop.permute.xlu0 %1497
      %1499 = vrot.lane.b32.xlu0 %v1430, 96
      %v1500 = vpop.permute.xlu0 %1499
      %1501 = vrot.lane.b32.xlu0 %v1433, 96
      %v1502 = vpop.permute.xlu0 %1501
      %1503 = vrot.lane.b32.xlu0 %v1435, 96
      %v1504 = vpop.permute.xlu0 %1503
      %1505 = vrot.lane.b32.xlu0 %v1438, 96
      %v1506 = vpop.permute.xlu0 %1505
      %1507 = vrot.lane.b32.xlu0 %v1440, 96
      %v1508 = vpop.permute.xlu0 %1507
      %1509 = vrot.lane.b32.xlu0 %v1443, 96
      %v1510 = vpop.permute.xlu0 %1509
      %1511 = vrot.lane.b32.xlu0 %v1445, 96
      %v1512 = vpop.permute.xlu0 %1511
      %1513 = vrot.lane.b32.xlu0 %v1448, 96
      %v1514 = vpop.permute.xlu0 %1513
      %1515 = vrot.lane.b32.xlu0 %v1450, 96
      %v1516 = vpop.permute.xlu0 %1515
      %1517 = vrot.lane.b32.xlu0 %v1453, 96
      %v1518 = vpop.permute.xlu0 %1517
      %1519 = vrot.lane.b32.xlu0 %v1455, 96
      %v1520 = vpop.permute.xlu0 %1519
      %1521 = vrot.lane.b32.xlu0 %v1458, 96
      %v1522 = vpop.permute.xlu0 %1521
      %1523 = vrot.lane.b32.xlu0 %v1460, 96
      %v1524 = vpop.permute.xlu0 %1523
      %vm1557 = vcmask 392192
      %v1558 = vsel %vm1557, %v1107, %v1285
      %v1559 = vsel %vm1557, %v1108, %v1287
      %v1560 = vsel %vm1557, %v1110, %v1289
      %v1561 = vsel %vm1557, %v1111, %v1291
      %v1562 = vsel %vm1557, %v1113, %v1293
      %v1563 = vsel %vm1557, %v1114, %v1295
      %v1564 = vsel %vm1557, %v1116, %v1297
      %v1565 = vsel %vm1557, %v1117, %v1299
      %v1566 = vsel %vm1557, %v1119, %v1301
      %v1567 = vsel %vm1557, %v1120, %v1303
      %v1568 = vsel %vm1557, %v1122, %v1305
      %v1569 = vsel %vm1557, %v1123, %v1307
      %v1570 = vsel %vm1557, %v1125, %v1309
      %v1571 = vsel %vm1557, %v1126, %v1311
      %v1572 = vsel %vm1557, %v1128, %v1313
      %v1573 = vsel %vm1557, %v1129, %v1315
      %v1574 = vsel %vm1557, %v1131, %v1317
      %v1575 = vsel %vm1557, %v1132, %v1319
      %v1576 = vsel %vm1557, %v1134, %v1321
      %v1577 = vsel %vm1557, %v1135, %v1323
      %v1578 = vsel %vm1557, %v1137, %v1325
      %v1579 = vsel %vm1557, %v1138, %v1327
      %v1580 = vsel %vm1557, %v1140, %v1329
      %v1581 = vsel %vm1557, %v1141, %v1331
      %v1582 = vsel %vm1557, %v1143, %v1333
      %v1583 = vsel %vm1557, %v1144, %v1335
      %v1584 = vsel %vm1557, %v1146, %v1337
      %v1585 = vsel %vm1557, %v1147, %v1339
      %v1586 = vsel %vm1557, %v1149, %v1341
      %v1587 = vsel %vm1557, %v1150, %v1343
      %v1588 = vsel %vm1557, %v1152, %v1345
      %v1589 = vsel %vm1557, %v1153, %v1347
      %vm1590 = vcmask 785408
      %v1591 = vsel %vm1590, %v1558, %v1462
      %v1592 = vsel %vm1590, %v1559, %v1464
      %v1593 = vsel %vm1590, %v1560, %v1466
      %v1594 = vsel %vm1590, %v1561, %v1468
      %v1595 = vsel %vm1590, %v1562, %v1470
      %v1596 = vsel %vm1590, %v1563, %v1472
      %v1597 = vsel %vm1590, %v1564, %v1474
      %v1598 = vsel %vm1590, %v1565, %v1476
      %v1599 = vsel %vm1590, %v1566, %v1478
      %v1600 = vsel %vm1590, %v1567, %v1480
      %v1601 = vsel %vm1590, %v1568, %v1482
      %v1602 = vsel %vm1590, %v1569, %v1484
      %v1603 = vsel %vm1590, %v1570, %v1486
      %v1604 = vsel %vm1590, %v1571, %v1488
      %v1605 = vsel %vm1590, %v1572, %v1490
      %v1606 = vsel %vm1590, %v1573, %v1492
      %v1607 = vsel %vm1590, %v1574, %v1494
      %v1608 = vsel %vm1590, %v1575, %v1496
      %v1609 = vsel %vm1590, %v1576, %v1498
      %v1610 = vsel %vm1590, %v1577, %v1500
      %v1611 = vsel %vm1590, %v1578, %v1502
      %v1612 = vsel %vm1590, %v1579, %v1504
      %v1613 = vsel %vm1590, %v1580, %v1506
      %v1614 = vsel %vm1590, %v1581, %v1508
      %v1615 = vsel %vm1590, %v1582, %v1510
      %v1616 = vsel %vm1590, %v1583, %v1512
      %v1617 = vsel %vm1590, %v1584, %v1514
      %v1618 = vsel %vm1590, %v1585, %v1516
      %v1619 = vsel %vm1590, %v1586, %v1518
      %v1620 = vsel %vm1590, %v1587, %v1520
      %v1621 = vsel %vm1590, %v1588, %v1522
      %v1622 = vsel %vm1590, %v1589, %v1524
      %v1623 = vld [vmem:[%s3] sm:$0xff]
      %v1624 = vld [vmem:[%s3 + $0x8] sm:$0xff]
      %v1625 = vld [vmem:[%s3 + $0x10] sm:$0xff]
      %v1626 = vld [vmem:[%s3 + $0x18] sm:$0xff]
      %v1627 = vld [vmem:[%s3 + $0x20] sm:$0xff]
      %v1628 = vld [vmem:[%s3 + $0x28] sm:$0xff]
      %v1629 = vld [vmem:[%s3 + $0x30] sm:$0xff]
      %v1630 = vld [vmem:[%s3 + $0x38] sm:$0xff]
      %v1631 = vld [vmem:[%s3 + $0x40] sm:$0xff]
      %v1632 = vld [vmem:[%s3 + $0x48] sm:$0xff]
      %v1633 = vld [vmem:[%s3 + $0x50] sm:$0xff]
      %v1634 = vld [vmem:[%s3 + $0x58] sm:$0xff]
      %v1635 = vld [vmem:[%s3 + $0x60] sm:$0xff]
      %v1636 = vld [vmem:[%s3 + $0x68] sm:$0xff]
      %v1637 = vld [vmem:[%s3 + $0x70] sm:$0xff]
      %v1638 = vld [vmem:[%s3 + $0x78] sm:$0xff]
      %v1639 = vld [vmem:[%s3 + $0x80] sm:$0xff]
      %v1640 = vld [vmem:[%s3 + $0x88] sm:$0xff]
      %v1641 = vsel %vm464, %v1462, 0
      %v1643 = vsel %vm464, %v1464, 0
      %v1645 = vsel %vm464, %v1466, 0
      %v1647 = vsel %vm464, %v1468, 0
      %v1649 = vsel %vm464, %v1470, 0
      %v1651 = vsel %vm464, %v1472, 0
      %v1653 = vsel %vm464, %v1474, 0
      %v1655 = vsel %vm464, %v1476, 0
      %v1657 = vsel %vm464, %v1478, 0
      %v1659 = vsel %vm464, %v1480, 0
      %v1661 = vsel %vm464, %v1482, 0
      %v1663 = vsel %vm464, %v1484, 0
      %v1665 = vsel %vm464, %v1486, 0
      %v1667 = vsel %vm464, %v1488, 0
      %v1669 = vsel %vm464, %v1490, 0
      %v1671 = vsel %vm464, %v1492, 0
      %v1673 = vsel %vm464, %v1494, 0
      %v1675 = vsel %vm464, %v1496, 0
      %v1677 = vsel %vm464, %v1498, 0
      %v1679 = vsel %vm464, %v1500, 0
      %v1681 = vsel %vm464, %v1502, 0
      %v1683 = vsel %vm464, %v1504, 0
      %v1685 = vsel %vm464, %v1506, 0
      %v1687 = vsel %vm464, %v1508, 0
      %v1689 = vsel %vm464, %v1510, 0
      %v1691 = vsel %vm464, %v1512, 0
      %v1693 = vsel %vm464, %v1514, 0
      %v1695 = vsel %vm464, %v1516, 0
      %v1697 = vsel %vm464, %v1518, 0
      %v1699 = vsel %vm464, %v1520, 0
      %v1701 = vsel %vm464, %v1522, 0
      %v1703 = vsel %vm464, %v1524, 0
      %1705 = vmatprep.subr.mxu0 0.0
      %1706 = vmatpush1.msra.mxu0 %v1623
      %1707 = vmatprep.subr.mxu0 0.0
      %1708 = vmatpush1.msra.mxu0 %v1624
      %1709 = vmatprep.subr.mxu0 0.0
      %1710 = vmatpush1.msra.mxu0 %v1625
      %1711 = vmatprep.subr.mxu0 0.0
      %1712 = vmatpush1.msra.mxu0 %v1626
      %1713 = vmatprep.subr.mxu0 0.0
      %1714 = vmatpush1.msra.mxu0 %v1627
      %1715 = vmatprep.subr.mxu0 0.0
      %1716 = vmatpush1.msra.mxu0 %v1628
      %1717 = vmatprep.subr.mxu0 0.0
      %1718 = vmatpush1.msra.mxu0 %v1629
      %1719 = vmatprep.subr.mxu0 0.0
      %1720 = vmatpush1.msra.mxu0 %v1630
      %1721 = vmatprep.subr.mxu0 0.0
      %1722 = vmatpush1.msra.mxu0 %v1631
      %1723 = vmatprep.subr.mxu0 0.0
      %1724 = vmatpush1.msra.mxu0 %v1632
      %1725 = vmatprep.subr.mxu0 0.0
      %1726 = vmatpush1.msra.mxu0 %v1633
      %1727 = vmatprep.subr.mxu0 0.0
      %1728 = vmatpush1.msra.mxu0 %v1634
      %1729 = vmatprep.subr.mxu0 0.0
      %1730 = vmatpush1.msra.mxu0 %v1635
      %1731 = vmatprep.subr.mxu0 0.0
      %1732 = vmatpush1.msra.mxu0 %v1636
      %1733 = vmatprep.subr.mxu0 0.0
      %1734 = vmatpush1.msra.mxu0 %v1637
      %1735 = vmatprep.subr.mxu0 0.0
      %1736 = vmatpush1.msra.mxu0 %v1638
      %1737 = vmatprep.subr.mxu0 0.0
      %1738 = vmatpush1.msra.mxu0 %v1639
      %1739 = vmatprep.subr.mxu0 0.0
      %1740 = vmatpush1.msra.mxu0 %v1640
      %1741 = vmatprep.subr.mxu0 0.0
      %1742 = vmatpush1.msra.mxu0 0.0
      %1743 = vmatprep.subr.mxu0 0.0
      %1744 = vmatpush1.msra.mxu0 0.0
      %1745 = vmatprep.subr.mxu0 0.0
      %1746 = vmatpush1.msra.mxu0 0.0
      %1747 = vmatprep.subr.mxu0 0.0
      %1748 = vmatpush1.msra.mxu0 0.0
      %1749 = vmatprep.subr.mxu0 0.0
      %1750 = vmatpush1.msra.mxu0 0.0
      %1751 = vmatprep.subr.mxu0 0.0
      %1752 = vmatpush1.msra.mxu0 0.0
      %1753 = vmatprep.subr.mxu0 0.0
      %1754 = vmatpush1.msra.mxu0 0.0
      %1755 = vmatprep.subr.mxu0 0.0
      %1756 = vmatpush1.msra.mxu0 0.0
      %1757 = vmatprep.subr.mxu0 0.0
      %1758 = vmatpush1.msra.mxu0 0.0
      %1759 = vmatprep.subr.mxu0 0.0
      %1760 = vmatpush1.msra.mxu0 0.0
      %1761 = vmatprep.subr.mxu0 0.0
      %1762 = vmatpush1.msra.mxu0 0.0
      %1763 = vmatprep.subr.mxu0 0.0
      %1764 = vmatpush1.msra.mxu0 0.0
      %1765 = vmatprep.subr.mxu0 0.0
      %1766 = vmatpush1.msra.mxu0 0.0
      %1767 = vmatprep.subr.mxu0 0.0
      %1768 = vmatpush1.msra.mxu0 0.0
      %1769 = vmatprep.mubr.f32.mxu0 %v1641
      %1770 = vmatmul.mubr.f32.gmra.mrb[0].mxu0 %v1591
      %v1771 = vpop.f32.mrb[0].mxu0
      %v1772 = vadd.f32 0.0, %v1771
      %v1773 = vpop.f32.mrb[0].mxu0
      %1774 = vmatprep.mubr.f32.mxu0 %v1643
      %1775 = vmatmul.mubr.f32.gmra.mrb[0].mxu0 %v1592
      %v1776 = vpop.f32.mrb[0].mxu0
      %v1777 = vadd.f32 0.0, %v1776
      %v1778 = vpop.f32.mrb[0].mxu0
      %1779 = vmatprep.mubr.f32.mxu0 %v1645
      %1780 = vmatmul.mubr.f32.gmra.mrb[0].mxu0 %v1593
      %v1781 = vpop.f32.mrb[0].mxu0
      %v1782 = vadd.f32 0.0, %v1781
      %v1783 = vpop.f32.mrb[0].mxu0
      %1784 = vmatprep.mubr.f32.mxu0 %v1647
      %1785 = vmatmul.mubr.f32.gmra.mrb[0].mxu0 %v1594
      %v1786 = vpop.f32.mrb[0].mxu0
      %v1787 = vadd.f32 0.0, %v1786
      %v1788 = vpop.f32.mrb[0].mxu0
      %1789 = vmatprep.mubr.f32.mxu0 %v1649
      %1790 = vmatmul.mubr.f32.gmra.mrb[0].mxu0 %v1595
      %v1791 = vpop.f32.mrb[0].mxu0
      %v1792 = vadd.f32 0.0, %v1791
      %v1793 = vpop.f32.mrb[0].mxu0
      %1794 = vmatprep.mubr.f32.mxu0 %v1651
      %1795 = vmatmul.mubr.f32.gmra.mrb[0].mxu0 %v1596
      %v1796 = vpop.f32.mrb[0].mxu0
      %v1797 = vadd.f32 0.0, %v1796
      %v1798 = vpop.f32.mrb[0].mxu0
      %1799 = vmatprep.mubr.f32.mxu0 %v1653
      %1800 = vmatmul.mubr.f32.gmra.mrb[0].mxu0 %v1597
      %v1801 = vpop.f32.mrb[0].mxu0
      %v1802 = vadd.f32 0.0, %v1801
      %v1803 = vpop.f32.mrb[0].mxu0
      %1804 = vmatprep.mubr.f32.mxu0 %v1655
      %1805 = vmatmul.mubr.f32.gmra.mrb[0].mxu0 %v1598
      %v1806 = vpop.f32.mrb[0].mxu0
      %v1807 = vadd.f32 0.0, %v1806
      %v1808 = vpop.f32.mrb[0].mxu0
      %1809 = vmatprep.mubr.f32.mxu0 %v1657
      %1810 = vmatmul.mubr.f32.gmra.mrb[0].mxu0 %v1599
      %v1811 = vpop.f32.mrb[0].mxu0
      %v1812 = vadd.f32 0.0, %v1811
      %v1813 = vpop.f32.mrb[0].mxu0
      %1814 = vmatprep.mubr.f32.mxu0 %v1659
      %1815 = vmatmul.mubr.f32.gmra.mrb[0].mxu0 %v1600
      %v1816 = vpop.f32.mrb[0].mxu0
      %v1817 = vadd.f32 0.0, %v1816
      %v1818 = vpop.f32.mrb[0].mxu0
      %1819 = vmatprep.mubr.f32.mxu0 %v1661
      %1820 = vmatmul.mubr.f32.gmra.mrb[0].mxu0 %v1601
      %v1821 = vpop.f32.mrb[0].mxu0
      %v1822 = vadd.f32 0.0, %v1821
      %v1823 = vpop.f32.mrb[0].mxu0
      %1824 = vmatprep.mubr.f32.mxu0 %v1663
      %1825 = vmatmul.mubr.f32.gmra.mrb[0].mxu0 %v1602
      %v1826 = vpop.f32.mrb[0].mxu0
      %v1827 = vadd.f32 0.0, %v1826
      %v1828 = vpop.f32.mrb[0].mxu0
      %1829 = vmatprep.mubr.f32.mxu0 %v1665
      %1830 = vmatmul.mubr.f32.gmra.mrb[0].mxu0 %v1603
      %v1831 = vpop.f32.mrb[0].mxu0
      %v1832 = vadd.f32 0.0, %v1831
      %v1833 = vpop.f32.mrb[0].mxu0
      %1834 = vmatprep.mubr.f32.mxu0 %v1667
      %1835 = vmatmul.mubr.f32.gmra.mrb[0].mxu0 %v1604
      %v1836 = vpop.f32.mrb[0].mxu0
      %v1837 = vadd.f32 0.0, %v1836
      %v1838 = vpop.f32.mrb[0].mxu0
      %1839 = vmatprep.mubr.f32.mxu0 %v1669
      %1840 = vmatmul.mubr.f32.gmra.mrb[0].mxu0 %v1605
      %v1841 = vpop.f32.mrb[0].mxu0
      %v1842 = vadd.f32 0.0, %v1841
      %v1843 = vpop.f32.mrb[0].mxu0
      %1844 = vmatprep.mubr.f32.mxu0 %v1671
      %1845 = vmatmul.mubr.f32.gmra.mrb[0].mxu0 %v1606
      %v1846 = vpop.f32.mrb[0].mxu0
      %v1847 = vadd.f32 0.0, %v1846
      %v1848 = vpop.f32.mrb[0].mxu0
      %1849 = vmatprep.mubr.f32.mxu0 %v1673
      %1850 = vmatmul.mubr.f32.gmra.mrb[0].mxu0 %v1607
      %v1851 = vpop.f32.mrb[0].mxu0
      %v1852 = vadd.f32 0.0, %v1851
      %v1853 = vpop.f32.mrb[0].mxu0
      %1854 = vmatprep.mubr.f32.mxu0 %v1675
      %1855 = vmatmul.mubr.f32.gmra.mrb[0].mxu0 %v1608
      %v1856 = vpop.f32.mrb[0].mxu0
      %v1857 = vadd.f32 0.0, %v1856
      %v1858 = vpop.f32.mrb[0].mxu0
      %1859 = vmatprep.mubr.f32.mxu0 %v1677
      %1860 = vmatmul.mubr.f32.gmra.mrb[0].mxu0 %v1609
      %v1861 = vpop.f32.mrb[0].mxu0
      %v1862 = vadd.f32 0.0, %v1861
      %v1863 = vpop.f32.mrb[0].mxu0
      %1864 = vmatprep.mubr.f32.mxu0 %v1679
      %1865 = vmatmul.mubr.f32.gmra.mrb[0].mxu0 %v1610
      %v1866 = vpop.f32.mrb[0].mxu0
      %v1867 = vadd.f32 0.0, %v1866
      %v1868 = vpop.f32.mrb[0].mxu0
      %1869 = vmatprep.mubr.f32.mxu0 %v1681
      %1870 = vmatmul.mubr.f32.gmra.mrb[0].mxu0 %v1611
      %v1871 = vpop.f32.mrb[0].mxu0
      %v1872 = vadd.f32 0.0, %v1871
      %v1873 = vpop.f32.mrb[0].mxu0
      %1874 = vmatprep.mubr.f32.mxu0 %v1683
      %1875 = vmatmul.mubr.f32.gmra.mrb[0].mxu0 %v1612
      %v1876 = vpop.f32.mrb[0].mxu0
      %v1877 = vadd.f32 0.0, %v1876
      %v1878 = vpop.f32.mrb[0].mxu0
      %1879 = vmatprep.mubr.f32.mxu0 %v1685
      %1880 = vmatmul.mubr.f32.gmra.mrb[0].mxu0 %v1613
      %v1881 = vpop.f32.mrb[0].mxu0
      %v1882 = vadd.f32 0.0, %v1881
      %v1883 = vpop.f32.mrb[0].mxu0
      %1884 = vmatprep.mubr.f32.mxu0 %v1687
      %1885 = vmatmul.mubr.f32.gmra.mrb[0].mxu0 %v1614
      %v1886 = vpop.f32.mrb[0].mxu0
      %v1887 = vadd.f32 0.0, %v1886
      %v1888 = vpop.f32.mrb[0].mxu0
      %1889 = vmatprep.mubr.f32.mxu0 %v1689
      %1890 = vmatmul.mubr.f32.gmra.mrb[0].mxu0 %v1615
      %v1891 = vpop.f32.mrb[0].mxu0
      %v1892 = vadd.f32 0.0, %v1891
      %v1893 = vpop.f32.mrb[0].mxu0
      %1894 = vmatprep.mubr.f32.mxu0 %v1691
      %1895 = vmatmul.mubr.f32.gmra.mrb[0].mxu0 %v1616
      %v1896 = vpop.f32.mrb[0].mxu0
      %v1897 = vadd.f32 0.0, %v1896
      %v1898 = vpop.f32.mrb[0].mxu0
      %1899 = vmatprep.mubr.f32.mxu0 %v1693
      %1900 = vmatmul.mubr.f32.gmra.mrb[0].mxu0 %v1617
      %v1901 = vpop.f32.mrb[0].mxu0
      %v1902 = vadd.f32 0.0, %v1901
      %v1903 = vpop.f32.mrb[0].mxu0
      %1904 = vmatprep.mubr.f32.mxu0 %v1695
      %1905 = vmatmul.mubr.f32.gmra.mrb[0].mxu0 %v1618
      %v1906 = vpop.f32.mrb[0].mxu0
      %v1907 = vadd.f32 0.0, %v1906
      %v1908 = vpop.f32.mrb[0].mxu0
      %1909 = vmatprep.mubr.f32.mxu0 %v1697
      %1910 = vmatmul.mubr.f32.gmra.mrb[0].mxu0 %v1619
      %v1911 = vpop.f32.mrb[0].mxu0
      %v1912 = vadd.f32 0.0, %v1911
      %v1913 = vpop.f32.mrb[0].mxu0
      %1914 = vmatprep.mubr.f32.mxu0 %v1699
      %1915 = vmatmul.mubr.f32.gmra.mrb[0].mxu0 %v1620
      %v1916 = vpop.f32.mrb[0].mxu0
      %v1917 = vadd.f32 0.0, %v1916
      %v1918 = vpop.f32.mrb[0].mxu0
      %1919 = vmatprep.mubr.f32.mxu0 %v1701
      %1920 = vmatmul.mubr.f32.gmra.mrb[0].mxu0 %v1621
      %v1921 = vpop.f32.mrb[0].mxu0
      %v1922 = vadd.f32 0.0, %v1921
      %v1923 = vpop.f32.mrb[0].mxu0
      %1924 = vmatprep.mubr.f32.mxu0 %v1703
      %1925 = vmatmul.mubr.f32.gmra.mrb[0].mxu0 %v1622
      %v1926 = vpop.f32.mrb[0].mxu0
      %v1927 = vadd.f32 0.0, %v1926
      %v1928 = vpop.f32.mrb[0].mxu0
      %1929 = vdwg.mxu0
      %vm1930 = vcmask 64512
      %v1931 = vsel %vm1930, %v1772, 0.0
      %v1932 = vsel %vm1930, %v1777, 0.0
      %v1933 = vadd.f32 %v1931, %v1932
      %v1934 = vsel %vm1930, %v1782, 0.0
      %v1935 = vadd.f32 %v1933, %v1934
      %v1936 = vsel %vm1930, %v1787, 0.0
      %v1937 = vadd.f32 %v1935, %v1936
      %v1938 = vsel %vm1930, %v1792, 0.0
      %v1939 = vadd.f32 %v1937, %v1938
      %v1940 = vsel %vm1930, %v1797, 0.0
      %v1941 = vadd.f32 %v1939, %v1940
      %v1942 = vsel %vm1930, %v1802, 0.0
      %v1943 = vadd.f32 %v1941, %v1942
      %v1944 = vsel %vm1930, %v1807, 0.0
      %v1945 = vadd.f32 %v1943, %v1944
      %v1946 = vsel %vm1930, %v1812, 0.0
      %v1947 = vadd.f32 %v1945, %v1946
      %v1948 = vsel %vm1930, %v1817, 0.0
      %v1949 = vadd.f32 %v1947, %v1948
      %v1950 = vsel %vm1930, %v1822, 0.0
      %v1951 = vadd.f32 %v1949, %v1950
      %v1952 = vsel %vm1930, %v1827, 0.0
      %v1953 = vadd.f32 %v1951, %v1952
      %v1954 = vsel %vm1930, %v1832, 0.0
      %v1955 = vadd.f32 %v1953, %v1954
      %v1956 = vsel %vm1930, %v1837, 0.0
      %v1957 = vadd.f32 %v1955, %v1956
      %v1958 = vsel %vm1930, %v1842, 0.0
      %v1959 = vadd.f32 %v1957, %v1958
      %v1960 = vsel %vm1930, %v1847, 0.0
      %v1961 = vadd.f32 %v1959, %v1960
      %v1962 = vsel %vm1930, %v1852, 0.0
      %v1963 = vadd.f32 %v1961, %v1962
      %v1964 = vsel %vm1930, %v1857, 0.0
      %v1965 = vadd.f32 %v1963, %v1964
      %v1966 = vsel %vm1930, %v1862, 0.0
      %v1967 = vadd.f32 %v1965, %v1966
      %v1968 = vsel %vm1930, %v1867, 0.0
      %v1969 = vadd.f32 %v1967, %v1968
      %v1970 = vsel %vm1930, %v1872, 0.0
      %v1971 = vadd.f32 %v1969, %v1970
      %v1972 = vsel %vm1930, %v1877, 0.0
      %v1973 = vadd.f32 %v1971, %v1972
      %v1974 = vsel %vm1930, %v1882, 0.0
      %v1975 = vadd.f32 %v1973, %v1974
      %v1976 = vsel %vm1930, %v1887, 0.0
      %v1977 = vadd.f32 %v1975, %v1976
      %v1978 = vsel %vm1930, %v1892, 0.0
      %v1979 = vadd.f32 %v1977, %v1978
      %v1980 = vsel %vm1930, %v1897, 0.0
      %v1981 = vadd.f32 %v1979, %v1980
      %v1982 = vsel %vm1930, %v1902, 0.0
      %v1983 = vadd.f32 %v1981, %v1982
      %v1984 = vsel %vm1930, %v1907, 0.0
      %v1985 = vadd.f32 %v1983, %v1984
      %v1986 = vsel %vm1930, %v1912, 0.0
      %v1987 = vadd.f32 %v1985, %v1986
      %v1988 = vsel %vm1930, %v1917, 0.0
      %v1989 = vadd.f32 %v1987, %v1988
      %v1990 = vsel %vm1930, %v1922, 0.0
      %v1991 = vadd.f32 %v1989, %v1990
      %v1992 = vsel %vm1930, %v1927, 0.0
      %v1993 = vadd.f32 %v1991, %v1992
      %v1994 = vrot.slane %v1993, 4
      %v1995 = vadd.f32 %v1993, %v1994
      %v1996 = vrot.slane %v1995, 2
      %v1997 = vadd.f32 %v1995, %v1996
      %v1998 = vrot.slane %v1997, 1
      %v1999 = vadd.f32 %v1997, %v1998
      %v2000 = vmul.f32 %v1772, %v1772
      %v2001 = vmul.f32 %v1777, %v1777
      %v2002 = vmul.f32 %v1782, %v1782
      %v2003 = vmul.f32 %v1787, %v1787
      %v2004 = vmul.f32 %v1792, %v1792
      %v2005 = vmul.f32 %v1797, %v1797
      %v2006 = vmul.f32 %v1802, %v1802
      %v2007 = vmul.f32 %v1807, %v1807
      %v2008 = vmul.f32 %v1812, %v1812
      %v2009 = vmul.f32 %v1817, %v1817
      %v2010 = vmul.f32 %v1822, %v1822
      %v2011 = vmul.f32 %v1827, %v1827
      %v2012 = vmul.f32 %v1832, %v1832
      %v2013 = vmul.f32 %v1837, %v1837
      %v2014 = vmul.f32 %v1842, %v1842
      %v2015 = vmul.f32 %v1847, %v1847
      %v2016 = vmul.f32 %v1852, %v1852
      %v2017 = vmul.f32 %v1857, %v1857
      %v2018 = vmul.f32 %v1862, %v1862
      %v2019 = vmul.f32 %v1867, %v1867
      %v2020 = vmul.f32 %v1872, %v1872
      %v2021 = vmul.f32 %v1877, %v1877
      %v2022 = vmul.f32 %v1882, %v1882
      %v2023 = vmul.f32 %v1887, %v1887
      %v2024 = vmul.f32 %v1892, %v1892
      %v2025 = vmul.f32 %v1897, %v1897
      %v2026 = vmul.f32 %v1902, %v1902
      %v2027 = vmul.f32 %v1907, %v1907
      %v2028 = vmul.f32 %v1912, %v1912
      %v2029 = vmul.f32 %v1917, %v1917
      %v2030 = vmul.f32 %v1922, %v1922
      %v2031 = vmul.f32 %v1927, %v1927
      %v2032 = vsel %vm1930, %v2000, 0.0
      %v2033 = vsel %vm1930, %v2001, 0.0
      %v2034 = vadd.f32 %v2032, %v2033
      %v2035 = vsel %vm1930, %v2002, 0.0
      %v2036 = vadd.f32 %v2034, %v2035
      %v2037 = vsel %vm1930, %v2003, 0.0
      %v2038 = vadd.f32 %v2036, %v2037
      %v2039 = vsel %vm1930, %v2004, 0.0
      %v2040 = vadd.f32 %v2038, %v2039
      %v2041 = vsel %vm1930, %v2005, 0.0
      %v2042 = vadd.f32 %v2040, %v2041
      %v2043 = vsel %vm1930, %v2006, 0.0
      %v2044 = vadd.f32 %v2042, %v2043
      %v2045 = vsel %vm1930, %v2007, 0.0
      %v2046 = vadd.f32 %v2044, %v2045
      %v2047 = vsel %vm1930, %v2008, 0.0
      %v2048 = vadd.f32 %v2046, %v2047
      %v2049 = vsel %vm1930, %v2009, 0.0
      %v2050 = vadd.f32 %v2048, %v2049
      %v2051 = vsel %vm1930, %v2010, 0.0
      %v2052 = vadd.f32 %v2050, %v2051
      %v2053 = vsel %vm1930, %v2011, 0.0
      %v2054 = vadd.f32 %v2052, %v2053
      %v2055 = vsel %vm1930, %v2012, 0.0
      %v2056 = vadd.f32 %v2054, %v2055
      %v2057 = vsel %vm1930, %v2013, 0.0
      %v2058 = vadd.f32 %v2056, %v2057
      %v2059 = vsel %vm1930, %v2014, 0.0
      %v2060 = vadd.f32 %v2058, %v2059
      %v2061 = vsel %vm1930, %v2015, 0.0
      %v2062 = vadd.f32 %v2060, %v2061
      %v2063 = vsel %vm1930, %v2016, 0.0
      %v2064 = vadd.f32 %v2062, %v2063
      %v2065 = vsel %vm1930, %v2017, 0.0
      %v2066 = vadd.f32 %v2064, %v2065
      %v2067 = vsel %vm1930, %v2018, 0.0
      %v2068 = vadd.f32 %v2066, %v2067
      %v2069 = vsel %vm1930, %v2019, 0.0
      %v2070 = vadd.f32 %v2068, %v2069
      %v2071 = vsel %vm1930, %v2020, 0.0
      %v2072 = vadd.f32 %v2070, %v2071
      %v2073 = vsel %vm1930, %v2021, 0.0
      %v2074 = vadd.f32 %v2072, %v2073
      %v2075 = vsel %vm1930, %v2022, 0.0
      %v2076 = vadd.f32 %v2074, %v2075
      %v2077 = vsel %vm1930, %v2023, 0.0
      %v2078 = vadd.f32 %v2076, %v2077
      %v2079 = vsel %vm1930, %v2024, 0.0
      %v2080 = vadd.f32 %v2078, %v2079
      %v2081 = vsel %vm1930, %v2025, 0.0
      %v2082 = vadd.f32 %v2080, %v2081
      %v2083 = vsel %vm1930, %v2026, 0.0
      %v2084 = vadd.f32 %v2082, %v2083
      %v2085 = vsel %vm1930, %v2027, 0.0
      %v2086 = vadd.f32 %v2084, %v2085
      %v2087 = vsel %vm1930, %v2028, 0.0
      %v2088 = vadd.f32 %v2086, %v2087
      %v2089 = vsel %vm1930, %v2029, 0.0
      %v2090 = vadd.f32 %v2088, %v2089
      %v2091 = vsel %vm1930, %v2030, 0.0
      %v2092 = vadd.f32 %v2090, %v2091
      %v2093 = vsel %vm1930, %v2031, 0.0
      %v2094 = vadd.f32 %v2092, %v2093
      %v2095 = vrot.slane %v2094, 4
      %v2096 = vadd.f32 %v2094, %v2095
      %v2097 = vrot.slane %v2096, 2
      %v2098 = vadd.f32 %v2096, %v2097
      %v2099 = vrot.slane %v2098, 1
      %v2100 = vadd.f32 %v2098, %v2099
      %vm2101 = vcmask 1040384
      %v2102 = vsel %vm2101, %v1999, %v2100
      %vm2103 = vcmask 58368
      %2104 = vst.msk [vmem:[%s415] sm:$0x3] %vm2103, %v2102
      %2105 = vst.msk [vmem:[%s407] sm:$0xff] %vm1930, %v1772
      %2106 = vst.msk [vmem:[%s407 + $0x8] sm:$0xff] %vm1930, %v1777
      %2107 = vst.msk [vmem:[%s407 + $0x10] sm:$0xff] %vm1930, %v1782
      %2108 = vst.msk [vmem:[%s407 + $0x18] sm:$0xff] %vm1930, %v1787
      %2109 = vst.msk [vmem:[%s407 + $0x20] sm:$0xff] %vm1930, %v1792
      %2110 = vst.msk [vmem:[%s407 + $0x28] sm:$0xff] %vm1930, %v1797
      %2111 = vst.msk [vmem:[%s407 + $0x30] sm:$0xff] %vm1930, %v1802
      %2112 = vst.msk [vmem:[%s407 + $0x38] sm:$0xff] %vm1930, %v1807
      %2113 = vst.msk [vmem:[%s407 + $0x40] sm:$0xff] %vm1930, %v1812
      %2114 = vst.msk [vmem:[%s407 + $0x48] sm:$0xff] %vm1930, %v1817
      %2115 = vst.msk [vmem:[%s407 + $0x50] sm:$0xff] %vm1930, %v1822
      %2116 = vst.msk [vmem:[%s407 + $0x58] sm:$0xff] %vm1930, %v1827
      %2117 = vst.msk [vmem:[%s407 + $0x60] sm:$0xff] %vm1930, %v1832
      %2118 = vst.msk [vmem:[%s407 + $0x68] sm:$0xff] %vm1930, %v1837
      %2119 = vst.msk [vmem:[%s407 + $0x70] sm:$0xff] %vm1930, %v1842
      %2120 = vst.msk [vmem:[%s407 + $0x78] sm:$0xff] %vm1930, %v1847
      %2121 = vst.msk [vmem:[%s407 + $0x80] sm:$0xff] %vm1930, %v1852
      %2122 = vst.msk [vmem:[%s407 + $0x88] sm:$0xff] %vm1930, %v1857
      %2123 = vst.msk [vmem:[%s407 + $0x90] sm:$0xff] %vm1930, %v1862
      %2124 = vst.msk [vmem:[%s407 + $0x98] sm:$0xff] %vm1930, %v1867
      %2125 = vst.msk [vmem:[%s407 + $0xa0] sm:$0xff] %vm1930, %v1872
      %2126 = vst.msk [vmem:[%s407 + $0xa8] sm:$0xff] %vm1930, %v1877
      %2127 = vst.msk [vmem:[%s407 + $0xb0] sm:$0xff] %vm1930, %v1882
      %2128 = vst.msk [vmem:[%s407 + $0xb8] sm:$0xff] %vm1930, %v1887
      %2129 = vst.msk [vmem:[%s407 + $0xc0] sm:$0xff] %vm1930, %v1892
      %2130 = vst.msk [vmem:[%s407 + $0xc8] sm:$0xff] %vm1930, %v1897
      %2131 = vst.msk [vmem:[%s407 + $0xd0] sm:$0xff] %vm1930, %v1902
      %2132 = vst.msk [vmem:[%s407 + $0xd8] sm:$0xff] %vm1930, %v1907
      %2133 = vst.msk [vmem:[%s407 + $0xe0] sm:$0xff] %vm1930, %v1912
      %2134 = vst.msk [vmem:[%s407 + $0xe8] sm:$0xff] %vm1930, %v1917
      %2135 = vst.msk [vmem:[%s407 + $0xf0] sm:$0xff] %vm1930, %v1922
      %2136 = vst.msk [vmem:[%s407 + $0xf8] sm:$0xff] %vm1930, %v1927
      %s2137 = smul.u32 16, %s22
      %p2138 = scmp.lt.s32.totalorder %s21, 1
      %s2139 = scalar_select %p2138, %s21, 1
      %p2140 = scmp.lt.s32.totalorder %s2137, 15
      %s2141 = scalar_select %p2140, %s2137, 15
      %s2142 = smul.addr %s2141, 2
      %s2143 = smul.addr %s2139, 32
      %s2144 = sadd.s32 %s2142, %s2143
      %s2145 = smul.addr %s2144, 8
      %s2146 = scalar_lea.vmem %s4, %s2145
      %p2147 = scmp.lt.s32.totalorder %s21, 1
      %s2148 = scalar_select %p2147, %s21, 1
      %p2149 = scmp.lt.s32.totalorder %s22, 0
      %s2150 = scalar_select %p2149, %s22, 0
      %s2151 = sadd.s32 %s2150, %s2148
      %s2152 = smul.addr %s2151, 2
      %s2153 = scalar_lea.vmem %s5, %s2152
      // Predicated region
      $region37: #{up_forward.3} parent=35 // pred_check
        %p2154 = pneg %p164
      $region38: #{up_forward.3} parent=35 // pred_check_branch
        %2156 = sbr.rel (%p2154) target = $region40
      $region39: #{up_forward.3} parent=35 // pred_region
        %s2157 = smul.u32 16, %s22
      $region40: #{up_forward.3} parent=35 // pred_fallthru
        _
      // Predicated region
      $region41: #{up_forward.3} parent=35 // pred_check
        %p2158 = pneg %p192
      $region42: #{up_forward.3} parent=35 // pred_check_branch
        %2160 = sbr.rel (%p2158) target = $region44
      $region43: #{up_forward.3} parent=35 // pred_region
        _
      $region44: #{up_forward.3} parent=35 // pred_fallthru
        _
    $region36: #{up_forward.3} parent=5 // pred_fallthru
      _
    %p2161 = scmp.le.s32.totalorder 2, %s12
    // Predicated region
    $region45: #{up_forward.3} parent=5 // pred_check
      %p2162 = pneg %p2161
    $region46: #{up_forward.3} parent=5 // pred_check_branch
      %2164 = sbr.rel (%p2162) target = $region48
    $region47: #{up_forward.3} parent=5 // pred_region
      %s2165 = ssub.s32 %s12, 2
      // Predicated region
      $region49: #{up_forward.3} parent=47 // pred_check
        %p2166 = pneg %p170
      $region50: #{up_forward.3} parent=47 // pred_check_branch
        %2168 = sbr.rel (%p2166) target = $region52
      $region51: #{up_forward.3} parent=47 // pred_region
        %s2169 = smul.u32 16, %s24
        %p2170 = scmp.lt.s32.totalorder %s23, 1
        %s2171 = scalar_select %p2170, %s23, 1
        %p2172 = scmp.lt.s32.totalorder %s2169, 15
        %s2173 = scalar_select %p2172, %s2169, 15
        %s2174 = smul.addr %s2173, 2
        %s2175 = smul.addr %s2171, 32
        %s2176 = sadd.s32 %s2174, %s2175
        %s2177 = smul.addr %s2176, 8
        %s2178 = scalar_lea.vmem %s4, %s2177
      $region52: #{up_forward.3} parent=47 // pred_fallthru
        _
      // Predicated region
      $region53: #{up_forward.3} parent=47 // pred_check
        %p2179 = pneg %p198
      $region54: #{up_forward.3} parent=47 // pred_check_branch
        %2181 = sbr.rel (%p2179) target = $region56
      $region55: #{up_forward.3} parent=47 // pred_region
        %p2182 = scmp.lt.s32.totalorder %s23, 1
        %s2183 = scalar_select %p2182, %s23, 1
        %p2184 = scmp.lt.s32.totalorder %s24, 0
        %s2185 = scalar_select %p2184, %s24, 0
        %s2186 = sadd.s32 %s2185, %s2183
        %s2187 = smul.addr %s2186, 2
        %s2188 = scalar_lea.vmem %s5, %s2187
      $region56: #{up_forward.3} parent=47 // pred_fallthru
        _
    $region48: #{up_forward.3} parent=5 // pred_fallthru
      _
  $region6: #{up_forward.3} parent=0 // loop_footer
    %s16 = sadd.s32 1, %s12
  $region7: #{up_forward.3} parent=0 // loop_footer_branch
    %11 = sbr.rel target = $region3
  $region8: #{up_forward.3} parent=0 // loop_exit
    _

</llo_original>
